<compile_context>
chip_gen: v7x
topology: tpu7x:2x2x1
jax: 0.10.0
libtpu: 0.0.40
codegen_flags: <defaults>
</compile_context>

<pallas_src>
import functools

import jax
import jax.numpy as jnp
import numpy as np
from jax import lax
from jax.experimental import pallas as pl
from jax.experimental.pallas import tpu as pltpu

# ----------------------- small, module-consistent config ---------------------
NUM_CLASSES = 10
IN_CHANNELS = 1
N_MELS = 32          # input time dim must equal n_mels for the classifier view
NUM_LAYER = 3
FRONT_CH = 8
FRONT_K = 5
HIDDEN = 32
MEM = 16             # backbone_memory_size
LEFT = 2
RIGHT = 2
DIL = 1
BN_EPS = 1e-5


# ============================ Pallas kernel 1 =================================
# Front-end Conv2d (+folded BN + ReLU) as an im2col matmul with a LANE-DENSE
# output: out(Cout, Nb) = W(Cout, Cp) @ patches(Cp, Nb), Nb = B*Ho*Wo tile.
def _front_conv_kernel(w_ref, p_ref, scale_ref, shift_ref, o_ref):
    y = jnp.dot(w_ref[...], p_ref[...], preferred_element_type=jnp.float32)
    y = y * scale_ref[...] + shift_ref[...]
    o_ref[...] = jnp.maximum(y, 0.0)


def pallas_front_conv(w, patches, scale, shift):
    Co, Cp = w.shape
    N = patches.shape[1]
    # Lane-dense column tiles (multiples of 128); keep >1 tile when possible so
    # the "parallel" grid axis can be split across TensorCores.
    nb = 256 if N % 256 == 0 else N
    grid = (N // nb,)
    return pl.pallas_call(
        _front_conv_kernel,
        out_shape=jax.ShapeDtypeStruct((Co, N), jnp.float32),
        grid=grid,
        in_specs=[
            pl.BlockSpec((Co, Cp), lambda i: (0, 0)),
            pl.BlockSpec((Cp, nb), lambda i: (0, i)),
            pl.BlockSpec((Co, 1), lambda i: (0, 0)),
            pl.BlockSpec((Co, 1), lambda i: (0, 0)),
        ],
        out_specs=pl.BlockSpec((Co, nb), lambda i: (0, i)),
        compiler_params=pltpu.CompilerParams(dimension_semantics=("parallel",)),
    )(w, patches, scale, shift)


# ============================ Pallas kernel 2 =================================
# Fused: fc1 (Linear+ReLU) -> NUM_LAYER x DfsmnLayerBN -> classifier Linear.
# One grid step per batch element ("parallel" -> one batch per TC on v7x).
def _fused_head_kernel(feat_ref, fc1w_ref, fc1b_ref,
                       dw_ref, dws_ref, dwb_ref,
                       w1_ref, s1_ref, b1_ref,
                       w2_ref, s2_ref, b2_ref,
                       clsw_ref, clsb_ref,
                       o_ref, pad_ref,
                       *, num_layer, left, right, dil):
    feat = feat_ref[0]                                    # (D, T), T on lanes
    # fc1: Linear + ReLU, computed as (M,D)@(D,T) so time stays on lanes.
    x = jnp.maximum(
        jnp.dot(fc1w_ref[...], feat, preferred_element_type=jnp.float32)
        + fc1b_ref[...], 0.0)                             # (M, T)
    M, T = x.shape
    lp = left * dil
    K = left + right + 1

    # Persistent padded scratch: zero ONLY the pad columns once per grid step
    # (the data columns are overwritten every layer).
    pad_ref[:, 0:lp] = jnp.zeros((M, lp), pad_ref.dtype)
    pad_ref[:, lp + T:] = jnp.zeros((M, pad_ref.shape[1] - lp - T), pad_ref.dtype)

    for l in range(num_layer):                            # static unrolled
        # depthwise 1-D conv over time (memory branch) via the padded scratch
        pad_ref[:, lp:lp + T] = x
        wdw = dw_ref[l]                                   # (M, K)
        conv = wdw[:, 0:1] * pad_ref[:, 0:T]              # k = 0 tap
        for k in range(1, K):
            conv = conv + wdw[:, k:k + 1] * pad_ref[:, k * dil:k * dil + T]
        # BN(eval)+ReLU folded into scale/shift, then residual add
        mem = jnp.maximum(conv * dws_ref[l] + dwb_ref[l], 0.0) + x
        # fc_trans: 1x1 conv -> BN -> ReLU -> 1x1 conv -> BN -> ReLU
        h = jnp.maximum(
            jnp.dot(w1_ref[l], mem, preferred_element_type=jnp.float32)
            * s1_ref[l] + b1_ref[l], 0.0)
        fc = jnp.maximum(
            jnp.dot(w2_ref[l], h, preferred_element_type=jnp.float32)
            * s2_ref[l] + b2_ref[l], 0.0)
        x = fc + mem                                      # residual

    # classifier on the M-major flattened (M, T) (== torch .view(batch, -1));
    # elementwise mult + reductions avoid an in-kernel (M,T)->(1,M*T)
    # relayout.  clsw is (NC, M, T) = cls_w.reshape(NC, M, T).
    prod = clsw_ref[...] * x[None, :, :]                  # (NC, M, T)
    s = jnp.sum(prod, axis=2)                             # (NC, M)
    logits = jnp.sum(s, axis=1, keepdims=True) + clsb_ref[...]   # (NC, 1)
    o_ref[0] = logits


def pallas_fused_head(feat, P):
    B, D, T = feat.shape
    L, M, _K = P['dw_w'].shape
    NC = P['cls_w3'].shape[0]
    pad_w = T + (LEFT + RIGHT) * DIL

    def full(a):
        return pl.BlockSpec(a.shape, lambda b, _n=a.ndim: (0,) * _n)

    kern = functools.partial(_fused_head_kernel, num_layer=L,
                             left=LEFT, right=RIGHT, dil=DIL)
    out = pl.pallas_call(
        kern,
        out_shape=jax.ShapeDtypeStruct((B, NC, 1), jnp.float32),
        grid=(B,),
        in_specs=[
            pl.BlockSpec((1, D, T), lambda b: (b, 0, 0)),
            full(P['fc1_w']), full(P['fc1_b']),
            full(P['dw_w']), full(P['dw_scale']), full(P['dw_shift']),
            full(P['w1']), full(P['s1']), full(P['b1']),
            full(P['w2']), full(P['s2']), full(P['b2']),
            full(P['cls_w3']), full(P['cls_b']),
        ],
        out_specs=pl.BlockSpec((1, NC, 1), lambda b: (b, 0, 0)),
        scratch_shapes=[pltpu.VMEM((M, pad_w), jnp.float32)],
        compiler_params=pltpu.CompilerParams(dimension_semantics=("parallel",)),
    )(feat, P['fc1_w'], P['fc1_b'],
      P['dw_w'], P['dw_scale'], P['dw_shift'],
      P['w1'], P['s1'], P['b1'], P['w2'], P['s2'], P['b2'],
      P['cls_w3'], P['cls_b'])
    return out[:, :, 0]                                   # (B, NUM_CLASSES)


# ------------------------------- JAX glue -------------------------------------
# TODO(synk): patch extraction (im2col) stays in the XLA wrapper; a strided
# spatial gather has no clean BlockSpec form for stride-2 convs at this size.
def im2col_T(x, ksize, stride, pad):
    """NCHW x -> (C*k*k, B*Ho*Wo) patches (C-major rows, matching torch's
    Conv2d weight.reshape(Cout, C*k*k); columns ordered (b, ho, wo))."""
    B, C, H, W = x.shape
    xp = jnp.pad(x, ((0, 0), (0, 0), (pad, pad), (pad, pad)))
    Ho = (H + 2 * pad - ksize) // stride + 1
    Wo = (W + 2 * pad - ksize) // stride + 1
    cols = []
    for i in range(ksize):
        for j in range(ksize):
            cols.append(xp[:, :, i:i + (Ho - 1) * stride + 1:stride,
                              j:j + (Wo - 1) * stride + 1:stride])
    p = jnp.stack(cols, axis=0)                     # (k*k, B, C, Ho, Wo)
    p = p.transpose(2, 0, 1, 3, 4)                  # (C, k*k, B, Ho, Wo)
    return p.reshape(C * ksize * ksize, B * Ho * Wo), Ho, Wo


def model_forward_pallas(x, P):
    B = x.shape[0]
    # front_end block 1: Conv2d(s=2,p=2,k=5) + BN + ReLU (lane-dense output)
    p1, Ho, Wo = im2col_T(x, FRONT_K, 2, FRONT_K // 2)
    y1 = pallas_front_conv(P['fe1_w'], p1, P['fe1_scale'], P['fe1_shift'])
    y1 = y1.reshape(FRONT_CH, B, Ho, Wo).transpose(1, 0, 2, 3)
    # front_end block 2
    p2, Ho2, Wo2 = im2col_T(y1, FRONT_K, 2, FRONT_K // 2)
    y2 = pallas_front_conv(P['fe2_w'], p2, P['fe2_scale'], P['fe2_shift'])
    # (C2, B, H', W') -> (B, C2, H', W') -> (B, C2*H', W') = (B, D, T)
    feat = (y2.reshape(2 * FRONT_CH, B, Ho2, Wo2)
              .transpose(1, 0, 2, 3)
              .reshape(B, 2 * FRONT_CH * Ho2, Wo2))
    # fused fc1 + DFSMN backbone + classifier (Dropout = eval identity)
    return pallas_fused_head(feat, P)


# ------------------------ pure-JAX reference path -----------------------------
def _bn_apply(y, bn):
    g, b, m, v = bn
    shape = (1, -1) + (1,) * (y.ndim - 2)
    return ((y - m.reshape(shape))
            * (g.reshape(shape) / jnp.sqrt(v.reshape(shape) + BN_EPS))
            + b.reshape(shape))


def model_forward_reference(x, R):
    B = x.shape[0]
    hp = lax.Precision.HIGHEST
    y = lax.conv_general_dilated(x, R['fe1_w'], (2, 2), [(2, 2), (2, 2)],
                                 dimension_numbers=('NCHW', 'OIHW', 'NCHW'),
                                 precision=hp)
    y = jnp.maximum(_bn_apply(y + R['fe1_b'][None, :, None, None], R['fe1_bn']), 0.0)
    y = lax.conv_general_dilated(y, R['fe2_w'], (2, 2), [(2, 2), (2, 2)],
                                 dimension_numbers=('NCHW', 'OIHW', 'NCHW'),
                                 precision=hp)
    y = jnp.maximum(_bn_apply(y + R['fe2_b'][None, :, None, None], R['fe2_bn']), 0.0)
    T = y.shape[3]
    feat = y.reshape(B, -1, T).transpose(0, 2, 1)            # (B, T, D)
    z = jnp.maximum(jnp.einsum('btd,md->bmt', feat, R['fc1_w'], precision=hp)
                    + R['fc1_b'][None, :, None], 0.0)        # (B, M, T)
    lp, rp = LEFT * DIL, RIGHT * DIL
    for l in range(NUM_LAYER):
        zp = jnp.pad(z, ((0, 0), (0, 0), (lp, rp)))
        conv = jnp.zeros_like(z)
        for k in range(LEFT + RIGHT + 1):
            conv = conv + (R['dw_w'][l][None, :, k:k + 1]
                           * zp[:, :, k * DIL:k * DIL + T])
        conv = conv + R['dw_b'][l][None, :, None]
        mem = jnp.maximum(_bn_apply(conv, R['dw_bn'][l]), 0.0) + z
        h = (jnp.einsum('hm,bmt->bht', R['w1'][l], mem, precision=hp)
             + R['b1'][l][None, :, None])
        h = jnp.maximum(_bn_apply(h, R['bn1'][l]), 0.0)
        fc = (jnp.einsum('mh,bht->bmt', R['w2'][l], h, precision=hp)
              + R['b2'][l][None, :, None])
        fc = jnp.maximum(_bn_apply(fc, R['bn2'][l]), 0.0)
        z = fc + mem
    flat = z.reshape(B, -1)
    return jnp.dot(flat, R['cls_w'].T, precision=hp) + R['cls_b'][None, :]


# -------------------------------- parameters ----------------------------------
def _fold_bn(bias, bn):
    gamma, beta, mean, var = bn
    s = gamma / jnp.sqrt(var + BN_EPS)
    return s, beta + (bias - mean) * s


def _bn_stats(key, n):
    k1, k2, k3, k4 = jax.random.split(key, 4)
    gamma = 1.0 + 0.1 * jax.random.normal(k1, (n,), jnp.float32)
    beta = 0.1 * jax.random.normal(k2, (n,), jnp.float32)
    mean = 0.1 * jax.random.normal(k3, (n,), jnp.float32)
    var = 1.0 + 0.1 * jax.random.uniform(k4, (n,), jnp.float32)
    return gamma, beta, mean, var


def init_params(key):
    def rnd(k, shape, scale=0.1):
        return scale * jax.random.normal(k, shape, jnp.float32)

    ks = jax.random.split(key, 5)
    P, R = {}, {}
    # front-end conv1 + BN (folded for the kernel path)
    k = jax.random.split(ks[0], 3)
    w, b = rnd(k[0], (FRONT_CH, IN_CHANNELS, FRONT_K, FRONT_K)), rnd(k[1], (FRONT_CH,))
    bn = _bn_stats(k[2], FRONT_CH)
    s, sh = _fold_bn(b, bn)
    R['fe1_w'], R['fe1_b'], R['fe1_bn'] = w, b, bn
    P['fe1_w'] = w.reshape(FRONT_CH, -1)
    P['fe1_scale'], P['fe1_shift'] = s.reshape(-1, 1), sh.reshape(-1, 1)
    # front-end conv2 + BN
    k = jax.random.split(ks[1], 3)
    w, b = rnd(k[0], (2 * FRONT_CH, FRONT_CH, FRONT_K, FRONT_K)), rnd(k[1], (2 * FRONT_CH,))
    bn = _bn_stats(k[2], 2 * FRONT_CH)
    s, sh = _fold_bn(b, bn)
    R['fe2_w'], R['fe2_b'], R['fe2_bn'] = w, b, bn
    P['fe2_w'] = w.reshape(2 * FRONT_CH, -1)
    P['fe2_scale'], P['fe2_shift'] = s.reshape(-1, 1), sh.reshape(-1, 1)
    # fc1 Linear (no BN)
    D = 2 * FRONT_CH * (N_MELS // 4)
    k = jax.random.split(ks[2], 2)
    w, b = rnd(k[0], (MEM, D)), rnd(k[1], (MEM,))
    R['fc1_w'], R['fc1_b'] = w, b
    P['fc1_w'], P['fc1_b'] = w, b.reshape(MEM, 1)
    # DFSMN backbone (BN variant), stacked per layer
    K = LEFT + RIGHT + 1
    acc = {n: [] for n in ('dw_w', 'dw_s', 'dw_b', 'w1', 's1', 'b1', 'w2', 's2', 'b2')}
    for n in ('dw_w', 'dw_b', 'dw_bn', 'w1', 'b1', 'bn1', 'w2', 'b2', 'bn2'):
        R[n] = []
    lks = jax.random.split(ks[3], NUM_LAYER)
    for l in range(NUM_LAYER):
        k = jax.random.split(lks[l], 9)
        wd, bd = rnd(k[0], (MEM, 1, K)), rnd(k[1], (MEM,))
        bn = _bn_stats(k[2], MEM); s, sh = _fold_bn(bd, bn)
        R['dw_w'].append(wd[:, 0, :]); R['dw_b'].append(bd); R['dw_bn'].append(bn)
        acc['dw_w'].append(wd[:, 0, :])
        acc['dw_s'].append(s.reshape(MEM, 1)); acc['dw_b'].append(sh.reshape(MEM, 1))
        wa, ba = rnd(k[3], (HIDDEN, MEM, 1)), rnd(k[4], (HIDDEN,))
        bn = _bn_stats(k[5], HIDDEN); s, sh = _fold_bn(ba, bn)
        R['w1'].append(wa[:, :, 0]); R['b1'].append(ba); R['bn1'].append(bn)
        acc['w1'].append(wa[:, :, 0])
        acc['s1'].append(s.reshape(HIDDEN, 1)); acc['b1'].append(sh.reshape(HIDDEN, 1))
        wb, bb = rnd(k[6], (MEM, HIDDEN, 1)), rnd(k[7], (MEM,))
        bn = _bn_stats(k[8], MEM); s, sh = _fold_bn(bb, bn)
        R['w2'].append(wb[:, :, 0]); R['b2'].append(bb); R['bn2'].append(bn)
        acc['w2'].append(wb[:, :, 0])
        acc['s2'].append(s.reshape(MEM, 1)); acc['b2'].append(sh.reshape(MEM, 1))
    P['dw_w'] = jnp.stack(acc['dw_w'])
    P['dw_scale'] = jnp.stack(acc['dw_s']); P['dw_shift'] = jnp.stack(acc['dw_b'])
    P['w1'] = jnp.stack(acc['w1']); P['s1'] = jnp.stack(acc['s1']); P['b1'] = jnp.stack(acc['b1'])
    P['w2'] = jnp.stack(acc['w2']); P['s2'] = jnp.stack(acc['s2']); P['b2'] = jnp.stack(acc['b2'])
    # classifier Linear
    T = N_MELS // 4
    k = jax.random.split(ks[4], 2)
    w, b = rnd(k[0], (NUM_CLASSES, MEM * T)), rnd(k[1], (NUM_CLASSES,))
    R['cls_w'], R['cls_b'] = w, b
    P['cls_w3'] = w.reshape(NUM_CLASSES, MEM, T)
    P['cls_b'] = b.reshape(NUM_CLASSES, 1)
    return P, R


# ----------------------------------- main --------------------------------------
if __name__ == "__main__":
    key = jax.random.PRNGKey(0)
    pkey, xkey = jax.random.split(key)
    P, R = init_params(pkey)
    # input: (batch, in_channels, n_mels, time) with time == n_mels
    x = jax.random.normal(xkey, (2, IN_CHANNELS, N_MELS, N_MELS), jnp.float32)

    out = jax.block_until_ready(jax.jit(model_forward_pallas)(x, P))
    assert out.shape == (2, NUM_CLASSES)

    ref = jax.block_until_ready(jax.jit(model_forward_reference)(x, R))
    out_np, ref_np = np.asarray(out), np.asarray(ref)
    if not np.allclose(out_np, ref_np, atol=2e-2, rtol=2e-2):
        raise SystemExit("kernel/reference mismatch: max abs diff = %g"
                         % float(np.max(np.abs(out_np - ref_np))))
    print("KERNEL_OK")
</pallas_src>

<mosaic_0001>
module attributes {stable_mosaic.version = 11 : i64} {
  func.func @_front_conv_kernel(%arg0: i32, %arg1: memref<8x25xf32, #tpu.memory_space<vmem>>, %arg2: memref<25x256xf32, #tpu.memory_space<vmem>>, %arg3: memref<8x1xf32, #tpu.memory_space<vmem>>, %arg4: memref<8x1xf32, #tpu.memory_space<vmem>>, %arg5: memref<8x256xf32, #tpu.memory_space<vmem>>) attributes {dimension_semantics = [#tpu.dimension_semantics<parallel>], iteration_bounds = array<i64: 2>, scalar_prefetch = 0 : i64, scratch_operands = 0 : i64, tpu.core_type = #tpu.core_type<tc>, window_params = [{pipeline_mode = #tpu.pipeline_mode<synchronous>, transform_indices = @transform_0, window_bounds = array<i64: 8, 25>}, {transform_indices = @transform_1, window_bounds = array<i64: 25, 256>}, {pipeline_mode = #tpu.pipeline_mode<synchronous>, transform_indices = @transform_2, window_bounds = array<i64: 8, 1>}, {pipeline_mode = #tpu.pipeline_mode<synchronous>, transform_indices = @transform_3, window_bounds = array<i64: 8, 1>}, {transform_indices = @transform_4, window_bounds = array<i64: 8, 256>}]} {
    %c0 = arith.constant 0 : index
    %c0_0 = arith.constant 0 : index
    %0 = vector.load %arg1[%c0, %c0_0] : memref<8x25xf32, #tpu.memory_space<vmem>>, vector<8x25xf32>
    %c0_1 = arith.constant 0 : index
    %c0_2 = arith.constant 0 : index
    %1 = vector.load %arg2[%c0_1, %c0_2] : memref<25x256xf32, #tpu.memory_space<vmem>>, vector<25x256xf32>
    %cst = arith.constant dense<0.000000e+00> : vector<8x256xf32>
    %2 = tpu.matmul %0, %1, %cst {dimension_numbers = #tpu.dot_dimension_numbers<[1], [0], [0], [1], [0, 0, 1, 1], [], []>} : vector<8x25xf32>, vector<25x256xf32>, vector<8x256xf32> -> vector<8x256xf32>
    %c0_3 = arith.constant 0 : index
    %c0_4 = arith.constant 0 : index
    %3 = vector.load %arg3[%c0_3, %c0_4] : memref<8x1xf32, #tpu.memory_space<vmem>>, vector<8x1xf32>
    %4 = vector.broadcast %3 : vector<8x1xf32> to vector<8x256xf32>
    %5 = arith.mulf %2, %4 : vector<8x256xf32>
    %c0_5 = arith.constant 0 : index
    %c0_6 = arith.constant 0 : index
    %6 = vector.load %arg4[%c0_5, %c0_6] : memref<8x1xf32, #tpu.memory_space<vmem>>, vector<8x1xf32>
    %7 = vector.broadcast %6 : vector<8x1xf32> to vector<8x256xf32>
    %8 = arith.addf %5, %7 : vector<8x256xf32>
    %cst_7 = arith.constant 0.000000e+00 : f32
    %9 = vector.broadcast %cst_7 : f32 to vector<8x256xf32>
    %10 = arith.maximumf %8, %9 : vector<8x256xf32>
    %c0_8 = arith.constant 0 : index
    %c0_9 = arith.constant 0 : index
    %11 = vector.load %arg5[%c0_8, %c0_9] : memref<8x256xf32, #tpu.memory_space<vmem>>, vector<8x256xf32>
    tpu.vector_store %arg5[%c0_8, %c0_9], %10 {strides = array<i32>} : memref<8x256xf32, #tpu.memory_space<vmem>>, vector<8x256xf32>,
    return
  }
  func.func @transform_0(%arg0: i32) -> (i32, i32) {
    %c0_i32 = arith.constant 0 : i32
    %c0_i32_0 = arith.constant 0 : i32
    %c0_i32_1 = arith.constant 0 : i32
    return %c0_i32, %c0_i32_0 : i32, i32
  }
  func.func @transform_1(%arg0: i32) -> (i32, i32) {
    %c0_i32 = arith.constant 0 : i32
    %c0_i32_0 = arith.constant 0 : i32
    return %c0_i32, %arg0 : i32, i32
  }
  func.func @transform_2(%arg0: i32) -> (i32, i32) {
    %c0_i32 = arith.constant 0 : i32
    %c0_i32_0 = arith.constant 0 : i32
    %c0_i32_1 = arith.constant 0 : i32
    return %c0_i32, %c0_i32_0 : i32, i32
  }
  func.func @transform_3(%arg0: i32) -> (i32, i32) {
    %c0_i32 = arith.constant 0 : i32
    %c0_i32_0 = arith.constant 0 : i32
    %c0_i32_1 = arith.constant 0 : i32
    return %c0_i32, %c0_i32_0 : i32, i32
  }
  func.func @transform_4(%arg0: i32) -> (i32, i32) {
    %c0_i32 = arith.constant 0 : i32
    %c0_i32_0 = arith.constant 0 : i32
    return %c0_i32, %arg0 : i32, i32
  }
}

module attributes {stable_mosaic.version = 11 : i64} {
  func.func @_front_conv_kernel(%arg0: i32, %arg1: memref<16x200xf32, #tpu.memory_space<vmem>>, %arg2: memref<200x128xf32, #tpu.memory_space<vmem>>, %arg3: memref<16x1xf32, #tpu.memory_space<vmem>>, %arg4: memref<16x1xf32, #tpu.memory_space<vmem>>, %arg5: memref<16x128xf32, #tpu.memory_space<vmem>>) attributes {dimension_semantics = [#tpu.dimension_semantics<parallel>], iteration_bounds = array<i64: 1>, scalar_prefetch = 0 : i64, scratch_operands = 0 : i64, tpu.core_type = #tpu.core_type<tc>, window_params = [{pipeline_mode = #tpu.pipeline_mode<synchronous>, transform_indices = @transform_0, window_bounds = array<i64: 16, 200>}, {transform_indices = @transform_1, window_bounds = array<i64: 200, 128>}, {pipeline_mode = #tpu.pipeline_mode<synchronous>, transform_indices = @transform_2, window_bounds = array<i64: 16, 1>}, {pipeline_mode = #tpu.pipeline_mode<synchronous>, transform_indices = @transform_3, window_bounds = array<i64: 16, 1>}, {transform_indices = @transform_4, window_bounds = array<i64: 16, 128>}]} {
    %c0 = arith.constant 0 : index
    %c0_0 = arith.constant 0 : index
    %0 = vector.load %arg1[%c0, %c0_0] : memref<16x200xf32, #tpu.memory_space<vmem>>, vector<16x200xf32>
    %c0_1 = arith.constant 0 : index
    %c0_2 = arith.constant 0 : index
    %1 = vector.load %arg2[%c0_1, %c0_2] : memref<200x128xf32, #tpu.memory_space<vmem>>, vector<200x128xf32>
    %cst = arith.constant dense<0.000000e+00> : vector<16x128xf32>
    %2 = tpu.matmul %0, %1, %cst {dimension_numbers = #tpu.dot_dimension_numbers<[1], [0], [0], [1], [0, 0, 1, 1], [], []>} : vector<16x200xf32>, vector<200x128xf32>, vector<16x128xf32> -> vector<16x128xf32>
    %c0_3 = arith.constant 0 : index
    %c0_4 = arith.constant 0 : index
    %3 = vector.load %arg3[%c0_3, %c0_4] : memref<16x1xf32, #tpu.memory_space<vmem>>, vector<16x1xf32>
    %4 = vector.broadcast %3 : vector<16x1xf32> to vector<16x128xf32>
    %5 = arith.mulf %2, %4 : vector<16x128xf32>
    %c0_5 = arith.constant 0 : index
    %c0_6 = arith.constant 0 : index
    %6 = vector.load %arg4[%c0_5, %c0_6] : memref<16x1xf32, #tpu.memory_space<vmem>>, vector<16x1xf32>
    %7 = vector.broadcast %6 : vector<16x1xf32> to vector<16x128xf32>
    %8 = arith.addf %5, %7 : vector<16x128xf32>
    %cst_7 = arith.constant 0.000000e+00 : f32
    %9 = vector.broadcast %cst_7 : f32 to vector<16x128xf32>
    %10 = arith.maximumf %8, %9 : vector<16x128xf32>
    %c0_8 = arith.constant 0 : index
    %c0_9 = arith.constant 0 : index
    %11 = vector.load %arg5[%c0_8, %c0_9] : memref<16x128xf32, #tpu.memory_space<vmem>>, vector<16x128xf32>
    tpu.vector_store %arg5[%c0_8, %c0_9], %10 {strides = array<i32>} : memref<16x128xf32, #tpu.memory_space<vmem>>, vector<16x128xf32>,
    return
  }
  func.func @transform_0(%arg0: i32) -> (i32, i32) {
    %c0_i32 = arith.constant 0 : i32
    %c0_i32_0 = arith.constant 0 : i32
    %c0_i32_1 = arith.constant 0 : i32
    return %c0_i32, %c0_i32_0 : i32, i32
  }
  func.func @transform_1(%arg0: i32) -> (i32, i32) {
    %c0_i32 = arith.constant 0 : i32
    %c0_i32_0 = arith.constant 0 : i32
    return %c0_i32, %arg0 : i32, i32
  }
  func.func @transform_2(%arg0: i32) -> (i32, i32) {
    %c0_i32 = arith.constant 0 : i32
    %c0_i32_0 = arith.constant 0 : i32
    %c0_i32_1 = arith.constant 0 : i32
    return %c0_i32, %c0_i32_0 : i32, i32
  }
  func.func @transform_3(%arg0: i32) -> (i32, i32) {
    %c0_i32 = arith.constant 0 : i32
    %c0_i32_0 = arith.constant 0 : i32
    %c0_i32_1 = arith.constant 0 : i32
    return %c0_i32, %c0_i32_0 : i32, i32
  }
  func.func @transform_4(%arg0: i32) -> (i32, i32) {
    %c0_i32 = arith.constant 0 : i32
    %c0_i32_0 = arith.constant 0 : i32
    return %c0_i32, %arg0 : i32, i32
  }
}

module attributes {stable_mosaic.version = 11 : i64} {
  func.func @_fused_head_kernel(%arg0: i32, %arg1: memref<1x128x8xf32, #tpu.memory_space<vmem>>, %arg2: memref<16x128xf32, #tpu.memory_space<vmem>>, %arg3: memref<16x1xf32, #tpu.memory_space<vmem>>, %arg4: memref<3x16x5xf32, #tpu.memory_space<vmem>>, %arg5: memref<3x16x1xf32, #tpu.memory_space<vmem>>, %arg6: memref<3x16x1xf32, #tpu.memory_space<vmem>>, %arg7: memref<3x32x16xf32, #tpu.memory_space<vmem>>, %arg8: memref<3x32x1xf32, #tpu.memory_space<vmem>>, %arg9: memref<3x32x1xf32, #tpu.memory_space<vmem>>, %arg10: memref<3x16x32xf32, #tpu.memory_space<vmem>>, %arg11: memref<3x16x1xf32, #tpu.memory_space<vmem>>, %arg12: memref<3x16x1xf32, #tpu.memory_space<vmem>>, %arg13: memref<10x16x8xf32, #tpu.memory_space<vmem>>, %arg14: memref<10x1xf32, #tpu.memory_space<vmem>>, %arg15: memref<1x10x1xf32, #tpu.memory_space<vmem>>, %arg16: memref<16x12xf32, #tpu.memory_space<vmem>>) attributes {dimension_semantics = [#tpu.dimension_semantics<parallel>], iteration_bounds = array<i64: 2>, scalar_prefetch = 0 : i64, scratch_operands = 1 : i64, tpu.core_type = #tpu.core_type<tc>, window_params = [{transform_indices = @transform_0, window_bounds = array<i64: 1, 128, 8>}, {pipeline_mode = #tpu.pipeline_mode<synchronous>, transform_indices = @transform_1, window_bounds = array<i64: 16, 128>}, {pipeline_mode = #tpu.pipeline_mode<synchronous>, transform_indices = @transform_2, window_bounds = array<i64: 16, 1>}, {pipeline_mode = #tpu.pipeline_mode<synchronous>, transform_indices = @transform_3, window_bounds = array<i64: 3, 16, 5>}, {pipeline_mode = #tpu.pipeline_mode<synchronous>, transform_indices = @transform_4, window_bounds = array<i64: 3, 16, 1>}, {pipeline_mode = #tpu.pipeline_mode<synchronous>, transform_indices = @transform_5, window_bounds = array<i64: 3, 16, 1>}, {pipeline_mode = #tpu.pipeline_mode<synchronous>, transform_indices = @transform_6, window_bounds = array<i64: 3, 32, 16>}, {pipeline_mode = #tpu.pipeline_mode<synchronous>, transform_indices = @transform_7, window_bounds = array<i64: 3, 32, 1>}, {pipeline_mode = #tpu.pipeline_mode<synchronous>, transform_indices = @transform_8, window_bounds = array<i64: 3, 32, 1>}, {pipeline_mode = #tpu.pipeline_mode<synchronous>, transform_indices = @transform_9, window_bounds = array<i64: 3, 16, 32>}, {pipeline_mode = #tpu.pipeline_mode<synchronous>, transform_indices = @transform_10, window_bounds = array<i64: 3, 16, 1>}, {pipeline_mode = #tpu.pipeline_mode<synchronous>, transform_indices = @transform_11, window_bounds = array<i64: 3, 16, 1>}, {pipeline_mode = #tpu.pipeline_mode<synchronous>, transform_indices = @transform_12, window_bounds = array<i64: 10, 16, 8>}, {pipeline_mode = #tpu.pipeline_mode<synchronous>, transform_indices = @transform_13, window_bounds = array<i64: 10, 1>}, {transform_indices = @transform_14, window_bounds = array<i64: 1, 10, 1>}]} {
    %c0 = arith.constant 0 : index
    %c0_0 = arith.constant 0 : index
    %c0_1 = arith.constant 0 : index
    %0 = vector.load %arg1[%c0, %c0_0, %c0_1] : memref<1x128x8xf32, #tpu.memory_space<vmem>>, vector<1x128x8xf32>
    %1 = vector.shape_cast %0 : vector<1x128x8xf32> to vector<128x8xf32>
    %c0_2 = arith.constant 0 : index
    %c0_3 = arith.constant 0 : index
    %2 = vector.load %arg2[%c0_2, %c0_3] : memref<16x128xf32, #tpu.memory_space<vmem>>, vector<16x128xf32>
    %cst = arith.constant dense<0.000000e+00> : vector<16x8xf32>
    %3 = tpu.matmul %2, %1, %cst {dimension_numbers = #tpu.dot_dimension_numbers<[1], [0], [0], [1], [0, 0, 1, 1], [], []>} : vector<16x128xf32>, vector<128x8xf32>, vector<16x8xf32> -> vector<16x8xf32>
    %c0_4 = arith.constant 0 : index
    %c0_5 = arith.constant 0 : index
    %4 = vector.load %arg3[%c0_4, %c0_5] : memref<16x1xf32, #tpu.memory_space<vmem>>, vector<16x1xf32>
    %5 = vector.broadcast %4 : vector<16x1xf32> to vector<16x8xf32>
    %6 = arith.addf %3, %5 : vector<16x8xf32>
    %cst_6 = arith.constant 0.000000e+00 : f32
    %7 = vector.broadcast %cst_6 : f32 to vector<16x8xf32>
    %8 = arith.maximumf %6, %7 : vector<16x8xf32>
    %cst_7 = arith.constant 0.000000e+00 : f32
    %9 = vector.broadcast %cst_7 : f32 to vector<16x2xf32>
    %c0_8 = arith.constant 0 : index
    %c0_9 = arith.constant 0 : index
    %10 = vector.load %arg16[%c0_8, %c0_9] : memref<16x12xf32, #tpu.memory_space<vmem>>, vector<16x2xf32>
    tpu.vector_store %arg16[%c0_8, %c0_9], %9 {strides = array<i32>} : memref<16x12xf32, #tpu.memory_space<vmem>>, vector<16x2xf32>,
    %cst_10 = arith.constant 0.000000e+00 : f32
    %11 = vector.broadcast %cst_10 : f32 to vector<16x2xf32>
    %c0_11 = arith.constant 0 : index
    %c10 = arith.constant 10 : index
    %12 = vector.load %arg16[%c0_11, %c10] : memref<16x12xf32, #tpu.memory_space<vmem>>, vector<16x2xf32>
    tpu.vector_store %arg16[%c0_11, %c10], %11 {strides = array<i32>} : memref<16x12xf32, #tpu.memory_space<vmem>>, vector<16x2xf32>,
    %c0_12 = arith.constant 0 : index
    %c2 = arith.constant 2 : index
    %13 = vector.load %arg16[%c0_12, %c2] : memref<16x12xf32, #tpu.memory_space<vmem>>, vector<16x8xf32>
    tpu.vector_store %arg16[%c0_12, %c2], %8 {strides = array<i32>} : memref<16x12xf32, #tpu.memory_space<vmem>>, vector<16x8xf32>,
    %c0_13 = arith.constant 0 : index
    %c0_14 = arith.constant 0 : index
    %c0_15 = arith.constant 0 : index
    %14 = vector.load %arg4[%c0_13, %c0_14, %c0_15] : memref<3x16x5xf32, #tpu.memory_space<vmem>>, vector<1x16x5xf32>
    %15 = vector.shape_cast %14 : vector<1x16x5xf32> to vector<16x5xf32>
    %16 = vector.extract_strided_slice %15 {offsets = [0, 0], sizes = [16, 1], strides = [1, 1]} : vector<16x5xf32> to vector<16x1xf32>
    %c0_16 = arith.constant 0 : index
    %c0_17 = arith.constant 0 : index
    %17 = vector.load %arg16[%c0_16, %c0_17] : memref<16x12xf32, #tpu.memory_space<vmem>>, vector<16x8xf32>
    %18 = vector.broadcast %16 : vector<16x1xf32> to vector<16x8xf32>
    %19 = arith.mulf %18, %17 : vector<16x8xf32>
    %20 = vector.extract_strided_slice %15 {offsets = [0, 1], sizes = [16, 1], strides = [1, 1]} : vector<16x5xf32> to vector<16x1xf32>
    %c0_18 = arith.constant 0 : index
    %c1 = arith.constant 1 : index
    %21 = vector.load %arg16[%c0_18, %c1] : memref<16x12xf32, #tpu.memory_space<vmem>>, vector<16x8xf32>
    %22 = vector.broadcast %20 : vector<16x1xf32> to vector<16x8xf32>
    %23 = arith.mulf %22, %21 : vector<16x8xf32>
    %24 = arith.addf %19, %23 : vector<16x8xf32>
    %25 = vector.extract_strided_slice %15 {offsets = [0, 2], sizes = [16, 1], strides = [1, 1]} : vector<16x5xf32> to vector<16x1xf32>
    %c0_19 = arith.constant 0 : index
    %c2_20 = arith.constant 2 : index
    %26 = vector.load %arg16[%c0_19, %c2_20] : memref<16x12xf32, #tpu.memory_space<vmem>>, vector<16x8xf32>
    %27 = vector.broadcast %25 : vector<16x1xf32> to vector<16x8xf32>
    %28 = arith.mulf %27, %26 : vector<16x8xf32>
    %29 = arith.addf %24, %28 : vector<16x8xf32>
    %30 = vector.extract_strided_slice %15 {offsets = [0, 3], sizes = [16, 1], strides = [1, 1]} : vector<16x5xf32> to vector<16x1xf32>
    %c0_21 = arith.constant 0 : index
    %c3 = arith.constant 3 : index
    %31 = vector.load %arg16[%c0_21, %c3] : memref<16x12xf32, #tpu.memory_space<vmem>>, vector<16x8xf32>
    %32 = vector.broadcast %30 : vector<16x1xf32> to vector<16x8xf32>
    %33 = arith.mulf %32, %31 : vector<16x8xf32>
    %34 = arith.addf %29, %33 : vector<16x8xf32>
    %35 = vector.extract_strided_slice %15 {offsets = [0, 4], sizes = [16, 1], strides = [1, 1]} : vector<16x5xf32> to vector<16x1xf32>
    %c0_22 = arith.constant 0 : index
    %c4 = arith.constant 4 : index
    %36 = vector.load %arg16[%c0_22, %c4] : memref<16x12xf32, #tpu.memory_space<vmem>>, vector<16x8xf32>
    %37 = vector.broadcast %35 : vector<16x1xf32> to vector<16x8xf32>
    %38 = arith.mulf %37, %36 : vector<16x8xf32>
    %39 = arith.addf %34, %38 : vector<16x8xf32>
    %c0_23 = arith.constant 0 : index
    %c0_24 = arith.constant 0 : index
    %c0_25 = arith.constant 0 : index
    %40 = vector.load %arg5[%c0_23, %c0_24, %c0_25] : memref<3x16x1xf32, #tpu.memory_space<vmem>>, vector<1x16x1xf32>
    %41 = vector.shape_cast %40 : vector<1x16x1xf32> to vector<16x1xf32>
    %42 = vector.broadcast %41 : vector<16x1xf32> to vector<16x8xf32>
    %43 = arith.mulf %39, %42 : vector<16x8xf32>
    %c0_26 = arith.constant 0 : index
    %c0_27 = arith.constant 0 : index
    %c0_28 = arith.constant 0 : index
    %44 = vector.load %arg6[%c0_26, %c0_27, %c0_28] : memref<3x16x1xf32, #tpu.memory_space<vmem>>, vector<1x16x1xf32>
    %45 = vector.shape_cast %44 : vector<1x16x1xf32> to vector<16x1xf32>
    %46 = vector.broadcast %45 : vector<16x1xf32> to vector<16x8xf32>
    %47 = arith.addf %43, %46 : vector<16x8xf32>
    %cst_29 = arith.constant 0.000000e+00 : f32
    %48 = vector.broadcast %cst_29 : f32 to vector<16x8xf32>
    %49 = arith.maximumf %47, %48 : vector<16x8xf32>
    %50 = arith.addf %49, %8 : vector<16x8xf32>
    %c0_30 = arith.constant 0 : index
    %c0_31 = arith.constant 0 : index
    %c0_32 = arith.constant 0 : index
    %51 = vector.load %arg7[%c0_30, %c0_31, %c0_32] : memref<3x32x16xf32, #tpu.memory_space<vmem>>, vector<1x32x16xf32>
    %52 = vector.shape_cast %51 : vector<1x32x16xf32> to vector<32x16xf32>
    %cst_33 = arith.constant dense<0.000000e+00> : vector<32x8xf32>
    %53 = tpu.matmul %52, %50, %cst_33 {dimension_numbers = #tpu.dot_dimension_numbers<[1], [0], [0], [1], [0, 0, 1, 1], [], []>} : vector<32x16xf32>, vector<16x8xf32>, vector<32x8xf32> -> vector<32x8xf32>
    %c0_34 = arith.constant 0 : index
    %c0_35 = arith.constant 0 : index
    %c0_36 = arith.constant 0 : index
    %54 = vector.load %arg8[%c0_34, %c0_35, %c0_36] : memref<3x32x1xf32, #tpu.memory_space<vmem>>, vector<1x32x1xf32>
    %55 = vector.shape_cast %54 : vector<1x32x1xf32> to vector<32x1xf32>
    %56 = vector.broadcast %55 : vector<32x1xf32> to vector<32x8xf32>
    %57 = arith.mulf %53, %56 : vector<32x8xf32>
    %c0_37 = arith.constant 0 : index
    %c0_38 = arith.constant 0 : index
    %c0_39 = arith.constant 0 : index
    %58 = vector.load %arg9[%c0_37, %c0_38, %c0_39] : memref<3x32x1xf32, #tpu.memory_space<vmem>>, vector<1x32x1xf32>
    %59 = vector.shape_cast %58 : vector<1x32x1xf32> to vector<32x1xf32>
    %60 = vector.broadcast %59 : vector<32x1xf32> to vector<32x8xf32>
    %61 = arith.addf %57, %60 : vector<32x8xf32>
    %cst_40 = arith.constant 0.000000e+00 : f32
    %62 = vector.broadcast %cst_40 : f32 to vector<32x8xf32>
    %63 = arith.maximumf %61, %62 : vector<32x8xf32>
    %c0_41 = arith.constant 0 : index
    %c0_42 = arith.constant 0 : index
    %c0_43 = arith.constant 0 : index
    %64 = vector.load %arg10[%c0_41, %c0_42, %c0_43] : memref<3x16x32xf32, #tpu.memory_space<vmem>>, vector<1x16x32xf32>
    %65 = vector.shape_cast %64 : vector<1x16x32xf32> to vector<16x32xf32>
    %cst_44 = arith.constant dense<0.000000e+00> : vector<16x8xf32>
    %66 = tpu.matmul %65, %63, %cst_44 {dimension_numbers = #tpu.dot_dimension_numbers<[1], [0], [0], [1], [0, 0, 1, 1], [], []>} : vector<16x32xf32>, vector<32x8xf32>, vector<16x8xf32> -> vector<16x8xf32>
    %c0_45 = arith.constant 0 : index
    %c0_46 = arith.constant 0 : index
    %c0_47 = arith.constant 0 : index
    %67 = vector.load %arg11[%c0_45, %c0_46, %c0_47] : memref<3x16x1xf32, #tpu.memory_space<vmem>>, vector<1x16x1xf32>
    %68 = vector.shape_cast %67 : vector<1x16x1xf32> to vector<16x1xf32>
    %69 = vector.broadcast %68 : vector<16x1xf32> to vector<16x8xf32>
    %70 = arith.mulf %66, %69 : vector<16x8xf32>
    %c0_48 = arith.constant 0 : index
    %c0_49 = arith.constant 0 : index
    %c0_50 = arith.constant 0 : index
    %71 = vector.load %arg12[%c0_48, %c0_49, %c0_50] : memref<3x16x1xf32, #tpu.memory_space<vmem>>, vector<1x16x1xf32>
    %72 = vector.shape_cast %71 : vector<1x16x1xf32> to vector<16x1xf32>
    %73 = vector.broadcast %72 : vector<16x1xf32> to vector<16x8xf32>
    %74 = arith.addf %70, %73 : vector<16x8xf32>
    %cst_51 = arith.constant 0.000000e+00 : f32
    %75 = vector.broadcast %cst_51 : f32 to vector<16x8xf32>
    %76 = arith.maximumf %74, %75 : vector<16x8xf32>
    %77 = arith.addf %76, %50 : vector<16x8xf32>
    %c0_52 = arith.constant 0 : index
    %c2_53 = arith.constant 2 : index
    %78 = vector.load %arg16[%c0_52, %c2_53] : memref<16x12xf32, #tpu.memory_space<vmem>>, vector<16x8xf32>
    tpu.vector_store %arg16[%c0_52, %c2_53], %77 {strides = array<i32>} : memref<16x12xf32, #tpu.memory_space<vmem>>, vector<16x8xf32>,
    %c1_54 = arith.constant 1 : index
    %c0_55 = arith.constant 0 : index
    %c0_56 = arith.constant 0 : index
    %79 = vector.load %arg4[%c1_54, %c0_55, %c0_56] : memref<3x16x5xf32, #tpu.memory_space<vmem>>, vector<1x16x5xf32>
    %80 = vector.shape_cast %79 : vector<1x16x5xf32> to vector<16x5xf32>
    %81 = vector.extract_strided_slice %80 {offsets = [0, 0], sizes = [16, 1], strides = [1, 1]} : vector<16x5xf32> to vector<16x1xf32>
    %c0_57 = arith.constant 0 : index
    %c0_58 = arith.constant 0 : index
    %82 = vector.load %arg16[%c0_57, %c0_58] : memref<16x12xf32, #tpu.memory_space<vmem>>, vector<16x8xf32>
    %83 = vector.broadcast %81 : vector<16x1xf32> to vector<16x8xf32>
    %84 = arith.mulf %83, %82 : vector<16x8xf32>
    %85 = vector.extract_strided_slice %80 {offsets = [0, 1], sizes = [16, 1], strides = [1, 1]} : vector<16x5xf32> to vector<16x1xf32>
    %c0_59 = arith.constant 0 : index
    %c1_60 = arith.constant 1 : index
    %86 = vector.load %arg16[%c0_59, %c1_60] : memref<16x12xf32, #tpu.memory_space<vmem>>, vector<16x8xf32>
    %87 = vector.broadcast %85 : vector<16x1xf32> to vector<16x8xf32>
    %88 = arith.mulf %87, %86 : vector<16x8xf32>
    %89 = arith.addf %84, %88 : vector<16x8xf32>
    %90 = vector.extract_strided_slice %80 {offsets = [0, 2], sizes = [16, 1], strides = [1, 1]} : vector<16x5xf32> to vector<16x1xf32>
    %c0_61 = arith.constant 0 : index
    %c2_62 = arith.constant 2 : index
    %91 = vector.load %arg16[%c0_61, %c2_62] : memref<16x12xf32, #tpu.memory_space<vmem>>, vector<16x8xf32>
    %92 = vector.broadcast %90 : vector<16x1xf32> to vector<16x8xf32>
    %93 = arith.mulf %92, %91 : vector<16x8xf32>
    %94 = arith.addf %89, %93 : vector<16x8xf32>
    %95 = vector.extract_strided_slice %80 {offsets = [0, 3], sizes = [16, 1], strides = [1, 1]} : vector<16x5xf32> to vector<16x1xf32>
    %c0_63 = arith.constant 0 : index
    %c3_64 = arith.constant 3 : index
    %96 = vector.load %arg16[%c0_63, %c3_64] : memref<16x12xf32, #tpu.memory_space<vmem>>, vector<16x8xf32>
    %97 = vector.broadcast %95 : vector<16x1xf32> to vector<16x8xf32>
    %98 = arith.mulf %97, %96 : vector<16x8xf32>
    %99 = arith.addf %94, %98 : vector<16x8xf32>
    %100 = vector.extract_strided_slice %80 {offsets = [0, 4], sizes = [16, 1], strides = [1, 1]} : vector<16x5xf32> to vector<16x1xf32>
    %c0_65 = arith.constant 0 : index
    %c4_66 = arith.constant 4 : index
    %101 = vector.load %arg16[%c0_65, %c4_66] : memref<16x12xf32, #tpu.memory_space<vmem>>, vector<16x8xf32>
    %102 = vector.broadcast %100 : vector<16x1xf32> to vector<16x8xf32>
    %103 = arith.mulf %102, %101 : vector<16x8xf32>
    %104 = arith.addf %99, %103 : vector<16x8xf32>
    %c1_67 = arith.constant 1 : index
    %c0_68 = arith.constant 0 : index
    %c0_69 = arith.constant 0 : index
    %105 = vector.load %arg5[%c1_67, %c0_68, %c0_69] : memref<3x16x1xf32, #tpu.memory_space<vmem>>, vector<1x16x1xf32>
    %106 = vector.shape_cast %105 : vector<1x16x1xf32> to vector<16x1xf32>
    %107 = vector.broadcast %106 : vector<16x1xf32> to vector<16x8xf32>
    %108 = arith.mulf %104, %107 : vector<16x8xf32>
    %c1_70 = arith.constant 1 : index
    %c0_71 = arith.constant 0 : index
    %c0_72 = arith.constant 0 : index
    %109 = vector.load %arg6[%c1_70, %c0_71, %c0_72] : memref<3x16x1xf32, #tpu.memory_space<vmem>>, vector<1x16x1xf32>
    %110 = vector.shape_cast %109 : vector<1x16x1xf32> to vector<16x1xf32>
    %111 = vector.broadcast %110 : vector<16x1xf32> to vector<16x8xf32>
    %112 = arith.addf %108, %111 : vector<16x8xf32>
    %cst_73 = arith.constant 0.000000e+00 : f32
    %113 = vector.broadcast %cst_73 : f32 to vector<16x8xf32>
    %114 = arith.maximumf %112, %113 : vector<16x8xf32>
    %115 = arith.addf %114, %77 : vector<16x8xf32>
    %c1_74 = arith.constant 1 : index
    %c0_75 = arith.constant 0 : index
    %c0_76 = arith.constant 0 : index
    %116 = vector.load %arg7[%c1_74, %c0_75, %c0_76] : memref<3x32x16xf32, #tpu.memory_space<vmem>>, vector<1x32x16xf32>
    %117 = vector.shape_cast %116 : vector<1x32x16xf32> to vector<32x16xf32>
    %cst_77 = arith.constant dense<0.000000e+00> : vector<32x8xf32>
    %118 = tpu.matmul %117, %115, %cst_77 {dimension_numbers = #tpu.dot_dimension_numbers<[1], [0], [0], [1], [0, 0, 1, 1], [], []>} : vector<32x16xf32>, vector<16x8xf32>, vector<32x8xf32> -> vector<32x8xf32>
    %c1_78 = arith.constant 1 : index
    %c0_79 = arith.constant 0 : index
    %c0_80 = arith.constant 0 : index
    %119 = vector.load %arg8[%c1_78, %c0_79, %c0_80] : memref<3x32x1xf32, #tpu.memory_space<vmem>>, vector<1x32x1xf32>
    %120 = vector.shape_cast %119 : vector<1x32x1xf32> to vector<32x1xf32>
    %121 = vector.broadcast %120 : vector<32x1xf32> to vector<32x8xf32>
    %122 = arith.mulf %118, %121 : vector<32x8xf32>
    %c1_81 = arith.constant 1 : index
    %c0_82 = arith.constant 0 : index
    %c0_83 = arith.constant 0 : index
    %123 = vector.load %arg9[%c1_81, %c0_82, %c0_83] : memref<3x32x1xf32, #tpu.memory_space<vmem>>, vector<1x32x1xf32>
    %124 = vector.shape_cast %123 : vector<1x32x1xf32> to vector<32x1xf32>
    %125 = vector.broadcast %124 : vector<32x1xf32> to vector<32x8xf32>
    %126 = arith.addf %122, %125 : vector<32x8xf32>
    %cst_84 = arith.constant 0.000000e+00 : f32
    %127 = vector.broadcast %cst_84 : f32 to vector<32x8xf32>
    %128 = arith.maximumf %126, %127 : vector<32x8xf32>
    %c1_85 = arith.constant 1 : index
    %c0_86 = arith.constant 0 : index
    %c0_87 = arith.constant 0 : index
    %129 = vector.load %arg10[%c1_85, %c0_86, %c0_87] : memref<3x16x32xf32, #tpu.memory_space<vmem>>, vector<1x16x32xf32>
    %130 = vector.shape_cast %129 : vector<1x16x32xf32> to vector<16x32xf32>
    %cst_88 = arith.constant dense<0.000000e+00> : vector<16x8xf32>
    %131 = tpu.matmul %130, %128, %cst_88 {dimension_numbers = #tpu.dot_dimension_numbers<[1], [0], [0], [1], [0, 0, 1, 1], [], []>} : vector<16x32xf32>, vector<32x8xf32>, vector<16x8xf32> -> vector<16x8xf32>
    %c1_89 = arith.constant 1 : index
    %c0_90 = arith.constant 0 : index
    %c0_91 = arith.constant 0 : index
    %132 = vector.load %arg11[%c1_89, %c0_90, %c0_91] : memref<3x16x1xf32, #tpu.memory_space<vmem>>, vector<1x16x1xf32>
    %133 = vector.shape_cast %132 : vector<1x16x1xf32> to vector<16x1xf32>
    %134 = vector.broadcast %133 : vector<16x1xf32> to vector<16x8xf32>
    %135 = arith.mulf %131, %134 : vector<16x8xf32>
    %c1_92 = arith.constant 1 : index
    %c0_93 = arith.constant 0 : index
    %c0_94 = arith.constant 0 : index
    %136 = vector.load %arg12[%c1_92, %c0_93, %c0_94] : memref<3x16x1xf32, #tpu.memory_space<vmem>>, vector<1x16x1xf32>
    %137 = vector.shape_cast %136 : vector<1x16x1xf32> to vector<16x1xf32>
    %138 = vector.broadcast %137 : vector<16x1xf32> to vector<16x8xf32>
    %139 = arith.addf %135, %138 : vector<16x8xf32>
    %cst_95 = arith.constant 0.000000e+00 : f32
    %140 = vector.broadcast %cst_95 : f32 to vector<16x8xf32>
    %141 = arith.maximumf %139, %140 : vector<16x8xf32>
    %142 = arith.addf %141, %115 : vector<16x8xf32>
    %c0_96 = arith.constant 0 : index
    %c2_97 = arith.constant 2 : index
    %143 = vector.load %arg16[%c0_96, %c2_97] : memref<16x12xf32, #tpu.memory_space<vmem>>, vector<16x8xf32>
    tpu.vector_store %arg16[%c0_96, %c2_97], %142 {strides = array<i32>} : memref<16x12xf32, #tpu.memory_space<vmem>>, vector<16x8xf32>,
    %c2_98 = arith.constant 2 : index
    %c0_99 = arith.constant 0 : index
    %c0_100 = arith.constant 0 : index
    %144 = vector.load %arg4[%c2_98, %c0_99, %c0_100] : memref<3x16x5xf32, #tpu.memory_space<vmem>>, vector<1x16x5xf32>
    %145 = vector.shape_cast %144 : vector<1x16x5xf32> to vector<16x5xf32>
    %146 = vector.extract_strided_slice %145 {offsets = [0, 0], sizes = [16, 1], strides = [1, 1]} : vector<16x5xf32> to vector<16x1xf32>
    %c0_101 = arith.constant 0 : index
    %c0_102 = arith.constant 0 : index
    %147 = vector.load %arg16[%c0_101, %c0_102] : memref<16x12xf32, #tpu.memory_space<vmem>>, vector<16x8xf32>
    %148 = vector.broadcast %146 : vector<16x1xf32> to vector<16x8xf32>
    %149 = arith.mulf %148, %147 : vector<16x8xf32>
    %150 = vector.extract_strided_slice %145 {offsets = [0, 1], sizes = [16, 1], strides = [1, 1]} : vector<16x5xf32> to vector<16x1xf32>
    %c0_103 = arith.constant 0 : index
    %c1_104 = arith.constant 1 : index
    %151 = vector.load %arg16[%c0_103, %c1_104] : memref<16x12xf32, #tpu.memory_space<vmem>>, vector<16x8xf32>
    %152 = vector.broadcast %150 : vector<16x1xf32> to vector<16x8xf32>
    %153 = arith.mulf %152, %151 : vector<16x8xf32>
    %154 = arith.addf %149, %153 : vector<16x8xf32>
    %155 = vector.extract_strided_slice %145 {offsets = [0, 2], sizes = [16, 1], strides = [1, 1]} : vector<16x5xf32> to vector<16x1xf32>
    %c0_105 = arith.constant 0 : index
    %c2_106 = arith.constant 2 : index
    %156 = vector.load %arg16[%c0_105, %c2_106] : memref<16x12xf32, #tpu.memory_space<vmem>>, vector<16x8xf32>
    %157 = vector.broadcast %155 : vector<16x1xf32> to vector<16x8xf32>
    %158 = arith.mulf %157, %156 : vector<16x8xf32>
    %159 = arith.addf %154, %158 : vector<16x8xf32>
    %160 = vector.extract_strided_slice %145 {offsets = [0, 3], sizes = [16, 1], strides = [1, 1]} : vector<16x5xf32> to vector<16x1xf32>
    %c0_107 = arith.constant 0 : index
    %c3_108 = arith.constant 3 : index
    %161 = vector.load %arg16[%c0_107, %c3_108] : memref<16x12xf32, #tpu.memory_space<vmem>>, vector<16x8xf32>
    %162 = vector.broadcast %160 : vector<16x1xf32> to vector<16x8xf32>
    %163 = arith.mulf %162, %161 : vector<16x8xf32>
    %164 = arith.addf %159, %163 : vector<16x8xf32>
    %165 = vector.extract_strided_slice %145 {offsets = [0, 4], sizes = [16, 1], strides = [1, 1]} : vector<16x5xf32> to vector<16x1xf32>
    %c0_109 = arith.constant 0 : index
    %c4_110 = arith.constant 4 : index
    %166 = vector.load %arg16[%c0_109, %c4_110] : memref<16x12xf32, #tpu.memory_space<vmem>>, vector<16x8xf32>
    %167 = vector.broadcast %165 : vector<16x1xf32> to vector<16x8xf32>
    %168 = arith.mulf %167, %166 : vector<16x8xf32>
    %169 = arith.addf %164, %168 : vector<16x8xf32>
    %c2_111 = arith.constant 2 : index
    %c0_112 = arith.constant 0 : index
    %c0_113 = arith.constant 0 : index
    %170 = vector.load %arg5[%c2_111, %c0_112, %c0_113] : memref<3x16x1xf32, #tpu.memory_space<vmem>>, vector<1x16x1xf32>
    %171 = vector.shape_cast %170 : vector<1x16x1xf32> to vector<16x1xf32>
    %172 = vector.broadcast %171 : vector<16x1xf32> to vector<16x8xf32>
    %173 = arith.mulf %169, %172 : vector<16x8xf32>
    %c2_114 = arith.constant 2 : index
    %c0_115 = arith.constant 0 : index
    %c0_116 = arith.constant 0 : index
    %174 = vector.load %arg6[%c2_114, %c0_115, %c0_116] : memref<3x16x1xf32, #tpu.memory_space<vmem>>, vector<1x16x1xf32>
    %175 = vector.shape_cast %174 : vector<1x16x1xf32> to vector<16x1xf32>
    %176 = vector.broadcast %175 : vector<16x1xf32> to vector<16x8xf32>
    %177 = arith.addf %173, %176 : vector<16x8xf32>
    %cst_117 = arith.constant 0.000000e+00 : f32
    %178 = vector.broadcast %cst_117 : f32 to vector<16x8xf32>
    %179 = arith.maximumf %177, %178 : vector<16x8xf32>
    %180 = arith.addf %179, %142 : vector<16x8xf32>
    %c2_118 = arith.constant 2 : index
    %c0_119 = arith.constant 0 : index
    %c0_120 = arith.constant 0 : index
    %181 = vector.load %arg7[%c2_118, %c0_119, %c0_120] : memref<3x32x16xf32, #tpu.memory_space<vmem>>, vector<1x32x16xf32>
    %182 = vector.shape_cast %181 : vector<1x32x16xf32> to vector<32x16xf32>
    %cst_121 = arith.constant dense<0.000000e+00> : vector<32x8xf32>
    %183 = tpu.matmul %182, %180, %cst_121 {dimension_numbers = #tpu.dot_dimension_numbers<[1], [0], [0], [1], [0, 0, 1, 1], [], []>} : vector<32x16xf32>, vector<16x8xf32>, vector<32x8xf32> -> vector<32x8xf32>
    %c2_122 = arith.constant 2 : index
    %c0_123 = arith.constant 0 : index
    %c0_124 = arith.constant 0 : index
    %184 = vector.load %arg8[%c2_122, %c0_123, %c0_124] : memref<3x32x1xf32, #tpu.memory_space<vmem>>, vector<1x32x1xf32>
    %185 = vector.shape_cast %184 : vector<1x32x1xf32> to vector<32x1xf32>
    %186 = vector.broadcast %185 : vector<32x1xf32> to vector<32x8xf32>
    %187 = arith.mulf %183, %186 : vector<32x8xf32>
    %c2_125 = arith.constant 2 : index
    %c0_126 = arith.constant 0 : index
    %c0_127 = arith.constant 0 : index
    %188 = vector.load %arg9[%c2_125, %c0_126, %c0_127] : memref<3x32x1xf32, #tpu.memory_space<vmem>>, vector<1x32x1xf32>
    %189 = vector.shape_cast %188 : vector<1x32x1xf32> to vector<32x1xf32>
    %190 = vector.broadcast %189 : vector<32x1xf32> to vector<32x8xf32>
    %191 = arith.addf %187, %190 : vector<32x8xf32>
    %cst_128 = arith.constant 0.000000e+00 : f32
    %192 = vector.broadcast %cst_128 : f32 to vector<32x8xf32>
    %193 = arith.maximumf %191, %192 : vector<32x8xf32>
    %c2_129 = arith.constant 2 : index
    %c0_130 = arith.constant 0 : index
    %c0_131 = arith.constant 0 : index
    %194 = vector.load %arg10[%c2_129, %c0_130, %c0_131] : memref<3x16x32xf32, #tpu.memory_space<vmem>>, vector<1x16x32xf32>
    %195 = vector.shape_cast %194 : vector<1x16x32xf32> to vector<16x32xf32>
    %cst_132 = arith.constant dense<0.000000e+00> : vector<16x8xf32>
    %196 = tpu.matmul %195, %193, %cst_132 {dimension_numbers = #tpu.dot_dimension_numbers<[1], [0], [0], [1], [0, 0, 1, 1], [], []>} : vector<16x32xf32>, vector<32x8xf32>, vector<16x8xf32> -> vector<16x8xf32>
    %c2_133 = arith.constant 2 : index
    %c0_134 = arith.constant 0 : index
    %c0_135 = arith.constant 0 : index
    %197 = vector.load %arg11[%c2_133, %c0_134, %c0_135] : memref<3x16x1xf32, #tpu.memory_space<vmem>>, vector<1x16x1xf32>
    %198 = vector.shape_cast %197 : vector<1x16x1xf32> to vector<16x1xf32>
    %199 = vector.broadcast %198 : vector<16x1xf32> to vector<16x8xf32>
    %200 = arith.mulf %196, %199 : vector<16x8xf32>
    %c2_136 = arith.constant 2 : index
    %c0_137 = arith.constant 0 : index
    %c0_138 = arith.constant 0 : index
    %201 = vector.load %arg12[%c2_136, %c0_137, %c0_138] : memref<3x16x1xf32, #tpu.memory_space<vmem>>, vector<1x16x1xf32>
    %202 = vector.shape_cast %201 : vector<1x16x1xf32> to vector<16x1xf32>
    %203 = vector.broadcast %202 : vector<16x1xf32> to vector<16x8xf32>
    %204 = arith.addf %200, %203 : vector<16x8xf32>
    %cst_139 = arith.constant 0.000000e+00 : f32
    %205 = vector.broadcast %cst_139 : f32 to vector<16x8xf32>
    %206 = arith.maximumf %204, %205 : vector<16x8xf32>
    %207 = arith.addf %206, %180 : vector<16x8xf32>
    %c0_140 = arith.constant 0 : index
    %c0_141 = arith.constant 0 : index
    %c0_142 = arith.constant 0 : index
    %208 = vector.load %arg13[%c0_140, %c0_141, %c0_142] : memref<10x16x8xf32, #tpu.memory_space<vmem>>, vector<10x16x8xf32>
    %209 = vector.shape_cast %207 : vector<16x8xf32> to vector<1x16x8xf32>
    %210 = vector.broadcast %209 : vector<1x16x8xf32> to vector<10x16x8xf32>
    %211 = arith.mulf %208, %210 : vector<10x16x8xf32>
    %cst_143 = arith.constant dense<0.000000e+00> : vector<10x16xf32>
    %212 = vector.multi_reduction <add>, %211, %cst_143 [2] : vector<10x16x8xf32> to vector<10x16xf32>
    %cst_144 = arith.constant dense<0.000000e+00> : vector<10xf32>
    %213 = vector.multi_reduction <add>, %212, %cst_144 [1] : vector<10x16xf32> to vector<10xf32>
    %214 = vector.shape_cast %213 : vector<10xf32> to vector<10x1xf32>
    %c0_145 = arith.constant 0 : index
    %c0_146 = arith.constant 0 : index
    %215 = vector.load %arg14[%c0_145, %c0_146] : memref<10x1xf32, #tpu.memory_space<vmem>>, vector<10x1xf32>
    %216 = arith.addf %214, %215 : vector<10x1xf32>
    %c0_147 = arith.constant 0 : index
    %c0_148 = arith.constant 0 : index
    %c0_149 = arith.constant 0 : index
    %217 = vector.load %arg15[%c0_147, %c0_148, %c0_149] : memref<1x10x1xf32, #tpu.memory_space<vmem>>, vector<1x10x1xf32>
    %218 = vector.shape_cast %217 : vector<1x10x1xf32> to vector<10x1xf32>
    %219 = vector.shape_cast %216 : vector<10x1xf32> to vector<1x10x1xf32>
    tpu.vector_store %arg15[%c0_147, %c0_148, %c0_149], %219 {strides = array<i32>} : memref<1x10x1xf32, #tpu.memory_space<vmem>>, vector<1x10x1xf32>,
    return
  }
  func.func @transform_0(%arg0: i32) -> (i32, i32, i32) {
    %c0_i32 = arith.constant 0 : i32
    %c0_i32_0 = arith.constant 0 : i32
    %c0_i32_1 = arith.constant 0 : i32
    return %arg0, %c0_i32, %c0_i32_0 : i32, i32, i32
  }
  func.func @transform_1(%arg0: i32) -> (i32, i32) {
    %c0_i32 = arith.constant 0 : i32
    %c0_i32_0 = arith.constant 0 : i32
    %c0_i32_1 = arith.constant 0 : i32
    return %c0_i32, %c0_i32_0 : i32, i32
  }
  func.func @transform_2(%arg0: i32) -> (i32, i32) {
    %c0_i32 = arith.constant 0 : i32
    %c0_i32_0 = arith.constant 0 : i32
    %c0_i32_1 = arith.constant 0 : i32
    return %c0_i32, %c0_i32_0 : i32, i32
  }
  func.func @transform_3(%arg0: i32) -> (i32, i32, i32) {
    %c0_i32 = arith.constant 0 : i32
    %c0_i32_0 = arith.constant 0 : i32
    %c0_i32_1 = arith.constant 0 : i32
    %c0_i32_2 = arith.constant 0 : i32
    return %c0_i32, %c0_i32_0, %c0_i32_1 : i32, i32, i32
  }
  func.func @transform_4(%arg0: i32) -> (i32, i32, i32) {
    %c0_i32 = arith.constant 0 : i32
    %c0_i32_0 = arith.constant 0 : i32
    %c0_i32_1 = arith.constant 0 : i32
    %c0_i32_2 = arith.constant 0 : i32
    return %c0_i32, %c0_i32_0, %c0_i32_1 : i32, i32, i32
  }
  func.func @transform_5(%arg0: i32) -> (i32, i32, i32) {
    %c0_i32 = arith.constant 0 : i32
    %c0_i32_0 = arith.constant 0 : i32
    %c0_i32_1 = arith.constant 0 : i32
    %c0_i32_2 = arith.constant 0 : i32
    return %c0_i32, %c0_i32_0, %c0_i32_1 : i32, i32, i32
  }
  func.func @transform_6(%arg0: i32) -> (i32, i32, i32) {
    %c0_i32 = arith.constant 0 : i32
    %c0_i32_0 = arith.constant 0 : i32
    %c0_i32_1 = arith.constant 0 : i32
    %c0_i32_2 = arith.constant 0 : i32
    return %c0_i32, %c0_i32_0, %c0_i32_1 : i32, i32, i32
  }
  func.func @transform_7(%arg0: i32) -> (i32, i32, i32) {
    %c0_i32 = arith.constant 0 : i32
    %c0_i32_0 = arith.constant 0 : i32
    %c0_i32_1 = arith.constant 0 : i32
    %c0_i32_2 = arith.constant 0 : i32
    return %c0_i32, %c0_i32_0, %c0_i32_1 : i32, i32, i32
  }
  func.func @transform_8(%arg0: i32) -> (i32, i32, i32) {
    %c0_i32 = arith.constant 0 : i32
    %c0_i32_0 = arith.constant 0 : i32
    %c0_i32_1 = arith.constant 0 : i32
    %c0_i32_2 = arith.constant 0 : i32
    return %c0_i32, %c0_i32_0, %c0_i32_1 : i32, i32, i32
  }
  func.func @transform_9(%arg0: i32) -> (i32, i32, i32) {
    %c0_i32 = arith.constant 0 : i32
    %c0_i32_0 = arith.constant 0 : i32
    %c0_i32_1 = arith.constant 0 : i32
    %c0_i32_2 = arith.constant 0 : i32
    return %c0_i32, %c0_i32_0, %c0_i32_1 : i32, i32, i32
  }
  func.func @transform_10(%arg0: i32) -> (i32, i32, i32) {
    %c0_i32 = arith.constant 0 : i32
    %c0_i32_0 = arith.constant 0 : i32
    %c0_i32_1 = arith.constant 0 : i32
    %c0_i32_2 = arith.constant 0 : i32
    return %c0_i32, %c0_i32_0, %c0_i32_1 : i32, i32, i32
  }
  func.func @transform_11(%arg0: i32) -> (i32, i32, i32) {
    %c0_i32 = arith.constant 0 : i32
    %c0_i32_0 = arith.constant 0 : i32
    %c0_i32_1 = arith.constant 0 : i32
    %c0_i32_2 = arith.constant 0 : i32
    return %c0_i32, %c0_i32_0, %c0_i32_1 : i32, i32, i32
  }
  func.func @transform_12(%arg0: i32) -> (i32, i32, i32) {
    %c0_i32 = arith.constant 0 : i32
    %c0_i32_0 = arith.constant 0 : i32
    %c0_i32_1 = arith.constant 0 : i32
    %c0_i32_2 = arith.constant 0 : i32
    return %c0_i32, %c0_i32_0, %c0_i32_1 : i32, i32, i32
  }
  func.func @transform_13(%arg0: i32) -> (i32, i32) {
    %c0_i32 = arith.constant 0 : i32
    %c0_i32_0 = arith.constant 0 : i32
    %c0_i32_1 = arith.constant 0 : i32
    return %c0_i32, %c0_i32_0 : i32, i32
  }
  func.func @transform_14(%arg0: i32) -> (i32, i32, i32) {
    %c0_i32 = arith.constant 0 : i32
    %c0_i32_0 = arith.constant 0 : i32
    %c0_i32_1 = arith.constant 0 : i32
    return %arg0, %c0_i32, %c0_i32_0 : i32, i32, i32
  }
}

</mosaic_0001>

<llo_original>
// kernel: model_forward_pallas.3
$region0: #{model_forward_pallas.3}
  #allocation0 [shape = 'u32[]', space=smem, size = 0x4, offset = 0x4, fixed_abs, tag = 'smem constant byte address 0x4 - core index']
  #allocation1 [shape = 'u32[144,128]{1,0:T(1,128)}', space=vmem, size = 0x12000, scoped, tag = 'internal scratch']
  %s0 = inlined_call_operand.vmem [shape: f32[8,25], index: 0, kind: input, shape index: {}]
  %s1 = inlined_call_operand.vmem [shape: f32[25,512], index: 1, kind: input, shape index: {}]
  %s2 = inlined_call_operand.vmem [shape: f32[8,1], index: 2, kind: input, shape index: {}]
  %s3 = inlined_call_operand.vmem [shape: f32[8,1], index: 3, kind: input, shape index: {}]
  %s4 = inlined_call_operand.vmem [shape: f32[8,512], index: 4, kind: output, shape index: {}]
  %s5 = sld [smem:[#allocation0]]
  $region72: #{model_forward_pallas.3} parent=0
    _
  %s7 = ssub.s32 1, %s5
  %s8 = scalar_select 0, %s7, %s5
  $region1: #{model_forward_pallas.3} parent=0
    #allocation2 [shape = 'u8[65536]{0}', space=vmem, size = 0x10000, scoped, tag = 'input window, operand 1']
    loop: start=0, step=1, limit=4
    $region2: #{model_forward_pallas.3} parent=1 // loop_pre_header
      _
    $region3: #{model_forward_pallas.3} parent=1 // loop_header
      %s10 = sphi 0, %s14
      %p11 = scmp.ge.s32.totalorder %s10, 4
      %s18 = sphi 0, %s18
      %s20 = sphi 0, %s18
      %s21 = sphi 0, %s20
      %s35 = sphi 0, %s21
      %s41 = sphi 0, %s43
      %s44 = sphi 0, %s41
      %s45 = sphi 0, %s44
      %s61 = sphi 0, %s45
      %s65 = sphi 0, %s65
      %s67 = sphi 0, %s65
      %s68 = sphi 0, %s67
      %s82 = sphi 0, %s68
      %s86 = sphi 0, %s86
      %s88 = sphi 0, %s86
      %s89 = sphi 0, %s88
      %s103 = sphi 0, %s89
      %s109 = sphi 0, %s111
      %s112 = sphi 0, %s109
      %s113 = sphi 0, %s112
      %s129 = sphi 0, %s113
    $region4: #{model_forward_pallas.3} parent=1 // loop_header_branch
      %13 = sbr.rel (%p11) target = $region8
    $region5: #{model_forward_pallas.3} parent=1 // loop_body
      %s15 = ssub.s32 %s10, 1
      %s16 = ssub.s32 %s10, 2
      %s17 = sadd.s32 %s10, 1
      %s19 = sadd.s32 %s18, 1
      %p22 = scmp.eq.s32.totalorder %s10, 1
      %p23 = scmp.ne.s32.totalorder %s18, %s20
      %p24 = scmp.eq.s32.totalorder %s10, 0
      %p25 = por %p23, %p24
      %p26 = scmp.ne.s32.totalorder %s18, %s20
      %p27 = scmp.eq.s32.totalorder %s15, 1
      %p28 = por %p26, %p27
      %p29 = scmp.ne.s32.totalorder %s20, %s21
      %p30 = scmp.eq.s32.totalorder %s15, 0
      %p31 = por %p29, %p30
      %p32 = scmp.ne.s32.totalorder %s20, %s21
      %p33 = scmp.eq.s32.totalorder %s16, 1
      %p34 = por %p32, %p33
      %p36 = scmp.ne.s32.totalorder %s21, %s35
      %p37 = scmp.eq.s32.totalorder %s16, 0
      %p38 = por %p36, %p37
      %s39 = ssub.s32 %s10, %s17
      %p40 = scmp.eq.s32.totalorder %s39, 0
      %s42 = sadd.s32 %s41, 1
      %s43 = scalar_select %p40, %s41, %s42
      %p46 = pneg %p40
      %p47 = scmp.eq.s32.totalorder %s10, 1
      %p48 = por %p46, %p47
      %p49 = scmp.ne.s32.totalorder %s41, %s44
      %p50 = scmp.eq.s32.totalorder %s10, 0
      %p51 = por %p49, %p50
      %p52 = scmp.ne.s32.totalorder %s41, %s44
      %p53 = scmp.eq.s32.totalorder %s15, 1
      %p54 = por %p52, %p53
      %p55 = scmp.ne.s32.totalorder %s44, %s45
      %p56 = scmp.eq.s32.totalorder %s15, 0
      %p57 = por %p55, %p56
      %p58 = scmp.ne.s32.totalorder %s44, %s45
      %p59 = scmp.eq.s32.totalorder %s16, 1
      %p60 = por %p58, %p59
      %p62 = scmp.ne.s32.totalorder %s45, %s61
      %p63 = scmp.eq.s32.totalorder %s16, 0
      %p64 = por %p62, %p63
      %s66 = sadd.s32 %s65, 1
      %p69 = scmp.eq.s32.totalorder %s10, 1
      %p70 = scmp.ne.s32.totalorder %s65, %s67
      %p71 = scmp.eq.s32.totalorder %s10, 0
      %p72 = por %p70, %p71
      %p73 = scmp.ne.s32.totalorder %s65, %s67
      %p74 = scmp.eq.s32.totalorder %s15, 1
      %p75 = por %p73, %p74
      %p76 = scmp.ne.s32.totalorder %s67, %s68
      %p77 = scmp.eq.s32.totalorder %s15, 0
      %p78 = por %p76, %p77
      %p79 = scmp.ne.s32.totalorder %s67, %s68
      %p80 = scmp.eq.s32.totalorder %s16, 1
      %p81 = por %p79, %p80
      %p83 = scmp.ne.s32.totalorder %s68, %s82
      %p84 = scmp.eq.s32.totalorder %s16, 0
      %p85 = por %p83, %p84
      %s87 = sadd.s32 %s86, 1
      %p90 = scmp.eq.s32.totalorder %s10, 1
      %p91 = scmp.ne.s32.totalorder %s86, %s88
      %p92 = scmp.eq.s32.totalorder %s10, 0
      %p93 = por %p91, %p92
      %p94 = scmp.ne.s32.totalorder %s86, %s88
      %p95 = scmp.eq.s32.totalorder %s15, 1
      %p96 = por %p94, %p95
      %p97 = scmp.ne.s32.totalorder %s88, %s89
      %p98 = scmp.eq.s32.totalorder %s15, 0
      %p99 = por %p97, %p98
      %p100 = scmp.ne.s32.totalorder %s88, %s89
      %p101 = scmp.eq.s32.totalorder %s16, 1
      %p102 = por %p100, %p101
      %p104 = scmp.ne.s32.totalorder %s89, %s103
      %p105 = scmp.eq.s32.totalorder %s16, 0
      %p106 = por %p104, %p105
      %s107 = ssub.s32 %s10, %s17
      %p108 = scmp.eq.s32.totalorder %s107, 0
      %s110 = sadd.s32 %s109, 1
      %s111 = scalar_select %p108, %s109, %s110
      %p114 = pneg %p108
      %p115 = scmp.eq.s32.totalorder %s10, 1
      %p116 = por %p114, %p115
      %p117 = scmp.ne.s32.totalorder %s109, %s112
      %p118 = scmp.eq.s32.totalorder %s10, 0
      %p119 = por %p117, %p118
      %p120 = scmp.ne.s32.totalorder %s109, %s112
      %p121 = scmp.eq.s32.totalorder %s15, 1
      %p122 = por %p120, %p121
      %p123 = scmp.ne.s32.totalorder %s112, %s113
      %p124 = scmp.eq.s32.totalorder %s15, 0
      %p125 = por %p123, %p124
      %p126 = scmp.ne.s32.totalorder %s112, %s113
      %p127 = scmp.eq.s32.totalorder %s16, 1
      %p128 = por %p126, %p127
      %p130 = scmp.ne.s32.totalorder %s113, %s129
      %p131 = scmp.eq.s32.totalorder %s16, 0
      %p132 = por %p130, %p131
      %p133 = scmp.le.s32.totalorder 1, %s10
      %p134 = scmp.lt.s32.totalorder %s10, 3
      %p135 = pnand %p133, %p134
      %p136 = pneg %p135
      // Predicated region
      $region9: #{model_forward_pallas.3} parent=5 // pred_check
        _
      $region10: #{model_forward_pallas.3} parent=5 // pred_check_branch
        %138 = sbr.rel (%p135) target = $region12
      $region11: #{model_forward_pallas.3} parent=5 // pred_region
        %s139 = ssub.s32 %s10, 1
        // Predicated region
        $region13: #{model_forward_pallas.3} parent=11 // pred_check
          %p140 = pneg %p31
        $region14: #{model_forward_pallas.3} parent=11 // pred_check_branch
          %142 = sbr.rel (%p140) target = $region16
        $region15: #{model_forward_pallas.3} parent=11 // pred_region
          _
        $region16: #{model_forward_pallas.3} parent=11 // pred_fallthru
          _
        // Predicated region
        $region17: #{model_forward_pallas.3} parent=11 // pred_check
          %p143 = pneg %p78
        $region18: #{model_forward_pallas.3} parent=11 // pred_check_branch
          %145 = sbr.rel (%p143) target = $region20
        $region19: #{model_forward_pallas.3} parent=11 // pred_region
          _
        $region20: #{model_forward_pallas.3} parent=11 // pred_fallthru
          _
        // Predicated region
        $region21: #{model_forward_pallas.3} parent=11 // pred_check
          %p146 = pneg %p99
        $region22: #{model_forward_pallas.3} parent=11 // pred_check_branch
          %148 = sbr.rel (%p146) target = $region24
        $region23: #{model_forward_pallas.3} parent=11 // pred_region
          _
        $region24: #{model_forward_pallas.3} parent=11 // pred_fallthru
          _
      $region12: #{model_forward_pallas.3} parent=5 // pred_fallthru
        _
      %p149 = scmp.lt.s32.totalorder %s10, 2
      // Predicated region
      $region25: #{model_forward_pallas.3} parent=5 // pred_check
        %p150 = pneg %p149
      $region26: #{model_forward_pallas.3} parent=5 // pred_check_branch
        %152 = sbr.rel (%p150) target = $region28
      $region27: #{model_forward_pallas.3} parent=5 // pred_region
        // Predicated region
        $region29: #{model_forward_pallas.3} parent=27 // pred_check
          %p153 = pneg %p51
        $region30: #{model_forward_pallas.3} parent=27 // pred_check_branch
          %155 = sbr.rel (%p153) target = $region32
        $region31: #{model_forward_pallas.3} parent=27 // pred_region
          %s156 = sand.u32 %s41, 1
          %s157 = sand.u32 %s41, 1
          %s158 = smul.addr %s157, 64
          %s159 = scalar_lea.vmem [#allocation2], %s158
          %s160 = smul.u32 2, %s10
          %s161 = smul.addr %s160, 8
          %s162 = scalar_lea.vmem %s1, %s161
          // Predicated region
          $region33: #{model_forward_pallas.3} parent=31 // pred_check
            _
          $region34: #{model_forward_pallas.3} parent=31 // pred_check_branch
            %164 = sbr.rel (0) target = $region36
          $region35: #{model_forward_pallas.3} parent=31 // pred_region
            // Predicated region
            $region37: #{model_forward_pallas.3} parent=35 // pred_check
              _
            $region38: #{model_forward_pallas.3} parent=35 // pred_check_branch
              %166 = sbr.rel (0) target = $region40
            $region39: #{model_forward_pallas.3} parent=35 // pred_region
              loop: start=0, step=1, limit=1
              $region41: #{model_forward_pallas.3} parent=39 // loop_pre_header
                _
              $region42: #{model_forward_pallas.3} parent=39 // loop_header
                %s168 = sphi 0, %s172
                %p169 = scmp.ge.s32.totalorder %s168, 1
                %s173 = sphi %s162, %s162
                %s174 = sphi %s159, %s159
              $region43: #{model_forward_pallas.3} parent=39 // loop_header_branch
                %171 = sbr.rel (%p169) target = $region47
              $region44: #{model_forward_pallas.3} parent=39 // loop_body
                %v175 = vld [vmem:[%s173] sm:$0xff]
                %176 = vst [vmem:[%s174] sm:$0xff] %v175
                %v177 = vld [vmem:[%s173 + $0x8] sm:$0xff]
                %178 = vst [vmem:[%s174 + $0x8] sm:$0xff] %v177
                %v179 = vld [vmem:[%s173 + $0x20] sm:$0xff]
                %180 = vst [vmem:[%s174 + $0x10] sm:$0xff] %v179
                %v181 = vld [vmem:[%s173 + $0x28] sm:$0xff]
                %182 = vst [vmem:[%s174 + $0x18] sm:$0xff] %v181
                %v183 = vld [vmem:[%s173 + $0x40] sm:$0xff]
                %184 = vst [vmem:[%s174 + $0x20] sm:$0xff] %v183
                %v185 = vld [vmem:[%s173 + $0x48] sm:$0xff]
                %186 = vst [vmem:[%s174 + $0x28] sm:$0xff] %v185
                %v187 = vld [vmem:[%s173 + $0x60] sm:$0xff]
                %188 = vst [vmem:[%s174 + $0x30] sm:$0xff] %v187
                %v189 = vld [vmem:[%s173 + $0x68] sm:$0xff]
                %190 = vst [vmem:[%s174 + $0x38] sm:$0xff] %v189
              $region45: #{model_forward_pallas.3} parent=39 // loop_footer
                %s172 = sadd.s32 1, %s168
              $region46: #{model_forward_pallas.3} parent=39 // loop_footer_branch
                %167 = sbr.rel target = $region42
              $region47: #{model_forward_pallas.3} parent=39 // loop_exit
                _
            $region40: #{model_forward_pallas.3} parent=35 // pred_fallthru
              _
            // Predicated region
            $region48: #{model_forward_pallas.3} parent=35 // pred_check
              _
            $region49: #{model_forward_pallas.3} parent=35 // pred_check_branch
              %192 = sbr.rel target = $region51
            $region50: #{model_forward_pallas.3} parent=35 // pred_region
              _
            $region51: #{model_forward_pallas.3} parent=35 // pred_fallthru
              _
          $region36: #{model_forward_pallas.3} parent=31 // pred_fallthru
            _
          %193 = vnop
        $region32: #{model_forward_pallas.3} parent=27 // pred_fallthru
          _
      $region28: #{model_forward_pallas.3} parent=5 // pred_fallthru
        _
      %p194 = scmp.le.s32.totalorder 1, %s10
      %p195 = scmp.lt.s32.totalorder %s10, 3
      %p196 = pnand %p194, %p195
      %p197 = pneg %p196
      // Predicated region
      $region52: #{model_forward_pallas.3} parent=5 // pred_check
        _
      $region53: #{model_forward_pallas.3} parent=5 // pred_check_branch
        %199 = sbr.rel (%p196) target = $region55
      $region54: #{model_forward_pallas.3} parent=5 // pred_region
        %s200 = ssub.s32 %s10, 1
        %s201 = sand.u32 %s44, 1
        %s202 = sand.u32 %s44, 1
        %s203 = smul.addr %s202, 64
        %s204 = scalar_lea.vmem [#allocation2], %s203
        // Predicated region
        $region56: #{model_forward_pallas.3} parent=54 // pred_check
          %p205 = pneg %p57
        $region57: #{model_forward_pallas.3} parent=54 // pred_check_branch
          %207 = sbr.rel (%p205) target = $region59
        $region58: #{model_forward_pallas.3} parent=54 // pred_region
          _
        $region59: #{model_forward_pallas.3} parent=54 // pred_fallthru
          _
        %p208 = pneg %p31
        %p209 = pneg %p28
        %s210 = sand.u32 %s44, 1
        %s211 = sand.u32 %s44, 1
        %s212 = smul.addr %s211, 64
        %s213 = scalar_lea.vmem [#allocation2], %s212
        %p214 = pneg %p57
        %p215 = pneg %p54
        %p216 = pneg %p78
        %p217 = pneg %p75
        %p218 = pneg %p99
        %p219 = pneg %p96
        %p220 = pneg %p125
        %p221 = pneg %p122
        %s222 = smul.u32 2, %s15
        %p223 = scmp.lt.s32.totalorder %s222, 3
        %s224 = scalar_select %p223, %s222, 3
        %s225 = smul.addr %s224, 8
        %s226 = scalar_lea.vmem %s4, %s225
        %s227 = smul.u32 2, %s15
        %s228 = smul.u32 2, %s15
        %p229 = scmp.lt.s32.totalorder %s228, 3
        %s230 = scalar_select %p229, %s228, 3
        %s231 = smul.addr %s230, 8
        %s232 = scalar_lea.vmem %s4, %s231
        %s233 = smul.u32 2, %s15
        %v234 = vld [vmem:[%s0] sm:$0xff]
        %v235 = vld [vmem:[%s204] sm:$0xff]
        %v236 = vld [vmem:[%s204 + $0x8] sm:$0xff]
        %v237 = vld [vmem:[%s204 + $0x10] sm:$0xff]
        %v238 = vld [vmem:[%s204 + $0x18] sm:$0xff]
        %v239 = vld [vmem:[%s204 + $0x20] sm:$0xff]
        %v240 = vld [vmem:[%s204 + $0x28] sm:$0xff]
        %v241 = vld [vmem:[%s204 + $0x30] sm:$0x1]
        %v242 = vld [vmem:[%s204 + $0x38] sm:$0x1]
        %vm243 = vcmask 203776
        %v245 = vsel %vm243, %v234, 0
        %vm247 = vcmask 1040384
        %v249 = vsel %vm247, %v241, 0
        %v252 = vsel %vm247, %v242, 0
        %254 = vmatprep.subr.mxu0 %v236
        %255 = vmatpush1.msra.mxu0 %v235
        %256 = vmatprep.subr.mxu0 %v238
        %257 = vmatpush1.msra.mxu0 %v237
        %258 = vmatprep.subr.mxu0 %v240
        %259 = vmatpush1.msra.mxu0 %v239
        %260 = vmatprep.subr.mxu0 %v252
        %261 = vmatpush1.msra.mxu0 %v249
        %262 = vmatprep.subr.mxu0 0.0
        %263 = vmatpush1.msra.mxu0 0.0
        %264 = vmatprep.subr.mxu0 0.0
        %265 = vmatpush1.msra.mxu0 0.0
        %266 = vmatprep.subr.mxu0 0.0
        %267 = vmatpush1.msra.mxu0 0.0
        %268 = vmatprep.subr.mxu0 0.0
        %269 = vmatpush1.msra.mxu0 0.0
        %270 = vmatprep.subr.mxu0 0.0
        %271 = vmatpush1.msra.mxu0 0.0
        %272 = vmatprep.subr.mxu0 0.0
        %273 = vmatpush1.msra.mxu0 0.0
        %274 = vmatprep.subr.mxu0 0.0
        %275 = vmatpush1.msra.mxu0 0.0
        %276 = vmatprep.subr.mxu0 0.0
        %277 = vmatpush1.msra.mxu0 0.0
        %278 = vmatprep.subr.mxu0 0.0
        %279 = vmatpush1.msra.mxu0 0.0
        %280 = vmatprep.subr.mxu0 0.0
        %281 = vmatpush1.msra.mxu0 0.0
        %282 = vmatprep.subr.mxu0 0.0
        %283 = vmatpush1.msra.mxu0 0.0
        %284 = vmatprep.subr.mxu0 0.0
        %285 = vmatpush1.msra.mxu0 0.0
        %286 = vmatprep.subr.mxu0 0.0
        %287 = vmatpush1.msra.mxu0 0.0
        %288 = vmatprep.subr.mxu0 0.0
        %289 = vmatpush1.msra.mxu0 0.0
        %290 = vmatprep.subr.mxu0 0.0
        %291 = vmatpush1.msra.mxu0 0.0
        %292 = vmatprep.subr.mxu0 0.0
        %293 = vmatpush1.msra.mxu0 0.0
        %294 = vmatprep.subr.mxu0 0.0
        %295 = vmatpush1.msra.mxu0 0.0
        %296 = vmatprep.subr.mxu0 0.0
        %297 = vmatpush1.msra.mxu0 0.0
        %298 = vmatprep.subr.mxu0 0.0
        %299 = vmatpush1.msra.mxu0 0.0
        %300 = vmatprep.subr.mxu0 0.0
        %301 = vmatpush1.msra.mxu0 0.0
        %302 = vmatprep.subr.mxu0 0.0
        %303 = vmatpush1.msra.mxu0 0.0
        %304 = vmatprep.subr.mxu0 0.0
        %305 = vmatpush1.msra.mxu0 0.0
        %306 = vmatprep.subr.mxu0 0.0
        %307 = vmatpush1.msra.mxu0 0.0
        %308 = vmatprep.subr.mxu0 0.0
        %309 = vmatpush1.msra.mxu0 0.0
        %310 = vmatprep.subr.mxu0 0.0
        %311 = vmatpush1.msra.mxu0 0.0
        %312 = vmatprep.subr.mxu0 0.0
        %313 = vmatpush1.msra.mxu0 0.0
        %314 = vmatprep.subr.mxu0 0.0
        %315 = vmatpush1.msra.mxu0 0.0
        %316 = vmatprep.subr.mxu0 0.0
        %317 = vmatpush1.msra.mxu0 0.0
        %318 = vmatprep.mubr.f32.mxu0 0.0
        %319 = vmatmul.mubr.f32.gmra.mrb[0].mxu0 %v245
        %v320 = vpop.f32.mrb[0].mxu0
        %v321 = vadd.f32 0.0, %v320
        %v322 = vpop.f32.mrb[0].mxu0
        %v323 = vadd.f32 0.0, %v322
        %324 = vdwg.mxu0
        %v325 = vld [vmem:[%s2] sm:$0xff]
        %327 = vset.pattern.permute.xlu0 0
        %328 = vperm.xlu0 %327, %v325
        %v329 = vpop.permute.xlu0 %328
        %v331 = vmul.f32 %v321, %v329
        %v332 = vmul.f32 %v323, %v329
        %v333 = vld [vmem:[%s3] sm:$0xff]
        %335 = vset.pattern.permute.xlu0 0
        %336 = vperm.xlu0 %335, %v333
        %v337 = vpop.permute.xlu0 %336
        %v339 = vadd.f32 %v331, %v337
        %v340 = vadd.f32 %v332, %v337
        %v341 = vmax.f32 %v339, 0.0
        %v342 = vmax.f32 %v340, 0.0
        %343 = vst [vmem:[%s232] sm:$0xff] %v341
        %344 = vst [vmem:[%s232 + $0x8] sm:$0xff] %v342
        %s345 = smul.u32 2, %s15
        %p346 = scmp.lt.s32.totalorder %s345, 3
        %s347 = scalar_select %p346, %s345, 3
        %s348 = smul.addr %s347, 8
        %s349 = scalar_lea.vmem %s4, %s348
        // Predicated region
        $region60: #{model_forward_pallas.3} parent=54 // pred_check
          %p350 = pneg %p122
        $region61: #{model_forward_pallas.3} parent=54 // pred_check_branch
          %352 = sbr.rel (%p350) target = $region63
        $region62: #{model_forward_pallas.3} parent=54 // pred_region
          %s353 = smul.u32 2, %s15
        $region63: #{model_forward_pallas.3} parent=54 // pred_fallthru
          _
      $region55: #{model_forward_pallas.3} parent=5 // pred_fallthru
        _
      %p354 = scmp.le.s32.totalorder 2, %s10
      // Predicated region
      $region64: #{model_forward_pallas.3} parent=5 // pred_check
        %p355 = pneg %p354
      $region65: #{model_forward_pallas.3} parent=5 // pred_check_branch
        %357 = sbr.rel (%p355) target = $region67
      $region66: #{model_forward_pallas.3} parent=5 // pred_region
        %s358 = ssub.s32 %s10, 2
        // Predicated region
        $region68: #{model_forward_pallas.3} parent=66 // pred_check
          %p359 = pneg %p128
        $region69: #{model_forward_pallas.3} parent=66 // pred_check_branch
          %361 = sbr.rel (%p359) target = $region71
        $region70: #{model_forward_pallas.3} parent=66 // pred_region
          %s362 = smul.u32 2, %s16
          %p363 = scmp.lt.s32.totalorder %s362, 3
          %s364 = scalar_select %p363, %s362, 3
          %s365 = smul.addr %s364, 8
          %s366 = scalar_lea.vmem %s4, %s365
        $region71: #{model_forward_pallas.3} parent=66 // pred_fallthru
          _
      $region67: #{model_forward_pallas.3} parent=5 // pred_fallthru
        _
    $region6: #{model_forward_pallas.3} parent=1 // loop_footer
      %s14 = sadd.s32 1, %s10
    $region7: #{model_forward_pallas.3} parent=1 // loop_footer_branch
      %9 = sbr.rel target = $region3
    $region8: #{model_forward_pallas.3} parent=1 // loop_exit
      _

// kernel: model_forward_pallas.4
$region0: #{model_forward_pallas.4}
  #allocation0 [shape = 'u32[]', space=smem, size = 0x4, offset = 0x4, fixed_abs, tag = 'smem constant byte address 0x4 - core index']
  #allocation1 [shape = 'u32[144,128]{1,0:T(1,128)}', space=vmem, size = 0x12000, scoped, tag = 'internal scratch']
  %s0 = inlined_call_operand.vmem [shape: f32[16,200], index: 0, kind: input, shape index: {}]
  %s1 = inlined_call_operand.vmem [shape: f32[200,128], index: 1, kind: input, shape index: {}]
  %s2 = inlined_call_operand.vmem [shape: f32[16,1], index: 2, kind: input, shape index: {}]
  %s3 = inlined_call_operand.vmem [shape: f32[16,1], index: 3, kind: input, shape index: {}]
  %s4 = inlined_call_operand.vmem [shape: f32[16,128], index: 4, kind: output, shape index: {}]
  %s5 = sld [smem:[#allocation0]]
  $region26: #{model_forward_pallas.4} parent=0
    _
  %s7 = ssub.s32 1, %s5
  %s8 = scalar_select 0, %s7, %s5
  // Predicated region
  $region2: #{model_forward_pallas.4} parent=0 // pred_check
    _
  $region3: #{model_forward_pallas.4} parent=0 // pred_check_branch
    %10 = sbr.rel (0) target = $region5
  $region4: #{model_forward_pallas.4} parent=0 // pred_region
    _
  $region5: #{model_forward_pallas.4} parent=0 // pred_fallthru
    _
  // Predicated region
  $region6: #{model_forward_pallas.4} parent=0 // pred_check
    _
  $region7: #{model_forward_pallas.4} parent=0 // pred_check_branch
    %12 = sbr.rel (0) target = $region9
  $region8: #{model_forward_pallas.4} parent=0 // pred_region
    _
  $region9: #{model_forward_pallas.4} parent=0 // pred_fallthru
    _
  // Predicated region
  $region10: #{model_forward_pallas.4} parent=0 // pred_check
    _
  $region11: #{model_forward_pallas.4} parent=0 // pred_check_branch
    %14 = sbr.rel (0) target = $region13
  $region12: #{model_forward_pallas.4} parent=0 // pred_region
    _
  $region13: #{model_forward_pallas.4} parent=0 // pred_fallthru
    _
  // Predicated region
  $region14: #{model_forward_pallas.4} parent=0 // pred_check
    _
  $region15: #{model_forward_pallas.4} parent=0 // pred_check_branch
    %16 = sbr.rel (0) target = $region17
  $region16: #{model_forward_pallas.4} parent=0 // pred_region
    _
  $region17: #{model_forward_pallas.4} parent=0 // pred_fallthru
    _
  %v17 = vld [vmem:[%s0] sm:$0xff]
  %v18 = vld [vmem:[%s0 + $0x8] sm:$0xff]
  %v19 = vld [vmem:[%s0 + $0x10] sm:$0xff]
  %v20 = vld [vmem:[%s0 + $0x18] sm:$0xff]
  %v21 = vld [vmem:[%s1] sm:$0xff]
  %v22 = vld [vmem:[%s1 + $0x8] sm:$0xff]
  %v23 = vld [vmem:[%s1 + $0x10] sm:$0xff]
  %v24 = vld [vmem:[%s1 + $0x18] sm:$0xff]
  %v25 = vld [vmem:[%s1 + $0x20] sm:$0xff]
  %v26 = vld [vmem:[%s1 + $0x28] sm:$0xff]
  %v27 = vld [vmem:[%s1 + $0x30] sm:$0xff]
  %v28 = vld [vmem:[%s1 + $0x38] sm:$0xff]
  %v29 = vld [vmem:[%s1 + $0x40] sm:$0xff]
  %v30 = vld [vmem:[%s1 + $0x48] sm:$0xff]
  %v31 = vld [vmem:[%s1 + $0x50] sm:$0xff]
  %v32 = vld [vmem:[%s1 + $0x58] sm:$0xff]
  %v33 = vld [vmem:[%s1 + $0x60] sm:$0xff]
  %v34 = vld [vmem:[%s1 + $0x68] sm:$0xff]
  %v35 = vld [vmem:[%s1 + $0x70] sm:$0xff]
  %v36 = vld [vmem:[%s1 + $0x78] sm:$0xff]
  %v37 = vld [vmem:[%s1 + $0x80] sm:$0xff]
  %v38 = vld [vmem:[%s1 + $0x88] sm:$0xff]
  %v39 = vld [vmem:[%s1 + $0x90] sm:$0xff]
  %v40 = vld [vmem:[%s1 + $0x98] sm:$0xff]
  %v41 = vld [vmem:[%s1 + $0xa0] sm:$0xff]
  %v42 = vld [vmem:[%s1 + $0xa8] sm:$0xff]
  %v43 = vld [vmem:[%s1 + $0xb0] sm:$0xff]
  %v44 = vld [vmem:[%s1 + $0xb8] sm:$0xff]
  %v45 = vld [vmem:[%s1 + $0xc0] sm:$0xff]
  %vm46 = vcmask 588800
  %v48 = vsel %vm46, %v18, 0
  %v51 = vsel %vm46, %v20, 0
  %53 = vmatprep.subr.mxu0 0.0
  %54 = vmatpush1.msra.mxu0 %v21
  %55 = vmatprep.subr.mxu0 0.0
  %56 = vmatpush1.msra.mxu0 %v22
  %57 = vmatprep.subr.mxu0 0.0
  %58 = vmatpush1.msra.mxu0 %v23
  %59 = vmatprep.subr.mxu0 0.0
  %60 = vmatpush1.msra.mxu0 %v24
  %61 = vmatprep.subr.mxu0 0.0
  %62 = vmatpush1.msra.mxu0 %v25
  %63 = vmatprep.subr.mxu0 0.0
  %64 = vmatpush1.msra.mxu0 %v26
  %65 = vmatprep.subr.mxu0 0.0
  %66 = vmatpush1.msra.mxu0 %v27
  %67 = vmatprep.subr.mxu0 0.0
  %68 = vmatpush1.msra.mxu0 %v28
  %69 = vmatprep.subr.mxu0 0.0
  %70 = vmatpush1.msra.mxu0 %v29
  %71 = vmatprep.subr.mxu0 0.0
  %72 = vmatpush1.msra.mxu0 %v30
  %73 = vmatprep.subr.mxu0 0.0
  %74 = vmatpush1.msra.mxu0 %v31
  %75 = vmatprep.subr.mxu0 0.0
  %76 = vmatpush1.msra.mxu0 %v32
  %77 = vmatprep.subr.mxu0 0.0
  %78 = vmatpush1.msra.mxu0 %v33
  %79 = vmatprep.subr.mxu0 0.0
  %80 = vmatpush1.msra.mxu0 %v34
  %81 = vmatprep.subr.mxu0 0.0
  %82 = vmatpush1.msra.mxu0 %v35
  %83 = vmatprep.subr.mxu0 0.0
  %84 = vmatpush1.msra.mxu0 %v36
  %85 = vmatprep.subr.mxu0 0.0
  %86 = vmatpush1.msra.mxu0 %v37
  %87 = vmatprep.subr.mxu0 0.0
  %88 = vmatpush1.msra.mxu0 %v38
  %89 = vmatprep.subr.mxu0 0.0
  %90 = vmatpush1.msra.mxu0 %v39
  %91 = vmatprep.subr.mxu0 0.0
  %92 = vmatpush1.msra.mxu0 %v40
  %93 = vmatprep.subr.mxu0 0.0
  %94 = vmatpush1.msra.mxu0 %v41
  %95 = vmatprep.subr.mxu0 0.0
  %96 = vmatpush1.msra.mxu0 %v42
  %97 = vmatprep.subr.mxu0 0.0
  %98 = vmatpush1.msra.mxu0 %v43
  %99 = vmatprep.subr.mxu0 0.0
  %100 = vmatpush1.msra.mxu0 %v44
  %101 = vmatprep.subr.mxu0 0.0
  %102 = vmatpush1.msra.mxu0 %v45
  %103 = vmatprep.subr.mxu0 0.0
  %104 = vmatpush1.msra.mxu0 0.0
  %105 = vmatprep.subr.mxu0 0.0
  %106 = vmatpush1.msra.mxu0 0.0
  %107 = vmatprep.subr.mxu0 0.0
  %108 = vmatpush1.msra.mxu0 0.0
  %109 = vmatprep.subr.mxu0 0.0
  %110 = vmatpush1.msra.mxu0 0.0
  %111 = vmatprep.subr.mxu0 0.0
  %112 = vmatpush1.msra.mxu0 0.0
  %113 = vmatprep.subr.mxu0 0.0
  %114 = vmatpush1.msra.mxu0 0.0
  %115 = vmatprep.subr.mxu0 0.0
  %116 = vmatpush1.msra.mxu0 0.0
  %117 = vmatprep.mubr.f32.mxu0 %v48
  %118 = vmatmul.mubr.f32.gmra.mrb[0].mxu0 %v17
  %v119 = vpop.f32.mrb[0].mxu0
  %v120 = vadd.f32 0.0, %v119
  %v121 = vpop.f32.mrb[0].mxu0
  %122 = vmatprep.mubr.f32.mxu0 %v51
  %123 = vmatmul.mubr.f32.gmra.mrb[0].mxu0 %v19
  %v124 = vpop.f32.mrb[0].mxu0
  %v125 = vadd.f32 0.0, %v124
  %v126 = vpop.f32.mrb[0].mxu0
  %127 = vdwg.mxu0
  %v128 = vld [vmem:[%s2] sm:$0xff]
  %v129 = vld [vmem:[%s2 + $0x8] sm:$0xff]
  %131 = vset.pattern.permute.xlu0 0
  %132 = vperm.xlu0 %131, %v128
  %v133 = vpop.permute.xlu0 %132
  %136 = vset.pattern.permute.xlu0 0
  %137 = vperm.xlu0 %136, %v129
  %v138 = vpop.permute.xlu0 %137
  %v140 = vmul.f32 %v120, %v133
  %v141 = vmul.f32 %v125, %v138
  %v142 = vld [vmem:[%s3] sm:$0xff]
  %v143 = vld [vmem:[%s3 + $0x8] sm:$0xff]
  %145 = vset.pattern.permute.xlu0 0
  %146 = vperm.xlu0 %145, %v142
  %v147 = vpop.permute.xlu0 %146
  %150 = vset.pattern.permute.xlu0 0
  %151 = vperm.xlu0 %150, %v143
  %v152 = vpop.permute.xlu0 %151
  %v154 = vadd.f32 %v140, %v147
  %v155 = vadd.f32 %v141, %v152
  %v156 = vmax.f32 %v154, 0.0
  %v157 = vmax.f32 %v155, 0.0
  %158 = vst [vmem:[%s4] sm:$0xff] %v156
  %159 = vst [vmem:[%s4 + $0x8] sm:$0xff] %v157
  // Predicated region
  $region18: #{model_forward_pallas.4} parent=0 // pred_check
    _
  $region19: #{model_forward_pallas.4} parent=0 // pred_check_branch
    %161 = sbr.rel (0) target = $region21
  $region20: #{model_forward_pallas.4} parent=0 // pred_region
    _
  $region21: #{model_forward_pallas.4} parent=0 // pred_fallthru
    _
  // Predicated region
  $region22: #{model_forward_pallas.4} parent=0 // pred_check
    _
  $region23: #{model_forward_pallas.4} parent=0 // pred_check_branch
    %163 = sbr.rel (0) target = $region25
  $region24: #{model_forward_pallas.4} parent=0 // pred_region
    _
  $region25: #{model_forward_pallas.4} parent=0 // pred_fallthru
    _

// kernel: model_forward_pallas.5
$region0: #{model_forward_pallas.5}
  #allocation0 [shape = 'u32[]', space=smem, size = 0x4, offset = 0x4, fixed_abs, tag = 'smem constant byte address 0x4 - core index']
  #allocation1 [shape = 'u32[144,128]{1,0:T(1,128)}', space=vmem, size = 0x12000, scoped, tag = 'internal scratch']
  #allocation2 [shape = 'f32[16,12]{1,0:T(8,128)}', space=vmem, size = 0x2000, scoped, tag = 'scratch operand']
  %s0 = inlined_call_operand.vmem [shape: f32[2,128,8], index: 0, kind: input, shape index: {}]
  %s1 = inlined_call_operand.vmem [shape: f32[16,128], index: 1, kind: input, shape index: {}]
  %s2 = inlined_call_operand.vmem [shape: f32[16,1], index: 2, kind: input, shape index: {}]
  %s3 = inlined_call_operand.vmem [shape: f32[3,16,5], index: 3, kind: input, shape index: {}]
  %s4 = inlined_call_operand.vmem [shape: f32[3,16,1], index: 4, kind: input, shape index: {}]
  %s5 = inlined_call_operand.vmem [shape: f32[3,16,1], index: 5, kind: input, shape index: {}]
  %s6 = inlined_call_operand.vmem [shape: f32[3,32,16], index: 6, kind: input, shape index: {}]
  %s7 = inlined_call_operand.vmem [shape: f32[3,32,1], index: 7, kind: input, shape index: {}]
  %s8 = inlined_call_operand.vmem [shape: f32[3,32,1], index: 8, kind: input, shape index: {}]
  %s9 = inlined_call_operand.vmem [shape: f32[3,16,32], index: 9, kind: input, shape index: {}]
  %s10 = inlined_call_operand.vmem [shape: f32[3,16,1], index: 10, kind: input, shape index: {}]
  %s11 = inlined_call_operand.vmem [shape: f32[3,16,1], index: 11, kind: input, shape index: {}]
  %s12 = inlined_call_operand.vmem [shape: f32[10,16,8], index: 12, kind: input, shape index: {}]
  %s13 = inlined_call_operand.vmem [shape: f32[10,1], index: 13, kind: input, shape index: {}]
  %s14 = inlined_call_operand.vmem [shape: f32[2,10,1], index: 14, kind: output, shape index: {}]
  %s15 = sld [smem:[#allocation0]]
  $region89: #{model_forward_pallas.5} parent=0
    _
  %s17 = ssub.s32 1, %s15
  %s18 = scalar_select 0, %s17, %s15
  loop: start=0, step=1, limit=4
  $region2: #{model_forward_pallas.5} parent=0 // loop_pre_header
    _
  $region3: #{model_forward_pallas.5} parent=0 // loop_header
    %s20 = sphi 0, %s24
    %p21 = scmp.ge.s32.totalorder %s20, 4
    %s30 = sphi 0, %s32
    %s33 = sphi 0, %s30
    %s34 = sphi 0, %s33
    %s50 = sphi 0, %s34
    %s54 = sphi 0, %s54
    %s56 = sphi 0, %s54
    %s57 = sphi 0, %s56
    %s71 = sphi 0, %s57
    %s75 = sphi 0, %s75
    %s77 = sphi 0, %s75
    %s78 = sphi 0, %s77
    %s92 = sphi 0, %s78
    %s96 = sphi 0, %s96
    %s98 = sphi 0, %s96
    %s99 = sphi 0, %s98
    %s113 = sphi 0, %s99
    %s117 = sphi 0, %s117
    %s119 = sphi 0, %s117
    %s120 = sphi 0, %s119
    %s134 = sphi 0, %s120
    %s138 = sphi 0, %s138
    %s140 = sphi 0, %s138
    %s141 = sphi 0, %s140
    %s155 = sphi 0, %s141
    %s159 = sphi 0, %s159
    %s161 = sphi 0, %s159
    %s162 = sphi 0, %s161
    %s176 = sphi 0, %s162
    %s180 = sphi 0, %s180
    %s182 = sphi 0, %s180
    %s183 = sphi 0, %s182
    %s197 = sphi 0, %s183
    %s201 = sphi 0, %s201
    %s203 = sphi 0, %s201
    %s204 = sphi 0, %s203
    %s218 = sphi 0, %s204
    %s222 = sphi 0, %s222
    %s224 = sphi 0, %s222
    %s225 = sphi 0, %s224
    %s239 = sphi 0, %s225
    %s243 = sphi 0, %s243
    %s245 = sphi 0, %s243
    %s246 = sphi 0, %s245
    %s260 = sphi 0, %s246
    %s264 = sphi 0, %s264
    %s266 = sphi 0, %s264
    %s267 = sphi 0, %s266
    %s281 = sphi 0, %s267
    %s285 = sphi 0, %s285
    %s287 = sphi 0, %s285
    %s288 = sphi 0, %s287
    %s302 = sphi 0, %s288
    %s306 = sphi 0, %s306
    %s308 = sphi 0, %s306
    %s309 = sphi 0, %s308
    %s323 = sphi 0, %s309
    %s329 = sphi 0, %s331
    %s332 = sphi 0, %s329
    %s333 = sphi 0, %s332
    %s349 = sphi 0, %s333
  $region4: #{model_forward_pallas.5} parent=0 // loop_header_branch
    %23 = sbr.rel (%p21) target = $region8
  $region5: #{model_forward_pallas.5} parent=0 // loop_body
    %s25 = ssub.s32 %s20, 1
    %s26 = ssub.s32 %s20, 2
    %s27 = sadd.s32 %s20, 1
    %s28 = ssub.s32 %s20, %s27
    %p29 = scmp.eq.s32.totalorder %s28, 0
    %s31 = sadd.s32 %s30, 1
    %s32 = scalar_select %p29, %s30, %s31
    %p35 = pneg %p29
    %p36 = scmp.eq.s32.totalorder %s20, 1
    %p37 = por %p35, %p36
    %p38 = scmp.ne.s32.totalorder %s30, %s33
    %p39 = scmp.eq.s32.totalorder %s20, 0
    %p40 = por %p38, %p39
    %p41 = scmp.ne.s32.totalorder %s30, %s33
    %p42 = scmp.eq.s32.totalorder %s25, 1
    %p43 = por %p41, %p42
    %p44 = scmp.ne.s32.totalorder %s33, %s34
    %p45 = scmp.eq.s32.totalorder %s25, 0
    %p46 = por %p44, %p45
    %p47 = scmp.ne.s32.totalorder %s33, %s34
    %p48 = scmp.eq.s32.totalorder %s26, 1
    %p49 = por %p47, %p48
    %p51 = scmp.ne.s32.totalorder %s34, %s50
    %p52 = scmp.eq.s32.totalorder %s26, 0
    %p53 = por %p51, %p52
    %s55 = sadd.s32 %s54, 1
    %p58 = scmp.eq.s32.totalorder %s20, 1
    %p59 = scmp.ne.s32.totalorder %s54, %s56
    %p60 = scmp.eq.s32.totalorder %s20, 0
    %p61 = por %p59, %p60
    %p62 = scmp.ne.s32.totalorder %s54, %s56
    %p63 = scmp.eq.s32.totalorder %s25, 1
    %p64 = por %p62, %p63
    %p65 = scmp.ne.s32.totalorder %s56, %s57
    %p66 = scmp.eq.s32.totalorder %s25, 0
    %p67 = por %p65, %p66
    %p68 = scmp.ne.s32.totalorder %s56, %s57
    %p69 = scmp.eq.s32.totalorder %s26, 1
    %p70 = por %p68, %p69
    %p72 = scmp.ne.s32.totalorder %s57, %s71
    %p73 = scmp.eq.s32.totalorder %s26, 0
    %p74 = por %p72, %p73
    %s76 = sadd.s32 %s75, 1
    %p79 = scmp.eq.s32.totalorder %s20, 1
    %p80 = scmp.ne.s32.totalorder %s75, %s77
    %p81 = scmp.eq.s32.totalorder %s20, 0
    %p82 = por %p80, %p81
    %p83 = scmp.ne.s32.totalorder %s75, %s77
    %p84 = scmp.eq.s32.totalorder %s25, 1
    %p85 = por %p83, %p84
    %p86 = scmp.ne.s32.totalorder %s77, %s78
    %p87 = scmp.eq.s32.totalorder %s25, 0
    %p88 = por %p86, %p87
    %p89 = scmp.ne.s32.totalorder %s77, %s78
    %p90 = scmp.eq.s32.totalorder %s26, 1
    %p91 = por %p89, %p90
    %p93 = scmp.ne.s32.totalorder %s78, %s92
    %p94 = scmp.eq.s32.totalorder %s26, 0
    %p95 = por %p93, %p94
    %s97 = sadd.s32 %s96, 1
    %p100 = scmp.eq.s32.totalorder %s20, 1
    %p101 = scmp.ne.s32.totalorder %s96, %s98
    %p102 = scmp.eq.s32.totalorder %s20, 0
    %p103 = por %p101, %p102
    %p104 = scmp.ne.s32.totalorder %s96, %s98
    %p105 = scmp.eq.s32.totalorder %s25, 1
    %p106 = por %p104, %p105
    %p107 = scmp.ne.s32.totalorder %s98, %s99
    %p108 = scmp.eq.s32.totalorder %s25, 0
    %p109 = por %p107, %p108
    %p110 = scmp.ne.s32.totalorder %s98, %s99
    %p111 = scmp.eq.s32.totalorder %s26, 1
    %p112 = por %p110, %p111
    %p114 = scmp.ne.s32.totalorder %s99, %s113
    %p115 = scmp.eq.s32.totalorder %s26, 0
    %p116 = por %p114, %p115
    %s118 = sadd.s32 %s117, 1
    %p121 = scmp.eq.s32.totalorder %s20, 1
    %p122 = scmp.ne.s32.totalorder %s117, %s119
    %p123 = scmp.eq.s32.totalorder %s20, 0
    %p124 = por %p122, %p123
    %p125 = scmp.ne.s32.totalorder %s117, %s119
    %p126 = scmp.eq.s32.totalorder %s25, 1
    %p127 = por %p125, %p126
    %p128 = scmp.ne.s32.totalorder %s119, %s120
    %p129 = scmp.eq.s32.totalorder %s25, 0
    %p130 = por %p128, %p129
    %p131 = scmp.ne.s32.totalorder %s119, %s120
    %p132 = scmp.eq.s32.totalorder %s26, 1
    %p133 = por %p131, %p132
    %p135 = scmp.ne.s32.totalorder %s120, %s134
    %p136 = scmp.eq.s32.totalorder %s26, 0
    %p137 = por %p135, %p136
    %s139 = sadd.s32 %s138, 1
    %p142 = scmp.eq.s32.totalorder %s20, 1
    %p143 = scmp.ne.s32.totalorder %s138, %s140
    %p144 = scmp.eq.s32.totalorder %s20, 0
    %p145 = por %p143, %p144
    %p146 = scmp.ne.s32.totalorder %s138, %s140
    %p147 = scmp.eq.s32.totalorder %s25, 1
    %p148 = por %p146, %p147
    %p149 = scmp.ne.s32.totalorder %s140, %s141
    %p150 = scmp.eq.s32.totalorder %s25, 0
    %p151 = por %p149, %p150
    %p152 = scmp.ne.s32.totalorder %s140, %s141
    %p153 = scmp.eq.s32.totalorder %s26, 1
    %p154 = por %p152, %p153
    %p156 = scmp.ne.s32.totalorder %s141, %s155
    %p157 = scmp.eq.s32.totalorder %s26, 0
    %p158 = por %p156, %p157
    %s160 = sadd.s32 %s159, 1
    %p163 = scmp.eq.s32.totalorder %s20, 1
    %p164 = scmp.ne.s32.totalorder %s159, %s161
    %p165 = scmp.eq.s32.totalorder %s20, 0
    %p166 = por %p164, %p165
    %p167 = scmp.ne.s32.totalorder %s159, %s161
    %p168 = scmp.eq.s32.totalorder %s25, 1
    %p169 = por %p167, %p168
    %p170 = scmp.ne.s32.totalorder %s161, %s162
    %p171 = scmp.eq.s32.totalorder %s25, 0
    %p172 = por %p170, %p171
    %p173 = scmp.ne.s32.totalorder %s161, %s162
    %p174 = scmp.eq.s32.totalorder %s26, 1
    %p175 = por %p173, %p174
    %p177 = scmp.ne.s32.totalorder %s162, %s176
    %p178 = scmp.eq.s32.totalorder %s26, 0
    %p179 = por %p177, %p178
    %s181 = sadd.s32 %s180, 1
    %p184 = scmp.eq.s32.totalorder %s20, 1
    %p185 = scmp.ne.s32.totalorder %s180, %s182
    %p186 = scmp.eq.s32.totalorder %s20, 0
    %p187 = por %p185, %p186
    %p188 = scmp.ne.s32.totalorder %s180, %s182
    %p189 = scmp.eq.s32.totalorder %s25, 1
    %p190 = por %p188, %p189
    %p191 = scmp.ne.s32.totalorder %s182, %s183
    %p192 = scmp.eq.s32.totalorder %s25, 0
    %p193 = por %p191, %p192
    %p194 = scmp.ne.s32.totalorder %s182, %s183
    %p195 = scmp.eq.s32.totalorder %s26, 1
    %p196 = por %p194, %p195
    %p198 = scmp.ne.s32.totalorder %s183, %s197
    %p199 = scmp.eq.s32.totalorder %s26, 0
    %p200 = por %p198, %p199
    %s202 = sadd.s32 %s201, 1
    %p205 = scmp.eq.s32.totalorder %s20, 1
    %p206 = scmp.ne.s32.totalorder %s201, %s203
    %p207 = scmp.eq.s32.totalorder %s20, 0
    %p208 = por %p206, %p207
    %p209 = scmp.ne.s32.totalorder %s201, %s203
    %p210 = scmp.eq.s32.totalorder %s25, 1
    %p211 = por %p209, %p210
    %p212 = scmp.ne.s32.totalorder %s203, %s204
    %p213 = scmp.eq.s32.totalorder %s25, 0
    %p214 = por %p212, %p213
    %p215 = scmp.ne.s32.totalorder %s203, %s204
    %p216 = scmp.eq.s32.totalorder %s26, 1
    %p217 = por %p215, %p216
    %p219 = scmp.ne.s32.totalorder %s204, %s218
    %p220 = scmp.eq.s32.totalorder %s26, 0
    %p221 = por %p219, %p220
    %s223 = sadd.s32 %s222, 1
    %p226 = scmp.eq.s32.totalorder %s20, 1
    %p227 = scmp.ne.s32.totalorder %s222, %s224
    %p228 = scmp.eq.s32.totalorder %s20, 0
    %p229 = por %p227, %p228
    %p230 = scmp.ne.s32.totalorder %s222, %s224
    %p231 = scmp.eq.s32.totalorder %s25, 1
    %p232 = por %p230, %p231
    %p233 = scmp.ne.s32.totalorder %s224, %s225
    %p234 = scmp.eq.s32.totalorder %s25, 0
    %p235 = por %p233, %p234
    %p236 = scmp.ne.s32.totalorder %s224, %s225
    %p237 = scmp.eq.s32.totalorder %s26, 1
    %p238 = por %p236, %p237
    %p240 = scmp.ne.s32.totalorder %s225, %s239
    %p241 = scmp.eq.s32.totalorder %s26, 0
    %p242 = por %p240, %p241
    %s244 = sadd.s32 %s243, 1
    %p247 = scmp.eq.s32.totalorder %s20, 1
    %p248 = scmp.ne.s32.totalorder %s243, %s245
    %p249 = scmp.eq.s32.totalorder %s20, 0
    %p250 = por %p248, %p249
    %p251 = scmp.ne.s32.totalorder %s243, %s245
    %p252 = scmp.eq.s32.totalorder %s25, 1
    %p253 = por %p251, %p252
    %p254 = scmp.ne.s32.totalorder %s245, %s246
    %p255 = scmp.eq.s32.totalorder %s25, 0
    %p256 = por %p254, %p255
    %p257 = scmp.ne.s32.totalorder %s245, %s246
    %p258 = scmp.eq.s32.totalorder %s26, 1
    %p259 = por %p257, %p258
    %p261 = scmp.ne.s32.totalorder %s246, %s260
    %p262 = scmp.eq.s32.totalorder %s26, 0
    %p263 = por %p261, %p262
    %s265 = sadd.s32 %s264, 1
    %p268 = scmp.eq.s32.totalorder %s20, 1
    %p269 = scmp.ne.s32.totalorder %s264, %s266
    %p270 = scmp.eq.s32.totalorder %s20, 0
    %p271 = por %p269, %p270
    %p272 = scmp.ne.s32.totalorder %s264, %s266
    %p273 = scmp.eq.s32.totalorder %s25, 1
    %p274 = por %p272, %p273
    %p275 = scmp.ne.s32.totalorder %s266, %s267
    %p276 = scmp.eq.s32.totalorder %s25, 0
    %p277 = por %p275, %p276
    %p278 = scmp.ne.s32.totalorder %s266, %s267
    %p279 = scmp.eq.s32.totalorder %s26, 1
    %p280 = por %p278, %p279
    %p282 = scmp.ne.s32.totalorder %s267, %s281
    %p283 = scmp.eq.s32.totalorder %s26, 0
    %p284 = por %p282, %p283
    %s286 = sadd.s32 %s285, 1
    %p289 = scmp.eq.s32.totalorder %s20, 1
    %p290 = scmp.ne.s32.totalorder %s285, %s287
    %p291 = scmp.eq.s32.totalorder %s20, 0
    %p292 = por %p290, %p291
    %p293 = scmp.ne.s32.totalorder %s285, %s287
    %p294 = scmp.eq.s32.totalorder %s25, 1
    %p295 = por %p293, %p294
    %p296 = scmp.ne.s32.totalorder %s287, %s288
    %p297 = scmp.eq.s32.totalorder %s25, 0
    %p298 = por %p296, %p297
    %p299 = scmp.ne.s32.totalorder %s287, %s288
    %p300 = scmp.eq.s32.totalorder %s26, 1
    %p301 = por %p299, %p300
    %p303 = scmp.ne.s32.totalorder %s288, %s302
    %p304 = scmp.eq.s32.totalorder %s26, 0
    %p305 = por %p303, %p304
    %s307 = sadd.s32 %s306, 1
    %p310 = scmp.eq.s32.totalorder %s20, 1
    %p311 = scmp.ne.s32.totalorder %s306, %s308
    %p312 = scmp.eq.s32.totalorder %s20, 0
    %p313 = por %p311, %p312
    %p314 = scmp.ne.s32.totalorder %s306, %s308
    %p315 = scmp.eq.s32.totalorder %s25, 1
    %p316 = por %p314, %p315
    %p317 = scmp.ne.s32.totalorder %s308, %s309
    %p318 = scmp.eq.s32.totalorder %s25, 0
    %p319 = por %p317, %p318
    %p320 = scmp.ne.s32.totalorder %s308, %s309
    %p321 = scmp.eq.s32.totalorder %s26, 1
    %p322 = por %p320, %p321
    %p324 = scmp.ne.s32.totalorder %s309, %s323
    %p325 = scmp.eq.s32.totalorder %s26, 0
    %p326 = por %p324, %p325
    %s327 = ssub.s32 %s20, %s27
    %p328 = scmp.eq.s32.totalorder %s327, 0
    %s330 = sadd.s32 %s329, 1
    %s331 = scalar_select %p328, %s329, %s330
    %p334 = pneg %p328
    %p335 = scmp.eq.s32.totalorder %s20, 1
    %p336 = por %p334, %p335
    %p337 = scmp.ne.s32.totalorder %s329, %s332
    %p338 = scmp.eq.s32.totalorder %s20, 0
    %p339 = por %p337, %p338
    %p340 = scmp.ne.s32.totalorder %s329, %s332
    %p341 = scmp.eq.s32.totalorder %s25, 1
    %p342 = por %p340, %p341
    %p343 = scmp.ne.s32.totalorder %s332, %s333
    %p344 = scmp.eq.s32.totalorder %s25, 0
    %p345 = por %p343, %p344
    %p346 = scmp.ne.s32.totalorder %s332, %s333
    %p347 = scmp.eq.s32.totalorder %s26, 1
    %p348 = por %p346, %p347
    %p350 = scmp.ne.s32.totalorder %s333, %s349
    %p351 = scmp.eq.s32.totalorder %s26, 0
    %p352 = por %p350, %p351
    %p353 = scmp.le.s32.totalorder 1, %s20
    %p354 = scmp.lt.s32.totalorder %s20, 3
    %p355 = pnand %p353, %p354
    %p356 = pneg %p355
    // Predicated region
    $region9: #{model_forward_pallas.5} parent=5 // pred_check
      _
    $region10: #{model_forward_pallas.5} parent=5 // pred_check_branch
      %358 = sbr.rel (%p355) target = $region12
    $region11: #{model_forward_pallas.5} parent=5 // pred_region
      %s359 = ssub.s32 %s20, 1
      // Predicated region
      $region13: #{model_forward_pallas.5} parent=11 // pred_check
        %p360 = pneg %p67
      $region14: #{model_forward_pallas.5} parent=11 // pred_check_branch
        %362 = sbr.rel (%p360) target = $region16
      $region15: #{model_forward_pallas.5} parent=11 // pred_region
        _
      $region16: #{model_forward_pallas.5} parent=11 // pred_fallthru
        _
      // Predicated region
      $region17: #{model_forward_pallas.5} parent=11 // pred_check
        %p363 = pneg %p88
      $region18: #{model_forward_pallas.5} parent=11 // pred_check_branch
        %365 = sbr.rel (%p363) target = $region20
      $region19: #{model_forward_pallas.5} parent=11 // pred_region
        _
      $region20: #{model_forward_pallas.5} parent=11 // pred_fallthru
        _
      // Predicated region
      $region21: #{model_forward_pallas.5} parent=11 // pred_check
        %p366 = pneg %p109
      $region22: #{model_forward_pallas.5} parent=11 // pred_check_branch
        %368 = sbr.rel (%p366) target = $region24
      $region23: #{model_forward_pallas.5} parent=11 // pred_region
        _
      $region24: #{model_forward_pallas.5} parent=11 // pred_fallthru
        _
      // Predicated region
      $region25: #{model_forward_pallas.5} parent=11 // pred_check
        %p369 = pneg %p130
      $region26: #{model_forward_pallas.5} parent=11 // pred_check_branch
        %371 = sbr.rel (%p369) target = $region28
      $region27: #{model_forward_pallas.5} parent=11 // pred_region
        _
      $region28: #{model_forward_pallas.5} parent=11 // pred_fallthru
        _
      // Predicated region
      $region29: #{model_forward_pallas.5} parent=11 // pred_check
        %p372 = pneg %p151
      $region30: #{model_forward_pallas.5} parent=11 // pred_check_branch
        %374 = sbr.rel (%p372) target = $region32
      $region31: #{model_forward_pallas.5} parent=11 // pred_region
        _
      $region32: #{model_forward_pallas.5} parent=11 // pred_fallthru
        _
      // Predicated region
      $region33: #{model_forward_pallas.5} parent=11 // pred_check
        %p375 = pneg %p172
      $region34: #{model_forward_pallas.5} parent=11 // pred_check_branch
        %377 = sbr.rel (%p375) target = $region36
      $region35: #{model_forward_pallas.5} parent=11 // pred_region
        _
      $region36: #{model_forward_pallas.5} parent=11 // pred_fallthru
        _
      // Predicated region
      $region37: #{model_forward_pallas.5} parent=11 // pred_check
        %p378 = pneg %p193
      $region38: #{model_forward_pallas.5} parent=11 // pred_check_branch
        %380 = sbr.rel (%p378) target = $region40
      $region39: #{model_forward_pallas.5} parent=11 // pred_region
        _
      $region40: #{model_forward_pallas.5} parent=11 // pred_fallthru
        _
      // Predicated region
      $region41: #{model_forward_pallas.5} parent=11 // pred_check
        %p381 = pneg %p214
      $region42: #{model_forward_pallas.5} parent=11 // pred_check_branch
        %383 = sbr.rel (%p381) target = $region44
      $region43: #{model_forward_pallas.5} parent=11 // pred_region
        _
      $region44: #{model_forward_pallas.5} parent=11 // pred_fallthru
        _
      // Predicated region
      $region45: #{model_forward_pallas.5} parent=11 // pred_check
        %p384 = pneg %p235
      $region46: #{model_forward_pallas.5} parent=11 // pred_check_branch
        %386 = sbr.rel (%p384) target = $region48
      $region47: #{model_forward_pallas.5} parent=11 // pred_region
        _
      $region48: #{model_forward_pallas.5} parent=11 // pred_fallthru
        _
      // Predicated region
      $region49: #{model_forward_pallas.5} parent=11 // pred_check
        %p387 = pneg %p256
      $region50: #{model_forward_pallas.5} parent=11 // pred_check_branch
        %389 = sbr.rel (%p387) target = $region52
      $region51: #{model_forward_pallas.5} parent=11 // pred_region
        _
      $region52: #{model_forward_pallas.5} parent=11 // pred_fallthru
        _
      // Predicated region
      $region53: #{model_forward_pallas.5} parent=11 // pred_check
        %p390 = pneg %p277
      $region54: #{model_forward_pallas.5} parent=11 // pred_check_branch
        %392 = sbr.rel (%p390) target = $region56
      $region55: #{model_forward_pallas.5} parent=11 // pred_region
        _
      $region56: #{model_forward_pallas.5} parent=11 // pred_fallthru
        _
      // Predicated region
      $region57: #{model_forward_pallas.5} parent=11 // pred_check
        %p393 = pneg %p298
      $region58: #{model_forward_pallas.5} parent=11 // pred_check_branch
        %395 = sbr.rel (%p393) target = $region60
      $region59: #{model_forward_pallas.5} parent=11 // pred_region
        _
      $region60: #{model_forward_pallas.5} parent=11 // pred_fallthru
        _
      // Predicated region
      $region61: #{model_forward_pallas.5} parent=11 // pred_check
        %p396 = pneg %p319
      $region62: #{model_forward_pallas.5} parent=11 // pred_check_branch
        %398 = sbr.rel (%p396) target = $region64
      $region63: #{model_forward_pallas.5} parent=11 // pred_region
        _
      $region64: #{model_forward_pallas.5} parent=11 // pred_fallthru
        _
    $region12: #{model_forward_pallas.5} parent=5 // pred_fallthru
      _
    %p399 = scmp.lt.s32.totalorder %s20, 2
    // Predicated region
    $region65: #{model_forward_pallas.5} parent=5 // pred_check
      %p400 = pneg %p399
    $region66: #{model_forward_pallas.5} parent=5 // pred_check_branch
      %402 = sbr.rel (%p400) target = $region68
    $region67: #{model_forward_pallas.5} parent=5 // pred_region
      // Predicated region
      $region69: #{model_forward_pallas.5} parent=67 // pred_check
        %p403 = pneg %p40
      $region70: #{model_forward_pallas.5} parent=67 // pred_check_branch
        %405 = sbr.rel (%p403) target = $region72
      $region71: #{model_forward_pallas.5} parent=67 // pred_region
        %p406 = scmp.lt.s32.totalorder %s20, 1
        %s407 = scalar_select %p406, %s20, 1
        %s408 = smul.addr %s407, 16
        %s409 = smul.addr %s408, 8
        %s410 = scalar_lea.vmem %s0, %s409
      $region72: #{model_forward_pallas.5} parent=67 // pred_fallthru
        _
    $region68: #{model_forward_pallas.5} parent=5 // pred_fallthru
      _
    %p411 = scmp.le.s32.totalorder 1, %s20
    %p412 = scmp.lt.s32.totalorder %s20, 3
    %p413 = pnand %p411, %p412
    %p414 = pneg %p413
    // Predicated region
    $region73: #{model_forward_pallas.5} parent=5 // pred_check
      _
    $region74: #{model_forward_pallas.5} parent=5 // pred_check_branch
      %416 = sbr.rel (%p413) target = $region76
    $region75: #{model_forward_pallas.5} parent=5 // pred_region
      %s417 = ssub.s32 %s20, 1
      %p418 = scmp.lt.s32.totalorder %s25, 1
      %s419 = scalar_select %p418, %s25, 1
      %s420 = smul.addr %s419, 16
      %s421 = smul.addr %s420, 8
      %s422 = scalar_lea.vmem %s0, %s421
      %p423 = pneg %p46
      %p424 = pneg %p43
      %p425 = pneg %p67
      %p426 = pneg %p64
      %p427 = pneg %p88
      %p428 = pneg %p85
      %p429 = pneg %p109
      %p430 = pneg %p106
      %p431 = pneg %p130
      %p432 = pneg %p127
      %p433 = pneg %p151
      %p434 = pneg %p148
      %p435 = pneg %p172
      %p436 = pneg %p169
      %p437 = pneg %p193
      %p438 = pneg %p190
      %p439 = pneg %p214
      %p440 = pneg %p211
      %p441 = pneg %p235
      %p442 = pneg %p232
      %p443 = pneg %p256
      %p444 = pneg %p253
      %p445 = pneg %p277
      %p446 = pneg %p274
      %p447 = pneg %p298
      %p448 = pneg %p295
      %p449 = pneg %p319
      %p450 = pneg %p316
      %p451 = pneg %p345
      %p452 = pneg %p342
      %p453 = scmp.lt.s32.totalorder %s25, 1
      %s454 = scalar_select %p453, %s25, 1
      %s455 = smul.addr %s454, 2
      %s456 = smul.addr %s455, 8
      %s457 = scalar_lea.vmem %s14, %s456
      %p458 = scmp.lt.s32.totalorder %s25, 1
      %s459 = scalar_select %p458, %s25, 1
      %s460 = smul.addr %s459, 16
      %s461 = smul.addr %s460, 8
      %s462 = scalar_lea.vmem %s0, %s461
      %p463 = scmp.lt.s32.totalorder %s25, 1
      %s464 = scalar_select %p463, %s25, 1
      %s465 = smul.addr %s464, 2
      %s466 = smul.addr %s465, 8
      %s467 = scalar_lea.vmem %s14, %s466
      %v468 = vld [vmem:[%s462] sm:$0xff]
      %v469 = vld [vmem:[%s462 + $0x8] sm:$0xff]
      %v470 = vld [vmem:[%s462 + $0x10] sm:$0xff]
      %v471 = vld [vmem:[%s462 + $0x18] sm:$0xff]
      %v472 = vld [vmem:[%s462 + $0x20] sm:$0xff]
      %v473 = vld [vmem:[%s462 + $0x28] sm:$0xff]
      %v474 = vld [vmem:[%s462 + $0x30] sm:$0xff]
      %v475 = vld [vmem:[%s462 + $0x38] sm:$0xff]
      %v476 = vld [vmem:[%s462 + $0x40] sm:$0xff]
      %v477 = vld [vmem:[%s462 + $0x48] sm:$0xff]
      %v478 = vld [vmem:[%s462 + $0x50] sm:$0xff]
      %v479 = vld [vmem:[%s462 + $0x58] sm:$0xff]
      %v480 = vld [vmem:[%s462 + $0x60] sm:$0xff]
      %v481 = vld [vmem:[%s462 + $0x68] sm:$0xff]
      %v482 = vld [vmem:[%s462 + $0x70] sm:$0xff]
      %v483 = vld [vmem:[%s462 + $0x78] sm:$0xff]
      %v484 = vld [vmem:[%s1] sm:$0xff]
      %v485 = vld [vmem:[%s1 + $0x8] sm:$0xff]
      %v486 = vld [vmem:[%s2] sm:$0xff]
      %v487 = vld [vmem:[%s2 + $0x8] sm:$0xff]
      %489 = vset.pattern.permute.xlu0 0
      %490 = vperm.xlu0 %489, %v486
      %v491 = vpop.permute.xlu0 %490
      %494 = vset.pattern.permute.xlu0 0
      %495 = vperm.xlu0 %494, %v487
      %v496 = vpop.permute.xlu0 %495
      %498 = vmatprep.subr.mxu0 0.0
      %499 = vmatpush1.msra.mxu0 %v468
      %500 = vmatprep.subr.mxu0 0.0
      %501 = vmatpush1.msra.mxu0 %v469
      %502 = vmatprep.subr.mxu0 0.0
      %503 = vmatpush1.msra.mxu0 %v470
      %504 = vmatprep.subr.mxu0 0.0
      %505 = vmatpush1.msra.mxu0 %v471
      %506 = vmatprep.subr.mxu0 0.0
      %507 = vmatpush1.msra.mxu0 %v472
      %508 = vmatprep.subr.mxu0 0.0
      %509 = vmatpush1.msra.mxu0 %v473
      %510 = vmatprep.subr.mxu0 0.0
      %511 = vmatpush1.msra.mxu0 %v474
      %512 = vmatprep.subr.mxu0 0.0
      %513 = vmatpush1.msra.mxu0 %v475
      %514 = vmatprep.subr.mxu0 0.0
      %515 = vmatpush1.msra.mxu0 %v476
      %516 = vmatprep.subr.mxu0 0.0
      %517 = vmatpush1.msra.mxu0 %v477
      %518 = vmatprep.subr.mxu0 0.0
      %519 = vmatpush1.msra.mxu0 %v478
      %520 = vmatprep.subr.mxu0 0.0
      %521 = vmatpush1.msra.mxu0 %v479
      %522 = vmatprep.subr.mxu0 0.0
      %523 = vmatpush1.msra.mxu0 %v480
      %524 = vmatprep.subr.mxu0 0.0
      %525 = vmatpush1.msra.mxu0 %v481
      %526 = vmatprep.subr.mxu0 0.0
      %527 = vmatpush1.msra.mxu0 %v482
      %528 = vmatprep.subr.mxu0 0.0
      %529 = vmatpush1.msra.mxu0 %v483
      %530 = vmatprep.subr.mxu0 0.0
      %531 = vmatpush1.msra.mxu0 0.0
      %532 = vmatprep.subr.mxu0 0.0
      %533 = vmatpush1.msra.mxu0 0.0
      %534 = vmatprep.subr.mxu0 0.0
      %535 = vmatpush1.msra.mxu0 0.0
      %536 = vmatprep.subr.mxu0 0.0
      %537 = vmatpush1.msra.mxu0 0.0
      %538 = vmatprep.subr.mxu0 0.0
      %539 = vmatpush1.msra.mxu0 0.0
      %540 = vmatprep.subr.mxu0 0.0
      %541 = vmatpush1.msra.mxu0 0.0
      %542 = vmatprep.subr.mxu0 0.0
      %543 = vmatpush1.msra.mxu0 0.0
      %544 = vmatprep.subr.mxu0 0.0
      %545 = vmatpush1.msra.mxu0 0.0
      %546 = vmatprep.subr.mxu0 0.0
      %547 = vmatpush1.msra.mxu0 0.0
      %548 = vmatprep.subr.mxu0 0.0
      %549 = vmatpush1.msra.mxu0 0.0
      %550 = vmatprep.subr.mxu0 0.0
      %551 = vmatpush1.msra.mxu0 0.0
      %552 = vmatprep.subr.mxu0 0.0
      %553 = vmatpush1.msra.mxu0 0.0
      %554 = vmatprep.subr.mxu0 0.0
      %555 = vmatpush1.msra.mxu0 0.0
      %556 = vmatprep.subr.mxu0 0.0
      %557 = vmatpush1.msra.mxu0 0.0
      %558 = vmatprep.subr.mxu0 0.0
      %559 = vmatpush1.msra.mxu0 0.0
      %560 = vmatprep.subr.mxu0 0.0
      %561 = vmatpush1.msra.mxu0 0.0
      %562 = vmatprep.mubr.f32.mxu0 0.0
      %563 = vmatmul.mubr.f32.gmra.mrb[0].mxu0 %v484
      %v564 = vpop.f32.mrb[0].mxu0
      %v565 = vadd.f32 %v491, %v564
      %v566 = vpop.f32.mrb[0].mxu0
      %567 = vmatprep.mubr.f32.mxu0 0.0
      %568 = vmatmul.mubr.f32.gmra.mrb[0].mxu0 %v485
      %v569 = vpop.f32.mrb[0].mxu0
      %v570 = vadd.f32 %v496, %v569
      %v571 = vpop.f32.mrb[0].mxu0
      %572 = vdwg.mxu0
      %v573 = vmax.f32 %v565, 0.0
      %v574 = vmax.f32 %v570, 0.0
      %vm575 = vcmask 15360
      %576 = vst.msk [vmem:[#allocation2] sm:$0xff] %vm575, 0.0
      %577 = vst.msk [vmem:[#allocation2 + $0x8] sm:$0xff] %vm575, 0.0
      %vm578 = vcmask 97360
      %579 = vst.msk [vmem:[#allocation2] sm:$0xff] %vm578, 0.0
      %580 = vst.msk [vmem:[#allocation2 + $0x8] sm:$0xff] %vm578, 0.0
      %583 = vrot.lane.b32.xlu0 %v573, 2
      %v584 = vpop.permute.xlu0 %583
      %585 = vrot.lane.b32.xlu0 %v574, 2
      %v586 = vpop.permute.xlu0 %585
      %vm589 = vcmask 80912
      %590 = vst.msk [vmem:[#allocation2] sm:$0xff] %vm589, %v584
      %591 = vst.msk [vmem:[#allocation2 + $0x8] sm:$0xff] %vm589, %v586
      %v592 = vld [vmem:[%s3] sm:$0xff]
      %v593 = vld [vmem:[%s3 + $0x8] sm:$0xff]
      %v594 = vld [vmem:[#allocation2] sm:$0xff]
      %v595 = vld [vmem:[#allocation2 + $0x8] sm:$0xff]
      %597 = vset.pattern.permute.xlu0 0
      %598 = vperm.xlu0 %597, %v592
      %v599 = vpop.permute.xlu0 %598
      %602 = vset.pattern.permute.xlu0 0
      %603 = vperm.xlu0 %602, %v593
      %v604 = vpop.permute.xlu0 %603
      %v606 = vmul.f32 %v599, %v594
      %v607 = vmul.f32 %v604, %v595
      %608 = vset.pattern.permute.xlu0 1
      %609 = vperm.xlu0 %608, %v592
      %v610 = vpop.permute.xlu0 %609
      %612 = vset.pattern.permute.xlu0 1
      %613 = vperm.xlu0 %612, %v593
      %v614 = vpop.permute.xlu0 %613
      %v616 = vmul.f32 %v610, %v594
      %v617 = vmul.f32 %v614, %v595
      %620 = vrot.lane.b32.xlu0 %v616, 127
      %v621 = vpop.permute.xlu0 %620
      %622 = vrot.lane.b32.xlu0 %v617, 127
      %v623 = vpop.permute.xlu0 %622
      %v626 = vadd.f32 %v606, %v621
      %v627 = vadd.f32 %v607, %v623
      %628 = vset.pattern.permute.xlu0 2
      %629 = vperm.xlu0 %628, %v592
      %v630 = vpop.permute.xlu0 %629
      %632 = vset.pattern.permute.xlu0 2
      %633 = vperm.xlu0 %632, %v593
      %v634 = vpop.permute.xlu0 %633
      %v636 = vmul.f32 %v630, %v594
      %v637 = vmul.f32 %v634, %v595
      %640 = vrot.lane.b32.xlu0 %v636, 126
      %v641 = vpop.permute.xlu0 %640
      %642 = vrot.lane.b32.xlu0 %v637, 126
      %v643 = vpop.permute.xlu0 %642
      %v646 = vadd.f32 %v626, %v641
      %v647 = vadd.f32 %v627, %v643
      %648 = vset.pattern.permute.xlu0 3
      %649 = vperm.xlu0 %648, %v592
      %v650 = vpop.permute.xlu0 %649
      %652 = vset.pattern.permute.xlu0 3
      %653 = vperm.xlu0 %652, %v593
      %v654 = vpop.permute.xlu0 %653
      %v656 = vmul.f32 %v650, %v594
      %v657 = vmul.f32 %v654, %v595
      %660 = vrot.lane.b32.xlu0 %v656, 125
      %v661 = vpop.permute.xlu0 %660
      %662 = vrot.lane.b32.xlu0 %v657, 125
      %v663 = vpop.permute.xlu0 %662
      %v666 = vadd.f32 %v646, %v661
      %v667 = vadd.f32 %v647, %v663
      %668 = vset.pattern.permute.xlu0 4
      %669 = vperm.xlu0 %668, %v592
      %v670 = vpop.permute.xlu0 %669
      %672 = vset.pattern.permute.xlu0 4
      %673 = vperm.xlu0 %672, %v593
      %v674 = vpop.permute.xlu0 %673
      %v676 = vmul.f32 %v670, %v594
      %v677 = vmul.f32 %v674, %v595
      %680 = vrot.lane.b32.xlu0 %v676, 124
      %v681 = vpop.permute.xlu0 %680
      %682 = vrot.lane.b32.xlu0 %v677, 124
      %v683 = vpop.permute.xlu0 %682
      %v686 = vadd.f32 %v666, %v681
      %v687 = vadd.f32 %v667, %v683
      %v688 = vld [vmem:[%s4] sm:$0xff]
      %v689 = vld [vmem:[%s4 + $0x8] sm:$0xff]
      %691 = vset.pattern.permute.xlu0 0
      %692 = vperm.xlu0 %691, %v688
      %v693 = vpop.permute.xlu0 %692
      %696 = vset.pattern.permute.xlu0 0
      %697 = vperm.xlu0 %696, %v689
      %v698 = vpop.permute.xlu0 %697
      %v700 = vmul.f32 %v686, %v693
      %v701 = vmul.f32 %v687, %v698
      %v702 = vld [vmem:[%s5] sm:$0xff]
      %v703 = vld [vmem:[%s5 + $0x8] sm:$0xff]
      %705 = vset.pattern.permute.xlu0 0
      %706 = vperm.xlu0 %705, %v702
      %v707 = vpop.permute.xlu0 %706
      %710 = vset.pattern.permute.xlu0 0
      %711 = vperm.xlu0 %710, %v703
      %v712 = vpop.permute.xlu0 %711
      %v714 = vadd.f32 %v700, %v707
      %v715 = vadd.f32 %v701, %v712
      %v716 = vmax.f32 %v714, 0.0
      %v717 = vmax.f32 %v715, 0.0
      %v718 = vadd.f32 %v716, %v573
      %v719 = vadd.f32 %v717, %v574
      %v720 = vld [vmem:[%s6] sm:$0xff]
      %v721 = vld [vmem:[%s6 + $0x8] sm:$0xff]
      %v722 = vld [vmem:[%s6 + $0x10] sm:$0xff]
      %v723 = vld [vmem:[%s6 + $0x18] sm:$0xff]
      %vm724 = vcmask 130048
      %v726 = vsel %vm724, %v720, 0
      %v729 = vsel %vm724, %v721, 0
      %v732 = vsel %vm724, %v722, 0
      %v735 = vsel %vm724, %v723, 0
      %737 = vmatprep.subr.mxu0 0.0
      %738 = vmatpush1.msra.mxu0 %v718
      %739 = vmatprep.subr.mxu0 0.0
      %740 = vmatpush1.msra.mxu0 %v719
      %741 = vmatprep.subr.mxu0 0.0
      %742 = vmatpush1.msra.mxu0 0.0
      %743 = vmatprep.subr.mxu0 0.0
      %744 = vmatpush1.msra.mxu0 0.0
      %745 = vmatprep.subr.mxu0 0.0
      %746 = vmatpush1.msra.mxu0 0.0
      %747 = vmatprep.subr.mxu0 0.0
      %748 = vmatpush1.msra.mxu0 0.0
      %749 = vmatprep.subr.mxu0 0.0
      %750 = vmatpush1.msra.mxu0 0.0
      %751 = vmatprep.subr.mxu0 0.0
      %752 = vmatpush1.msra.mxu0 0.0
      %753 = vmatprep.subr.mxu0 0.0
      %754 = vmatpush1.msra.mxu0 0.0
      %755 = vmatprep.subr.mxu0 0.0
      %756 = vmatpush1.msra.mxu0 0.0
      %757 = vmatprep.subr.mxu0 0.0
      %758 = vmatpush1.msra.mxu0 0.0
      %759 = vmatprep.subr.mxu0 0.0
      %760 = vmatpush1.msra.mxu0 0.0
      %761 = vmatprep.subr.mxu0 0.0
      %762 = vmatpush1.msra.mxu0 0.0
      %763 = vmatprep.subr.mxu0 0.0
      %764 = vmatpush1.msra.mxu0 0.0
      %765 = vmatprep.subr.mxu0 0.0
      %766 = vmatpush1.msra.mxu0 0.0
      %767 = vmatprep.subr.mxu0 0.0
      %768 = vmatpush1.msra.mxu0 0.0
      %769 = vmatprep.subr.mxu0 0.0
      %770 = vmatpush1.msra.mxu0 0.0
      %771 = vmatprep.subr.mxu0 0.0
      %772 = vmatpush1.msra.mxu0 0.0
      %773 = vmatprep.subr.mxu0 0.0
      %774 = vmatpush1.msra.mxu0 0.0
      %775 = vmatprep.subr.mxu0 0.0
      %776 = vmatpush1.msra.mxu0 0.0
      %777 = vmatprep.subr.mxu0 0.0
      %778 = vmatpush1.msra.mxu0 0.0
      %779 = vmatprep.subr.mxu0 0.0
      %780 = vmatpush1.msra.mxu0 0.0
      %781 = vmatprep.subr.mxu0 0.0
      %782 = vmatpush1.msra.mxu0 0.0
      %783 = vmatprep.subr.mxu0 0.0
      %784 = vmatpush1.msra.mxu0 0.0
      %785 = vmatprep.subr.mxu0 0.0
      %786 = vmatpush1.msra.mxu0 0.0
      %787 = vmatprep.subr.mxu0 0.0
      %788 = vmatpush1.msra.mxu0 0.0
      %789 = vmatprep.subr.mxu0 0.0
      %790 = vmatpush1.msra.mxu0 0.0
      %791 = vmatprep.subr.mxu0 0.0
      %792 = vmatpush1.msra.mxu0 0.0
      %793 = vmatprep.subr.mxu0 0.0
      %794 = vmatpush1.msra.mxu0 0.0
      %795 = vmatprep.subr.mxu0 0.0
      %796 = vmatpush1.msra.mxu0 0.0
      %797 = vmatprep.subr.mxu0 0.0
      %798 = vmatpush1.msra.mxu0 0.0
      %799 = vmatprep.subr.mxu0 0.0
      %800 = vmatpush1.msra.mxu0 0.0
      %801 = vmatprep.mubr.f32.mxu0 0.0
      %802 = vmatmul.mubr.f32.gmra.mrb[0].mxu0 %v726
      %v803 = vpop.f32.mrb[0].mxu0
      %v804 = vadd.f32 0.0, %v803
      %v805 = vpop.f32.mrb[0].mxu0
      %806 = vmatprep.mubr.f32.mxu0 0.0
      %807 = vmatmul.mubr.f32.gmra.mrb[0].mxu0 %v729
      %v808 = vpop.f32.mrb[0].mxu0
      %v809 = vadd.f32 0.0, %v808
      %v810 = vpop.f32.mrb[0].mxu0
      %811 = vmatprep.mubr.f32.mxu0 0.0
      %812 = vmatmul.mubr.f32.gmra.mrb[0].mxu0 %v732
      %v813 = vpop.f32.mrb[0].mxu0
      %v814 = vadd.f32 0.0, %v813
      %v815 = vpop.f32.mrb[0].mxu0
      %816 = vmatprep.mubr.f32.mxu0 0.0
      %817 = vmatmul.mubr.f32.gmra.mrb[0].mxu0 %v735
      %v818 = vpop.f32.mrb[0].mxu0
      %v819 = vadd.f32 0.0, %v818
      %v820 = vpop.f32.mrb[0].mxu0
      %821 = vdwg.mxu0
      %v822 = vld [vmem:[%s7] sm:$0xff]
      %v823 = vld [vmem:[%s7 + $0x8] sm:$0xff]
      %v824 = vld [vmem:[%s7 + $0x10] sm:$0xff]
      %v825 = vld [vmem:[%s7 + $0x18] sm:$0xff]
      %827 = vset.pattern.permute.xlu0 0
      %828 = vperm.xlu0 %827, %v822
      %v829 = vpop.permute.xlu0 %828
      %832 = vset.pattern.permute.xlu0 0
      %833 = vperm.xlu0 %832, %v823
      %v834 = vpop.permute.xlu0 %833
      %837 = vset.pattern.permute.xlu0 0
      %838 = vperm.xlu0 %837, %v824
      %v839 = vpop.permute.xlu0 %838
      %842 = vset.pattern.permute.xlu0 0
      %843 = vperm.xlu0 %842, %v825
      %v844 = vpop.permute.xlu0 %843
      %v846 = vmul.f32 %v804, %v829
      %v847 = vmul.f32 %v809, %v834
      %v848 = vmul.f32 %v814, %v839
      %v849 = vmul.f32 %v819, %v844
      %v850 = vld [vmem:[%s8] sm:$0xff]
      %v851 = vld [vmem:[%s8 + $0x8] sm:$0xff]
      %v852 = vld [vmem:[%s8 + $0x10] sm:$0xff]
      %v853 = vld [vmem:[%s8 + $0x18] sm:$0xff]
      %855 = vset.pattern.permute.xlu0 0
      %856 = vperm.xlu0 %855, %v850
      %v857 = vpop.permute.xlu0 %856
      %860 = vset.pattern.permute.xlu0 0
      %861 = vperm.xlu0 %860, %v851
      %v862 = vpop.permute.xlu0 %861
      %865 = vset.pattern.permute.xlu0 0
      %866 = vperm.xlu0 %865, %v852
      %v867 = vpop.permute.xlu0 %866
      %870 = vset.pattern.permute.xlu0 0
      %871 = vperm.xlu0 %870, %v853
      %v872 = vpop.permute.xlu0 %871
      %v874 = vadd.f32 %v846, %v857
      %v875 = vadd.f32 %v847, %v862
      %v876 = vadd.f32 %v848, %v867
      %v877 = vadd.f32 %v849, %v872
      %v878 = vmax.f32 %v874, 0.0
      %v879 = vmax.f32 %v875, 0.0
      %v880 = vmax.f32 %v876, 0.0
      %v881 = vmax.f32 %v877, 0.0
      %v882 = vld [vmem:[%s9] sm:$0xff]
      %v883 = vld [vmem:[%s9 + $0x8] sm:$0xff]
      %vm884 = vcmask 261120
      %v886 = vsel %vm884, %v882, 0
      %v889 = vsel %vm884, %v883, 0
      %891 = vmatprep.subr.mxu0 0.0
      %892 = vmatpush1.msra.mxu0 %v878
      %893 = vmatprep.subr.mxu0 0.0
      %894 = vmatpush1.msra.mxu0 %v879
      %895 = vmatprep.subr.mxu0 0.0
      %896 = vmatpush1.msra.mxu0 %v880
      %897 = vmatprep.subr.mxu0 0.0
      %898 = vmatpush1.msra.mxu0 %v881
      %899 = vmatprep.subr.mxu0 0.0
      %900 = vmatpush1.msra.mxu0 0.0
      %901 = vmatprep.subr.mxu0 0.0
      %902 = vmatpush1.msra.mxu0 0.0
      %903 = vmatprep.subr.mxu0 0.0
      %904 = vmatpush1.msra.mxu0 0.0
      %905 = vmatprep.subr.mxu0 0.0
      %906 = vmatpush1.msra.mxu0 0.0
      %907 = vmatprep.subr.mxu0 0.0
      %908 = vmatpush1.msra.mxu0 0.0
      %909 = vmatprep.subr.mxu0 0.0
      %910 = vmatpush1.msra.mxu0 0.0
      %911 = vmatprep.subr.mxu0 0.0
      %912 = vmatpush1.msra.mxu0 0.0
      %913 = vmatprep.subr.mxu0 0.0
      %914 = vmatpush1.msra.mxu0 0.0
      %915 = vmatprep.subr.mxu0 0.0
      %916 = vmatpush1.msra.mxu0 0.0
      %917 = vmatprep.subr.mxu0 0.0
      %918 = vmatpush1.msra.mxu0 0.0
      %919 = vmatprep.subr.mxu0 0.0
      %920 = vmatpush1.msra.mxu0 0.0
      %921 = vmatprep.subr.mxu0 0.0
      %922 = vmatpush1.msra.mxu0 0.0
      %923 = vmatprep.subr.mxu0 0.0
      %924 = vmatpush1.msra.mxu0 0.0
      %925 = vmatprep.subr.mxu0 0.0
      %926 = vmatpush1.msra.mxu0 0.0
      %927 = vmatprep.subr.mxu0 0.0
      %928 = vmatpush1.msra.mxu0 0.0
      %929 = vmatprep.subr.mxu0 0.0
      %930 = vmatpush1.msra.mxu0 0.0
      %931 = vmatprep.subr.mxu0 0.0
      %932 = vmatpush1.msra.mxu0 0.0
      %933 = vmatprep.subr.mxu0 0.0
      %934 = vmatpush1.msra.mxu0 0.0
      %935 = vmatprep.subr.mxu0 0.0
      %936 = vmatpush1.msra.mxu0 0.0
      %937 = vmatprep.subr.mxu0 0.0
      %938 = vmatpush1.msra.mxu0 0.0
      %939 = vmatprep.subr.mxu0 0.0
      %940 = vmatpush1.msra.mxu0 0.0
      %941 = vmatprep.subr.mxu0 0.0
      %942 = vmatpush1.msra.mxu0 0.0
      %943 = vmatprep.subr.mxu0 0.0
      %944 = vmatpush1.msra.mxu0 0.0
      %945 = vmatprep.subr.mxu0 0.0
      %946 = vmatpush1.msra.mxu0 0.0
      %947 = vmatprep.subr.mxu0 0.0
      %948 = vmatpush1.msra.mxu0 0.0
      %949 = vmatprep.subr.mxu0 0.0
      %950 = vmatpush1.msra.mxu0 0.0
      %951 = vmatprep.subr.mxu0 0.0
      %952 = vmatpush1.msra.mxu0 0.0
      %953 = vmatprep.subr.mxu0 0.0
      %954 = vmatpush1.msra.mxu0 0.0
      %955 = vmatprep.mubr.f32.mxu0 0.0
      %956 = vmatmul.mubr.f32.gmra.mrb[0].mxu0 %v886
      %v957 = vpop.f32.mrb[0].mxu0
      %v958 = vadd.f32 0.0, %v957
      %v959 = vpop.f32.mrb[0].mxu0
      %960 = vmatprep.mubr.f32.mxu0 0.0
      %961 = vmatmul.mubr.f32.gmra.mrb[0].mxu0 %v889
      %v962 = vpop.f32.mrb[0].mxu0
      %v963 = vadd.f32 0.0, %v962
      %v964 = vpop.f32.mrb[0].mxu0
      %965 = vdwg.mxu0
      %v966 = vld [vmem:[%s10] sm:$0xff]
      %v967 = vld [vmem:[%s10 + $0x8] sm:$0xff]
      %969 = vset.pattern.permute.xlu0 0
      %970 = vperm.xlu0 %969, %v966
      %v971 = vpop.permute.xlu0 %970
      %974 = vset.pattern.permute.xlu0 0
      %975 = vperm.xlu0 %974, %v967
      %v976 = vpop.permute.xlu0 %975
      %v978 = vmul.f32 %v958, %v971
      %v979 = vmul.f32 %v963, %v976
      %v980 = vld [vmem:[%s11] sm:$0xff]
      %v981 = vld [vmem:[%s11 + $0x8] sm:$0xff]
      %983 = vset.pattern.permute.xlu0 0
      %984 = vperm.xlu0 %983, %v980
      %v985 = vpop.permute.xlu0 %984
      %988 = vset.pattern.permute.xlu0 0
      %989 = vperm.xlu0 %988, %v981
      %v990 = vpop.permute.xlu0 %989
      %v992 = vadd.f32 %v978, %v985
      %v993 = vadd.f32 %v979, %v990
      %v994 = vmax.f32 %v992, 0.0
      %v995 = vmax.f32 %v993, 0.0
      %v996 = vadd.f32 %v994, %v718
      %v997 = vadd.f32 %v995, %v719
      %1000 = vrot.lane.b32.xlu0 %v996, 2
      %v1001 = vpop.permute.xlu0 %1000
      %1002 = vrot.lane.b32.xlu0 %v997, 2
      %v1003 = vpop.permute.xlu0 %1002
      %1006 = vst.msk [vmem:[#allocation2] sm:$0xff] %vm589, %v1001
      %1007 = vst.msk [vmem:[#allocation2 + $0x8] sm:$0xff] %vm589, %v1003
      %s1008 = scalar_lea.vmem %s3, 16
      %v1009 = vld [vmem:[%s1008] sm:$0xff]
      %v1010 = vld [vmem:[%s1008 + $0x8] sm:$0xff]
      %v1011 = vld [vmem:[#allocation2] sm:$0xff]
      %v1012 = vld [vmem:[#allocation2 + $0x8] sm:$0xff]
      %1014 = vset.pattern.permute.xlu0 0
      %1015 = vperm.xlu0 %1014, %v1009
      %v1016 = vpop.permute.xlu0 %1015
      %1019 = vset.pattern.permute.xlu0 0
      %1020 = vperm.xlu0 %1019, %v1010
      %v1021 = vpop.permute.xlu0 %1020
      %v1023 = vmul.f32 %v1016, %v1011
      %v1024 = vmul.f32 %v1021, %v1012
      %1025 = vset.pattern.permute.xlu0 1
      %1026 = vperm.xlu0 %1025, %v1009
      %v1027 = vpop.permute.xlu0 %1026
      %1029 = vset.pattern.permute.xlu0 1
      %1030 = vperm.xlu0 %1029, %v1010
      %v1031 = vpop.permute.xlu0 %1030
      %v1033 = vmul.f32 %v1027, %v1011
      %v1034 = vmul.f32 %v1031, %v1012
      %1037 = vrot.lane.b32.xlu0 %v1033, 127
      %v1038 = vpop.permute.xlu0 %1037
      %1039 = vrot.lane.b32.xlu0 %v1034, 127
      %v1040 = vpop.permute.xlu0 %1039
      %v1043 = vadd.f32 %v1023, %v1038
      %v1044 = vadd.f32 %v1024, %v1040
      %1045 = vset.pattern.permute.xlu0 2
      %1046 = vperm.xlu0 %1045, %v1009
      %v1047 = vpop.permute.xlu0 %1046
      %1049 = vset.pattern.permute.xlu0 2
      %1050 = vperm.xlu0 %1049, %v1010
      %v1051 = vpop.permute.xlu0 %1050
      %v1053 = vmul.f32 %v1047, %v1011
      %v1054 = vmul.f32 %v1051, %v1012
      %1057 = vrot.lane.b32.xlu0 %v1053, 126
      %v1058 = vpop.permute.xlu0 %1057
      %1059 = vrot.lane.b32.xlu0 %v1054, 126
      %v1060 = vpop.permute.xlu0 %1059
      %v1063 = vadd.f32 %v1043, %v1058
      %v1064 = vadd.f32 %v1044, %v1060
      %1065 = vset.pattern.permute.xlu0 3
      %1066 = vperm.xlu0 %1065, %v1009
      %v1067 = vpop.permute.xlu0 %1066
      %1069 = vset.pattern.permute.xlu0 3
      %1070 = vperm.xlu0 %1069, %v1010
      %v1071 = vpop.permute.xlu0 %1070
      %v1073 = vmul.f32 %v1067, %v1011
      %v1074 = vmul.f32 %v1071, %v1012
      %1077 = vrot.lane.b32.xlu0 %v1073, 125
      %v1078 = vpop.permute.xlu0 %1077
      %1079 = vrot.lane.b32.xlu0 %v1074, 125
      %v1080 = vpop.permute.xlu0 %1079
      %v1083 = vadd.f32 %v1063, %v1078
      %v1084 = vadd.f32 %v1064, %v1080
      %1085 = vset.pattern.permute.xlu0 4
      %1086 = vperm.xlu0 %1085, %v1009
      %v1087 = vpop.permute.xlu0 %1086
      %1089 = vset.pattern.permute.xlu0 4
      %1090 = vperm.xlu0 %1089, %v1010
      %v1091 = vpop.permute.xlu0 %1090
      %v1093 = vmul.f32 %v1087, %v1011
      %v1094 = vmul.f32 %v1091, %v1012
      %1097 = vrot.lane.b32.xlu0 %v1093, 124
      %v1098 = vpop.permute.xlu0 %1097
      %1099 = vrot.lane.b32.xlu0 %v1094, 124
      %v1100 = vpop.permute.xlu0 %1099
      %v1103 = vadd.f32 %v1083, %v1098
      %v1104 = vadd.f32 %v1084, %v1100
      %s1105 = scalar_lea.vmem %s4, 16
      %v1106 = vld [vmem:[%s1105] sm:$0xff]
      %v1107 = vld [vmem:[%s1105 + $0x8] sm:$0xff]
      %1109 = vset.pattern.permute.xlu0 0
      %1110 = vperm.xlu0 %1109, %v1106
      %v1111 = vpop.permute.xlu0 %1110
      %1114 = vset.pattern.permute.xlu0 0
      %1115 = vperm.xlu0 %1114, %v1107
      %v1116 = vpop.permute.xlu0 %1115
      %v1118 = vmul.f32 %v1103, %v1111
      %v1119 = vmul.f32 %v1104, %v1116
      %s1120 = scalar_lea.vmem %s5, 16
      %v1121 = vld [vmem:[%s1120] sm:$0xff]
      %v1122 = vld [vmem:[%s1120 + $0x8] sm:$0xff]
      %1124 = vset.pattern.permute.xlu0 0
      %1125 = vperm.xlu0 %1124, %v1121
      %v1126 = vpop.permute.xlu0 %1125
      %1129 = vset.pattern.permute.xlu0 0
      %1130 = vperm.xlu0 %1129, %v1122
      %v1131 = vpop.permute.xlu0 %1130
      %v1133 = vadd.f32 %v1118, %v1126
      %v1134 = vadd.f32 %v1119, %v1131
      %v1135 = vmax.f32 %v1133, 0.0
      %v1136 = vmax.f32 %v1134, 0.0
      %v1137 = vadd.f32 %v1135, %v996
      %v1138 = vadd.f32 %v1136, %v997
      %s1139 = scalar_lea.vmem %s6, 32
      %v1140 = vld [vmem:[%s1139] sm:$0xff]
      %v1141 = vld [vmem:[%s1139 + $0x8] sm:$0xff]
      %v1142 = vld [vmem:[%s1139 + $0x10] sm:$0xff]
      %v1143 = vld [vmem:[%s1139 + $0x18] sm:$0xff]
      %v1145 = vsel %vm724, %v1140, 0
      %v1148 = vsel %vm724, %v1141, 0
      %v1151 = vsel %vm724, %v1142, 0
      %v1154 = vsel %vm724, %v1143, 0
      %1156 = vmatprep.subr.mxu0 0.0
      %1157 = vmatpush1.msra.mxu0 %v1137
      %1158 = vmatprep.subr.mxu0 0.0
      %1159 = vmatpush1.msra.mxu0 %v1138
      %1160 = vmatprep.subr.mxu0 0.0
      %1161 = vmatpush1.msra.mxu0 0.0
      %1162 = vmatprep.subr.mxu0 0.0
      %1163 = vmatpush1.msra.mxu0 0.0
      %1164 = vmatprep.subr.mxu0 0.0
      %1165 = vmatpush1.msra.mxu0 0.0
      %1166 = vmatprep.subr.mxu0 0.0
      %1167 = vmatpush1.msra.mxu0 0.0
      %1168 = vmatprep.subr.mxu0 0.0
      %1169 = vmatpush1.msra.mxu0 0.0
      %1170 = vmatprep.subr.mxu0 0.0
      %1171 = vmatpush1.msra.mxu0 0.0
      %1172 = vmatprep.subr.mxu0 0.0
      %1173 = vmatpush1.msra.mxu0 0.0
      %1174 = vmatprep.subr.mxu0 0.0
      %1175 = vmatpush1.msra.mxu0 0.0
      %1176 = vmatprep.subr.mxu0 0.0
      %1177 = vmatpush1.msra.mxu0 0.0
      %1178 = vmatprep.subr.mxu0 0.0
      %1179 = vmatpush1.msra.mxu0 0.0
      %1180 = vmatprep.subr.mxu0 0.0
      %1181 = vmatpush1.msra.mxu0 0.0
      %1182 = vmatprep.subr.mxu0 0.0
      %1183 = vmatpush1.msra.mxu0 0.0
      %1184 = vmatprep.subr.mxu0 0.0
      %1185 = vmatpush1.msra.mxu0 0.0
      %1186 = vmatprep.subr.mxu0 0.0
      %1187 = vmatpush1.msra.mxu0 0.0
      %1188 = vmatprep.subr.mxu0 0.0
      %1189 = vmatpush1.msra.mxu0 0.0
      %1190 = vmatprep.subr.mxu0 0.0
      %1191 = vmatpush1.msra.mxu0 0.0
      %1192 = vmatprep.subr.mxu0 0.0
      %1193 = vmatpush1.msra.mxu0 0.0
      %1194 = vmatprep.subr.mxu0 0.0
      %1195 = vmatpush1.msra.mxu0 0.0
      %1196 = vmatprep.subr.mxu0 0.0
      %1197 = vmatpush1.msra.mxu0 0.0
      %1198 = vmatprep.subr.mxu0 0.0
      %1199 = vmatpush1.msra.mxu0 0.0
      %1200 = vmatprep.subr.mxu0 0.0
      %1201 = vmatpush1.msra.mxu0 0.0
      %1202 = vmatprep.subr.mxu0 0.0
      %1203 = vmatpush1.msra.mxu0 0.0
      %1204 = vmatprep.subr.mxu0 0.0
      %1205 = vmatpush1.msra.mxu0 0.0
      %1206 = vmatprep.subr.mxu0 0.0
      %1207 = vmatpush1.msra.mxu0 0.0
      %1208 = vmatprep.subr.mxu0 0.0
      %1209 = vmatpush1.msra.mxu0 0.0
      %1210 = vmatprep.subr.mxu0 0.0
      %1211 = vmatpush1.msra.mxu0 0.0
      %1212 = vmatprep.subr.mxu0 0.0
      %1213 = vmatpush1.msra.mxu0 0.0
      %1214 = vmatprep.subr.mxu0 0.0
      %1215 = vmatpush1.msra.mxu0 0.0
      %1216 = vmatprep.subr.mxu0 0.0
      %1217 = vmatpush1.msra.mxu0 0.0
      %1218 = vmatprep.subr.mxu0 0.0
      %1219 = vmatpush1.msra.mxu0 0.0
      %1220 = vmatprep.mubr.f32.mxu0 0.0
      %1221 = vmatmul.mubr.f32.gmra.mrb[0].mxu0 %v1145
      %v1222 = vpop.f32.mrb[0].mxu0
      %v1223 = vadd.f32 0.0, %v1222
      %v1224 = vpop.f32.mrb[0].mxu0
      %1225 = vmatprep.mubr.f32.mxu0 0.0
      %1226 = vmatmul.mubr.f32.gmra.mrb[0].mxu0 %v1148
      %v1227 = vpop.f32.mrb[0].mxu0
      %v1228 = vadd.f32 0.0, %v1227
      %v1229 = vpop.f32.mrb[0].mxu0
      %1230 = vmatprep.mubr.f32.mxu0 0.0
      %1231 = vmatmul.mubr.f32.gmra.mrb[0].mxu0 %v1151
      %v1232 = vpop.f32.mrb[0].mxu0
      %v1233 = vadd.f32 0.0, %v1232
      %v1234 = vpop.f32.mrb[0].mxu0
      %1235 = vmatprep.mubr.f32.mxu0 0.0
      %1236 = vmatmul.mubr.f32.gmra.mrb[0].mxu0 %v1154
      %v1237 = vpop.f32.mrb[0].mxu0
      %v1238 = vadd.f32 0.0, %v1237
      %v1239 = vpop.f32.mrb[0].mxu0
      %1240 = vdwg.mxu0
      %s1241 = scalar_lea.vmem %s7, 32
      %v1242 = vld [vmem:[%s1241] sm:$0xff]
      %v1243 = vld [vmem:[%s1241 + $0x8] sm:$0xff]
      %v1244 = vld [vmem:[%s1241 + $0x10] sm:$0xff]
      %v1245 = vld [vmem:[%s1241 + $0x18] sm:$0xff]
      %1247 = vset.pattern.permute.xlu0 0
      %1248 = vperm.xlu0 %1247, %v1242
      %v1249 = vpop.permute.xlu0 %1248
      %1252 = vset.pattern.permute.xlu0 0
      %1253 = vperm.xlu0 %1252, %v1243
      %v1254 = vpop.permute.xlu0 %1253
      %1257 = vset.pattern.permute.xlu0 0
      %1258 = vperm.xlu0 %1257, %v1244
      %v1259 = vpop.permute.xlu0 %1258
      %1262 = vset.pattern.permute.xlu0 0
      %1263 = vperm.xlu0 %1262, %v1245
      %v1264 = vpop.permute.xlu0 %1263
      %v1266 = vmul.f32 %v1223, %v1249
      %v1267 = vmul.f32 %v1228, %v1254
      %v1268 = vmul.f32 %v1233, %v1259
      %v1269 = vmul.f32 %v1238, %v1264
      %s1270 = scalar_lea.vmem %s8, 32
      %v1271 = vld [vmem:[%s1270] sm:$0xff]
      %v1272 = vld [vmem:[%s1270 + $0x8] sm:$0xff]
      %v1273 = vld [vmem:[%s1270 + $0x10] sm:$0xff]
      %v1274 = vld [vmem:[%s1270 + $0x18] sm:$0xff]
      %1276 = vset.pattern.permute.xlu0 0
      %1277 = vperm.xlu0 %1276, %v1271
      %v1278 = vpop.permute.xlu0 %1277
      %1281 = vset.pattern.permute.xlu0 0
      %1282 = vperm.xlu0 %1281, %v1272
      %v1283 = vpop.permute.xlu0 %1282
      %1286 = vset.pattern.permute.xlu0 0
      %1287 = vperm.xlu0 %1286, %v1273
      %v1288 = vpop.permute.xlu0 %1287
      %1291 = vset.pattern.permute.xlu0 0
      %1292 = vperm.xlu0 %1291, %v1274
      %v1293 = vpop.permute.xlu0 %1292
      %v1295 = vadd.f32 %v1266, %v1278
      %v1296 = vadd.f32 %v1267, %v1283
      %v1297 = vadd.f32 %v1268, %v1288
      %v1298 = vadd.f32 %v1269, %v1293
      %v1299 = vmax.f32 %v1295, 0.0
      %v1300 = vmax.f32 %v1296, 0.0
      %v1301 = vmax.f32 %v1297, 0.0
      %v1302 = vmax.f32 %v1298, 0.0
      %s1303 = scalar_lea.vmem %s9, 16
      %v1304 = vld [vmem:[%s1303] sm:$0xff]
      %v1305 = vld [vmem:[%s1303 + $0x8] sm:$0xff]
      %v1307 = vsel %vm884, %v1304, 0
      %v1310 = vsel %vm884, %v1305, 0
      %1312 = vmatprep.subr.mxu0 0.0
      %1313 = vmatpush1.msra.mxu0 %v1299
      %1314 = vmatprep.subr.mxu0 0.0
      %1315 = vmatpush1.msra.mxu0 %v1300
      %1316 = vmatprep.subr.mxu0 0.0
      %1317 = vmatpush1.msra.mxu0 %v1301
      %1318 = vmatprep.subr.mxu0 0.0
      %1319 = vmatpush1.msra.mxu0 %v1302
      %1320 = vmatprep.subr.mxu0 0.0
      %1321 = vmatpush1.msra.mxu0 0.0
      %1322 = vmatprep.subr.mxu0 0.0
      %1323 = vmatpush1.msra.mxu0 0.0
      %1324 = vmatprep.subr.mxu0 0.0
      %1325 = vmatpush1.msra.mxu0 0.0
      %1326 = vmatprep.subr.mxu0 0.0
      %1327 = vmatpush1.msra.mxu0 0.0
      %1328 = vmatprep.subr.mxu0 0.0
      %1329 = vmatpush1.msra.mxu0 0.0
      %1330 = vmatprep.subr.mxu0 0.0
      %1331 = vmatpush1.msra.mxu0 0.0
      %1332 = vmatprep.subr.mxu0 0.0
      %1333 = vmatpush1.msra.mxu0 0.0
      %1334 = vmatprep.subr.mxu0 0.0
      %1335 = vmatpush1.msra.mxu0 0.0
      %1336 = vmatprep.subr.mxu0 0.0
      %1337 = vmatpush1.msra.mxu0 0.0
      %1338 = vmatprep.subr.mxu0 0.0
      %1339 = vmatpush1.msra.mxu0 0.0
      %1340 = vmatprep.subr.mxu0 0.0
      %1341 = vmatpush1.msra.mxu0 0.0
      %1342 = vmatprep.subr.mxu0 0.0
      %1343 = vmatpush1.msra.mxu0 0.0
      %1344 = vmatprep.subr.mxu0 0.0
      %1345 = vmatpush1.msra.mxu0 0.0
      %1346 = vmatprep.subr.mxu0 0.0
      %1347 = vmatpush1.msra.mxu0 0.0
      %1348 = vmatprep.subr.mxu0 0.0
      %1349 = vmatpush1.msra.mxu0 0.0
      %1350 = vmatprep.subr.mxu0 0.0
      %1351 = vmatpush1.msra.mxu0 0.0
      %1352 = vmatprep.subr.mxu0 0.0
      %1353 = vmatpush1.msra.mxu0 0.0
      %1354 = vmatprep.subr.mxu0 0.0
      %1355 = vmatpush1.msra.mxu0 0.0
      %1356 = vmatprep.subr.mxu0 0.0
      %1357 = vmatpush1.msra.mxu0 0.0
      %1358 = vmatprep.subr.mxu0 0.0
      %1359 = vmatpush1.msra.mxu0 0.0
      %1360 = vmatprep.subr.mxu0 0.0
      %1361 = vmatpush1.msra.mxu0 0.0
      %1362 = vmatprep.subr.mxu0 0.0
      %1363 = vmatpush1.msra.mxu0 0.0
      %1364 = vmatprep.subr.mxu0 0.0
      %1365 = vmatpush1.msra.mxu0 0.0
      %1366 = vmatprep.subr.mxu0 0.0
      %1367 = vmatpush1.msra.mxu0 0.0
      %1368 = vmatprep.subr.mxu0 0.0
      %1369 = vmatpush1.msra.mxu0 0.0
      %1370 = vmatprep.subr.mxu0 0.0
      %1371 = vmatpush1.msra.mxu0 0.0
      %1372 = vmatprep.subr.mxu0 0.0
      %1373 = vmatpush1.msra.mxu0 0.0
      %1374 = vmatprep.subr.mxu0 0.0
      %1375 = vmatpush1.msra.mxu0 0.0
      %1376 = vmatprep.mubr.f32.mxu0 0.0
      %1377 = vmatmul.mubr.f32.gmra.mrb[0].mxu0 %v1307
      %v1378 = vpop.f32.mrb[0].mxu0
      %v1379 = vadd.f32 0.0, %v1378
      %v1380 = vpop.f32.mrb[0].mxu0
      %1381 = vmatprep.mubr.f32.mxu0 0.0
      %1382 = vmatmul.mubr.f32.gmra.mrb[0].mxu0 %v1310
      %v1383 = vpop.f32.mrb[0].mxu0
      %v1384 = vadd.f32 0.0, %v1383
      %v1385 = vpop.f32.mrb[0].mxu0
      %1386 = vdwg.mxu0
      %s1387 = scalar_lea.vmem %s10, 16
      %v1388 = vld [vmem:[%s1387] sm:$0xff]
      %v1389 = vld [vmem:[%s1387 + $0x8] sm:$0xff]
      %1391 = vset.pattern.permute.xlu0 0
      %1392 = vperm.xlu0 %1391, %v1388
      %v1393 = vpop.permute.xlu0 %1392
      %1396 = vset.pattern.permute.xlu0 0
      %1397 = vperm.xlu0 %1396, %v1389
      %v1398 = vpop.permute.xlu0 %1397
      %v1400 = vmul.f32 %v1379, %v1393
      %v1401 = vmul.f32 %v1384, %v1398
      %s1402 = scalar_lea.vmem %s11, 16
      %v1403 = vld [vmem:[%s1402] sm:$0xff]
      %v1404 = vld [vmem:[%s1402 + $0x8] sm:$0xff]
      %1406 = vset.pattern.permute.xlu0 0
      %1407 = vperm.xlu0 %1406, %v1403
      %v1408 = vpop.permute.xlu0 %1407
      %1411 = vset.pattern.permute.xlu0 0
      %1412 = vperm.xlu0 %1411, %v1404
      %v1413 = vpop.permute.xlu0 %1412
      %v1415 = vadd.f32 %v1400, %v1408
      %v1416 = vadd.f32 %v1401, %v1413
      %v1417 = vmax.f32 %v1415, 0.0
      %v1418 = vmax.f32 %v1416, 0.0
      %v1419 = vadd.f32 %v1417, %v1137
      %v1420 = vadd.f32 %v1418, %v1138
      %1423 = vrot.lane.b32.xlu0 %v1419, 2
      %v1424 = vpop.permute.xlu0 %1423
      %1425 = vrot.lane.b32.xlu0 %v1420, 2
      %v1426 = vpop.permute.xlu0 %1425
      %1429 = vst.msk [vmem:[#allocation2] sm:$0xff] %vm589, %v1424
      %1430 = vst.msk [vmem:[#allocation2 + $0x8] sm:$0xff] %vm589, %v1426
      %s1431 = scalar_lea.vmem %s3, 32
      %v1432 = vld [vmem:[%s1431] sm:$0xff]
      %v1433 = vld [vmem:[%s1431 + $0x8] sm:$0xff]
      %v1434 = vld [vmem:[#allocation2] sm:$0xff]
      %v1435 = vld [vmem:[#allocation2 + $0x8] sm:$0xff]
      %1437 = vset.pattern.permute.xlu0 0
      %1438 = vperm.xlu0 %1437, %v1432
      %v1439 = vpop.permute.xlu0 %1438
      %1442 = vset.pattern.permute.xlu0 0
      %1443 = vperm.xlu0 %1442, %v1433
      %v1444 = vpop.permute.xlu0 %1443
      %v1446 = vmul.f32 %v1439, %v1434
      %v1447 = vmul.f32 %v1444, %v1435
      %1448 = vset.pattern.permute.xlu0 1
      %1449 = vperm.xlu0 %1448, %v1432
      %v1450 = vpop.permute.xlu0 %1449
      %1452 = vset.pattern.permute.xlu0 1
      %1453 = vperm.xlu0 %1452, %v1433
      %v1454 = vpop.permute.xlu0 %1453
      %v1456 = vmul.f32 %v1450, %v1434
      %v1457 = vmul.f32 %v1454, %v1435
      %1460 = vrot.lane.b32.xlu0 %v1456, 127
      %v1461 = vpop.permute.xlu0 %1460
      %1462 = vrot.lane.b32.xlu0 %v1457, 127
      %v1463 = vpop.permute.xlu0 %1462
      %v1466 = vadd.f32 %v1446, %v1461
      %v1467 = vadd.f32 %v1447, %v1463
      %1468 = vset.pattern.permute.xlu0 2
      %1469 = vperm.xlu0 %1468, %v1432
      %v1470 = vpop.permute.xlu0 %1469
      %1472 = vset.pattern.permute.xlu0 2
      %1473 = vperm.xlu0 %1472, %v1433
      %v1474 = vpop.permute.xlu0 %1473
      %v1476 = vmul.f32 %v1470, %v1434
      %v1477 = vmul.f32 %v1474, %v1435
      %1480 = vrot.lane.b32.xlu0 %v1476, 126
      %v1481 = vpop.permute.xlu0 %1480
      %1482 = vrot.lane.b32.xlu0 %v1477, 126
      %v1483 = vpop.permute.xlu0 %1482
      %v1486 = vadd.f32 %v1466, %v1481
      %v1487 = vadd.f32 %v1467, %v1483
      %1488 = vset.pattern.permute.xlu0 3
      %1489 = vperm.xlu0 %1488, %v1432
      %v1490 = vpop.permute.xlu0 %1489
      %1492 = vset.pattern.permute.xlu0 3
      %1493 = vperm.xlu0 %1492, %v1433
      %v1494 = vpop.permute.xlu0 %1493
      %v1496 = vmul.f32 %v1490, %v1434
      %v1497 = vmul.f32 %v1494, %v1435
      %1500 = vrot.lane.b32.xlu0 %v1496, 125
      %v1501 = vpop.permute.xlu0 %1500
      %1502 = vrot.lane.b32.xlu0 %v1497, 125
      %v1503 = vpop.permute.xlu0 %1502
      %v1506 = vadd.f32 %v1486, %v1501
      %v1507 = vadd.f32 %v1487, %v1503
      %1508 = vset.pattern.permute.xlu0 4
      %1509 = vperm.xlu0 %1508, %v1432
      %v1510 = vpop.permute.xlu0 %1509
      %1512 = vset.pattern.permute.xlu0 4
      %1513 = vperm.xlu0 %1512, %v1433
      %v1514 = vpop.permute.xlu0 %1513
      %v1516 = vmul.f32 %v1510, %v1434
      %v1517 = vmul.f32 %v1514, %v1435
      %1520 = vrot.lane.b32.xlu0 %v1516, 124
      %v1521 = vpop.permute.xlu0 %1520
      %1522 = vrot.lane.b32.xlu0 %v1517, 124
      %v1523 = vpop.permute.xlu0 %1522
      %v1526 = vadd.f32 %v1506, %v1521
      %v1527 = vadd.f32 %v1507, %v1523
      %s1528 = scalar_lea.vmem %s4, 32
      %v1529 = vld [vmem:[%s1528] sm:$0xff]
      %v1530 = vld [vmem:[%s1528 + $0x8] sm:$0xff]
      %1532 = vset.pattern.permute.xlu0 0
      %1533 = vperm.xlu0 %1532, %v1529
      %v1534 = vpop.permute.xlu0 %1533
      %1537 = vset.pattern.permute.xlu0 0
      %1538 = vperm.xlu0 %1537, %v1530
      %v1539 = vpop.permute.xlu0 %1538
      %v1541 = vmul.f32 %v1526, %v1534
      %v1542 = vmul.f32 %v1527, %v1539
      %s1543 = scalar_lea.vmem %s5, 32
      %v1544 = vld [vmem:[%s1543] sm:$0xff]
      %v1545 = vld [vmem:[%s1543 + $0x8] sm:$0xff]
      %1547 = vset.pattern.permute.xlu0 0
      %1548 = vperm.xlu0 %1547, %v1544
      %v1549 = vpop.permute.xlu0 %1548
      %1552 = vset.pattern.permute.xlu0 0
      %1553 = vperm.xlu0 %1552, %v1545
      %v1554 = vpop.permute.xlu0 %1553
      %v1556 = vadd.f32 %v1541, %v1549
      %v1557 = vadd.f32 %v1542, %v1554
      %v1558 = vmax.f32 %v1556, 0.0
      %v1559 = vmax.f32 %v1557, 0.0
      %v1560 = vadd.f32 %v1558, %v1419
      %v1561 = vadd.f32 %v1559, %v1420
      %s1562 = scalar_lea.vmem %s6, 64
      %v1563 = vld [vmem:[%s1562] sm:$0xff]
      %v1564 = vld [vmem:[%s1562 + $0x8] sm:$0xff]
      %v1565 = vld [vmem:[%s1562 + $0x10] sm:$0xff]
      %v1566 = vld [vmem:[%s1562 + $0x18] sm:$0xff]
      %v1568 = vsel %vm724, %v1563, 0
      %v1571 = vsel %vm724, %v1564, 0
      %v1574 = vsel %vm724, %v1565, 0
      %v1577 = vsel %vm724, %v1566, 0
      %1579 = vmatprep.subr.mxu0 0.0
      %1580 = vmatpush1.msra.mxu0 %v1560
      %1581 = vmatprep.subr.mxu0 0.0
      %1582 = vmatpush1.msra.mxu0 %v1561
      %1583 = vmatprep.subr.mxu0 0.0
      %1584 = vmatpush1.msra.mxu0 0.0
      %1585 = vmatprep.subr.mxu0 0.0
      %1586 = vmatpush1.msra.mxu0 0.0
      %1587 = vmatprep.subr.mxu0 0.0
      %1588 = vmatpush1.msra.mxu0 0.0
      %1589 = vmatprep.subr.mxu0 0.0
      %1590 = vmatpush1.msra.mxu0 0.0
      %1591 = vmatprep.subr.mxu0 0.0
      %1592 = vmatpush1.msra.mxu0 0.0
      %1593 = vmatprep.subr.mxu0 0.0
      %1594 = vmatpush1.msra.mxu0 0.0
      %1595 = vmatprep.subr.mxu0 0.0
      %1596 = vmatpush1.msra.mxu0 0.0
      %1597 = vmatprep.subr.mxu0 0.0
      %1598 = vmatpush1.msra.mxu0 0.0
      %1599 = vmatprep.subr.mxu0 0.0
      %1600 = vmatpush1.msra.mxu0 0.0
      %1601 = vmatprep.subr.mxu0 0.0
      %1602 = vmatpush1.msra.mxu0 0.0
      %1603 = vmatprep.subr.mxu0 0.0
      %1604 = vmatpush1.msra.mxu0 0.0
      %1605 = vmatprep.subr.mxu0 0.0
      %1606 = vmatpush1.msra.mxu0 0.0
      %1607 = vmatprep.subr.mxu0 0.0
      %1608 = vmatpush1.msra.mxu0 0.0
      %1609 = vmatprep.subr.mxu0 0.0
      %1610 = vmatpush1.msra.mxu0 0.0
      %1611 = vmatprep.subr.mxu0 0.0
      %1612 = vmatpush1.msra.mxu0 0.0
      %1613 = vmatprep.subr.mxu0 0.0
      %1614 = vmatpush1.msra.mxu0 0.0
      %1615 = vmatprep.subr.mxu0 0.0
      %1616 = vmatpush1.msra.mxu0 0.0
      %1617 = vmatprep.subr.mxu0 0.0
      %1618 = vmatpush1.msra.mxu0 0.0
      %1619 = vmatprep.subr.mxu0 0.0
      %1620 = vmatpush1.msra.mxu0 0.0
      %1621 = vmatprep.subr.mxu0 0.0
      %1622 = vmatpush1.msra.mxu0 0.0
      %1623 = vmatprep.subr.mxu0 0.0
      %1624 = vmatpush1.msra.mxu0 0.0
      %1625 = vmatprep.subr.mxu0 0.0
      %1626 = vmatpush1.msra.mxu0 0.0
      %1627 = vmatprep.subr.mxu0 0.0
      %1628 = vmatpush1.msra.mxu0 0.0
      %1629 = vmatprep.subr.mxu0 0.0
      %1630 = vmatpush1.msra.mxu0 0.0
      %1631 = vmatprep.subr.mxu0 0.0
      %1632 = vmatpush1.msra.mxu0 0.0
      %1633 = vmatprep.subr.mxu0 0.0
      %1634 = vmatpush1.msra.mxu0 0.0
      %1635 = vmatprep.subr.mxu0 0.0
      %1636 = vmatpush1.msra.mxu0 0.0
      %1637 = vmatprep.subr.mxu0 0.0
      %1638 = vmatpush1.msra.mxu0 0.0
      %1639 = vmatprep.subr.mxu0 0.0
      %1640 = vmatpush1.msra.mxu0 0.0
      %1641 = vmatprep.subr.mxu0 0.0
      %1642 = vmatpush1.msra.mxu0 0.0
      %1643 = vmatprep.mubr.f32.mxu0 0.0
      %1644 = vmatmul.mubr.f32.gmra.mrb[0].mxu0 %v1568
      %v1645 = vpop.f32.mrb[0].mxu0
      %v1646 = vadd.f32 0.0, %v1645
      %v1647 = vpop.f32.mrb[0].mxu0
      %1648 = vmatprep.mubr.f32.mxu0 0.0
      %1649 = vmatmul.mubr.f32.gmra.mrb[0].mxu0 %v1571
      %v1650 = vpop.f32.mrb[0].mxu0
      %v1651 = vadd.f32 0.0, %v1650
      %v1652 = vpop.f32.mrb[0].mxu0
      %1653 = vmatprep.mubr.f32.mxu0 0.0
      %1654 = vmatmul.mubr.f32.gmra.mrb[0].mxu0 %v1574
      %v1655 = vpop.f32.mrb[0].mxu0
      %v1656 = vadd.f32 0.0, %v1655
      %v1657 = vpop.f32.mrb[0].mxu0
      %1658 = vmatprep.mubr.f32.mxu0 0.0
      %1659 = vmatmul.mubr.f32.gmra.mrb[0].mxu0 %v1577
      %v1660 = vpop.f32.mrb[0].mxu0
      %v1661 = vadd.f32 0.0, %v1660
      %v1662 = vpop.f32.mrb[0].mxu0
      %1663 = vdwg.mxu0
      %s1664 = scalar_lea.vmem %s7, 64
      %v1665 = vld [vmem:[%s1664] sm:$0xff]
      %v1666 = vld [vmem:[%s1664 + $0x8] sm:$0xff]
      %v1667 = vld [vmem:[%s1664 + $0x10] sm:$0xff]
      %v1668 = vld [vmem:[%s1664 + $0x18] sm:$0xff]
      %1670 = vset.pattern.permute.xlu0 0
      %1671 = vperm.xlu0 %1670, %v1665
      %v1672 = vpop.permute.xlu0 %1671
      %1675 = vset.pattern.permute.xlu0 0
      %1676 = vperm.xlu0 %1675, %v1666
      %v1677 = vpop.permute.xlu0 %1676
      %1680 = vset.pattern.permute.xlu0 0
      %1681 = vperm.xlu0 %1680, %v1667
      %v1682 = vpop.permute.xlu0 %1681
      %1685 = vset.pattern.permute.xlu0 0
      %1686 = vperm.xlu0 %1685, %v1668
      %v1687 = vpop.permute.xlu0 %1686
      %v1689 = vmul.f32 %v1646, %v1672
      %v1690 = vmul.f32 %v1651, %v1677
      %v1691 = vmul.f32 %v1656, %v1682
      %v1692 = vmul.f32 %v1661, %v1687
      %s1693 = scalar_lea.vmem %s8, 64
      %v1694 = vld [vmem:[%s1693] sm:$0xff]
      %v1695 = vld [vmem:[%s1693 + $0x8] sm:$0xff]
      %v1696 = vld [vmem:[%s1693 + $0x10] sm:$0xff]
      %v1697 = vld [vmem:[%s1693 + $0x18] sm:$0xff]
      %1699 = vset.pattern.permute.xlu0 0
      %1700 = vperm.xlu0 %1699, %v1694
      %v1701 = vpop.permute.xlu0 %1700
      %1704 = vset.pattern.permute.xlu0 0
      %1705 = vperm.xlu0 %1704, %v1695
      %v1706 = vpop.permute.xlu0 %1705
      %1709 = vset.pattern.permute.xlu0 0
      %1710 = vperm.xlu0 %1709, %v1696
      %v1711 = vpop.permute.xlu0 %1710
      %1714 = vset.pattern.permute.xlu0 0
      %1715 = vperm.xlu0 %1714, %v1697
      %v1716 = vpop.permute.xlu0 %1715
      %v1718 = vadd.f32 %v1689, %v1701
      %v1719 = vadd.f32 %v1690, %v1706
      %v1720 = vadd.f32 %v1691, %v1711
      %v1721 = vadd.f32 %v1692, %v1716
      %v1722 = vmax.f32 %v1718, 0.0
      %v1723 = vmax.f32 %v1719, 0.0
      %v1724 = vmax.f32 %v1720, 0.0
      %v1725 = vmax.f32 %v1721, 0.0
      %s1726 = scalar_lea.vmem %s9, 32
      %v1727 = vld [vmem:[%s1726] sm:$0xff]
      %v1728 = vld [vmem:[%s1726 + $0x8] sm:$0xff]
      %v1730 = vsel %vm884, %v1727, 0
      %v1733 = vsel %vm884, %v1728, 0
      %1735 = vmatprep.subr.mxu0 0.0
      %1736 = vmatpush1.msra.mxu0 %v1722
      %1737 = vmatprep.subr.mxu0 0.0
      %1738 = vmatpush1.msra.mxu0 %v1723
      %1739 = vmatprep.subr.mxu0 0.0
      %1740 = vmatpush1.msra.mxu0 %v1724
      %1741 = vmatprep.subr.mxu0 0.0
      %1742 = vmatpush1.msra.mxu0 %v1725
      %1743 = vmatprep.subr.mxu0 0.0
      %1744 = vmatpush1.msra.mxu0 0.0
      %1745 = vmatprep.subr.mxu0 0.0
      %1746 = vmatpush1.msra.mxu0 0.0
      %1747 = vmatprep.subr.mxu0 0.0
      %1748 = vmatpush1.msra.mxu0 0.0
      %1749 = vmatprep.subr.mxu0 0.0
      %1750 = vmatpush1.msra.mxu0 0.0
      %1751 = vmatprep.subr.mxu0 0.0
      %1752 = vmatpush1.msra.mxu0 0.0
      %1753 = vmatprep.subr.mxu0 0.0
      %1754 = vmatpush1.msra.mxu0 0.0
      %1755 = vmatprep.subr.mxu0 0.0
      %1756 = vmatpush1.msra.mxu0 0.0
      %1757 = vmatprep.subr.mxu0 0.0
      %1758 = vmatpush1.msra.mxu0 0.0
      %1759 = vmatprep.subr.mxu0 0.0
      %1760 = vmatpush1.msra.mxu0 0.0
      %1761 = vmatprep.subr.mxu0 0.0
      %1762 = vmatpush1.msra.mxu0 0.0
      %1763 = vmatprep.subr.mxu0 0.0
      %1764 = vmatpush1.msra.mxu0 0.0
      %1765 = vmatprep.subr.mxu0 0.0
      %1766 = vmatpush1.msra.mxu0 0.0
      %1767 = vmatprep.subr.mxu0 0.0
      %1768 = vmatpush1.msra.mxu0 0.0
      %1769 = vmatprep.subr.mxu0 0.0
      %1770 = vmatpush1.msra.mxu0 0.0
      %1771 = vmatprep.subr.mxu0 0.0
      %1772 = vmatpush1.msra.mxu0 0.0
      %1773 = vmatprep.subr.mxu0 0.0
      %1774 = vmatpush1.msra.mxu0 0.0
      %1775 = vmatprep.subr.mxu0 0.0
      %1776 = vmatpush1.msra.mxu0 0.0
      %1777 = vmatprep.subr.mxu0 0.0
      %1778 = vmatpush1.msra.mxu0 0.0
      %1779 = vmatprep.subr.mxu0 0.0
      %1780 = vmatpush1.msra.mxu0 0.0
      %1781 = vmatprep.subr.mxu0 0.0
      %1782 = vmatpush1.msra.mxu0 0.0
      %1783 = vmatprep.subr.mxu0 0.0
      %1784 = vmatpush1.msra.mxu0 0.0
      %1785 = vmatprep.subr.mxu0 0.0
      %1786 = vmatpush1.msra.mxu0 0.0
      %1787 = vmatprep.subr.mxu0 0.0
      %1788 = vmatpush1.msra.mxu0 0.0
      %1789 = vmatprep.subr.mxu0 0.0
      %1790 = vmatpush1.msra.mxu0 0.0
      %1791 = vmatprep.subr.mxu0 0.0
      %1792 = vmatpush1.msra.mxu0 0.0
      %1793 = vmatprep.subr.mxu0 0.0
      %1794 = vmatpush1.msra.mxu0 0.0
      %1795 = vmatprep.subr.mxu0 0.0
      %1796 = vmatpush1.msra.mxu0 0.0
      %1797 = vmatprep.subr.mxu0 0.0
      %1798 = vmatpush1.msra.mxu0 0.0
      %1799 = vmatprep.mubr.f32.mxu0 0.0
      %1800 = vmatmul.mubr.f32.gmra.mrb[0].mxu0 %v1730
      %v1801 = vpop.f32.mrb[0].mxu0
      %v1802 = vadd.f32 0.0, %v1801
      %v1803 = vpop.f32.mrb[0].mxu0
      %1804 = vmatprep.mubr.f32.mxu0 0.0
      %1805 = vmatmul.mubr.f32.gmra.mrb[0].mxu0 %v1733
      %v1806 = vpop.f32.mrb[0].mxu0
      %v1807 = vadd.f32 0.0, %v1806
      %v1808 = vpop.f32.mrb[0].mxu0
      %1809 = vdwg.mxu0
      %s1810 = scalar_lea.vmem %s10, 32
      %v1811 = vld [vmem:[%s1810] sm:$0xff]
      %v1812 = vld [vmem:[%s1810 + $0x8] sm:$0xff]
      %1814 = vset.pattern.permute.xlu0 0
      %1815 = vperm.xlu0 %1814, %v1811
      %v1816 = vpop.permute.xlu0 %1815
      %1819 = vset.pattern.permute.xlu0 0
      %1820 = vperm.xlu0 %1819, %v1812
      %v1821 = vpop.permute.xlu0 %1820
      %v1823 = vmul.f32 %v1802, %v1816
      %v1824 = vmul.f32 %v1807, %v1821
      %s1825 = scalar_lea.vmem %s11, 32
      %v1826 = vld [vmem:[%s1825] sm:$0xff]
      %v1827 = vld [vmem:[%s1825 + $0x8] sm:$0xff]
      %1829 = vset.pattern.permute.xlu0 0
      %1830 = vperm.xlu0 %1829, %v1826
      %v1831 = vpop.permute.xlu0 %1830
      %1834 = vset.pattern.permute.xlu0 0
      %1835 = vperm.xlu0 %1834, %v1827
      %v1836 = vpop.permute.xlu0 %1835
      %v1838 = vadd.f32 %v1823, %v1831
      %v1839 = vadd.f32 %v1824, %v1836
      %v1840 = vmax.f32 %v1838, 0.0
      %v1841 = vmax.f32 %v1839, 0.0
      %v1842 = vadd.f32 %v1840, %v1560
      %v1843 = vadd.f32 %v1841, %v1561
      %v1844 = vld [vmem:[%s12] sm:$0xff]
      %v1845 = vld [vmem:[%s12 + $0x8] sm:$0xff]
      %v1846 = vld [vmem:[%s12 + $0x10] sm:$0xff]
      %v1847 = vld [vmem:[%s12 + $0x18] sm:$0xff]
      %v1848 = vld [vmem:[%s12 + $0x20] sm:$0xff]
      %v1849 = vld [vmem:[%s12 + $0x28] sm:$0xff]
      %v1850 = vld [vmem:[%s12 + $0x30] sm:$0xff]
      %v1851 = vld [vmem:[%s12 + $0x38] sm:$0xff]
      %v1852 = vld [vmem:[%s12 + $0x40] sm:$0xff]
      %v1853 = vld [vmem:[%s12 + $0x48] sm:$0xff]
      %v1854 = vld [vmem:[%s12 + $0x50] sm:$0xff]
      %v1855 = vld [vmem:[%s12 + $0x58] sm:$0xff]
      %v1856 = vld [vmem:[%s12 + $0x60] sm:$0xff]
      %v1857 = vld [vmem:[%s12 + $0x68] sm:$0xff]
      %v1858 = vld [vmem:[%s12 + $0x70] sm:$0xff]
      %v1859 = vld [vmem:[%s12 + $0x78] sm:$0xff]
      %v1860 = vld [vmem:[%s12 + $0x80] sm:$0xff]
      %v1861 = vld [vmem:[%s12 + $0x88] sm:$0xff]
      %v1862 = vld [vmem:[%s12 + $0x90] sm:$0xff]
      %v1863 = vld [vmem:[%s12 + $0x98] sm:$0xff]
      %v1864 = vmul.f32 %v1844, %v1842
      %v1865 = vmul.f32 %v1845, %v1843
      %v1866 = vmul.f32 %v1846, %v1842
      %v1867 = vmul.f32 %v1847, %v1843
      %v1868 = vmul.f32 %v1848, %v1842
      %v1869 = vmul.f32 %v1849, %v1843
      %v1870 = vmul.f32 %v1850, %v1842
      %v1871 = vmul.f32 %v1851, %v1843
      %v1872 = vmul.f32 %v1852, %v1842
      %v1873 = vmul.f32 %v1853, %v1843
      %v1874 = vmul.f32 %v1854, %v1842
      %v1875 = vmul.f32 %v1855, %v1843
      %v1876 = vmul.f32 %v1856, %v1842
      %v1877 = vmul.f32 %v1857, %v1843
      %v1878 = vmul.f32 %v1858, %v1842
      %v1879 = vmul.f32 %v1859, %v1843
      %v1880 = vmul.f32 %v1860, %v1842
      %v1881 = vmul.f32 %v1861, %v1843
      %v1882 = vmul.f32 %v1862, %v1842
      %v1883 = vmul.f32 %v1863, %v1843
      %vm1884 = vcmask 64512
      %v1885 = vsel %vm1884, %v1864, 0.0
      %1886 = vadd.xlane.f32.xlu0 %v1885
      %v1887 = vpop.xlane.xlu0 %1886
      %v1888 = vsel %vm1884, %v1865, 0.0
      %1889 = vadd.xlane.f32.xlu0 %v1888
      %v1890 = vpop.xlane.xlu0 %1889
      %v1891 = vsel %vm1884, %v1866, 0.0
      %1892 = vadd.xlane.f32.xlu0 %v1891
      %v1893 = vpop.xlane.xlu0 %1892
      %v1894 = vsel %vm1884, %v1867, 0.0
      %1895 = vadd.xlane.f32.xlu0 %v1894
      %v1896 = vpop.xlane.xlu0 %1895
      %v1897 = vsel %vm1884, %v1868, 0.0
      %1898 = vadd.xlane.f32.xlu0 %v1897
      %v1899 = vpop.xlane.xlu0 %1898
      %v1900 = vsel %vm1884, %v1869, 0.0
      %1901 = vadd.xlane.f32.xlu0 %v1900
      %v1902 = vpop.xlane.xlu0 %1901
      %v1903 = vsel %vm1884, %v1870, 0.0
      %1904 = vadd.xlane.f32.xlu0 %v1903
      %v1905 = vpop.xlane.xlu0 %1904
      %v1906 = vsel %vm1884, %v1871, 0.0
      %1907 = vadd.xlane.f32.xlu0 %v1906
      %v1908 = vpop.xlane.xlu0 %1907
      %v1909 = vsel %vm1884, %v1872, 0.0
      %1910 = vadd.xlane.f32.xlu0 %v1909
      %v1911 = vpop.xlane.xlu0 %1910
      %v1912 = vsel %vm1884, %v1873, 0.0
      %1913 = vadd.xlane.f32.xlu0 %v1912
      %v1914 = vpop.xlane.xlu0 %1913
      %v1915 = vsel %vm1884, %v1874, 0.0
      %1916 = vadd.xlane.f32.xlu0 %v1915
      %v1917 = vpop.xlane.xlu0 %1916
      %v1918 = vsel %vm1884, %v1875, 0.0
      %1919 = vadd.xlane.f32.xlu0 %v1918
      %v1920 = vpop.xlane.xlu0 %1919
      %v1921 = vsel %vm1884, %v1876, 0.0
      %1922 = vadd.xlane.f32.xlu0 %v1921
      %v1923 = vpop.xlane.xlu0 %1922
      %v1924 = vsel %vm1884, %v1877, 0.0
      %1925 = vadd.xlane.f32.xlu0 %v1924
      %v1926 = vpop.xlane.xlu0 %1925
      %v1927 = vsel %vm1884, %v1878, 0.0
      %1928 = vadd.xlane.f32.xlu0 %v1927
      %v1929 = vpop.xlane.xlu0 %1928
      %v1930 = vsel %vm1884, %v1879, 0.0
      %1931 = vadd.xlane.f32.xlu0 %v1930
      %v1932 = vpop.xlane.xlu0 %1931
      %v1933 = vsel %vm1884, %v1880, 0.0
      %1934 = vadd.xlane.f32.xlu0 %v1933
      %v1935 = vpop.xlane.xlu0 %1934
      %v1936 = vsel %vm1884, %v1881, 0.0
      %1937 = vadd.xlane.f32.xlu0 %v1936
      %v1938 = vpop.xlane.xlu0 %1937
      %v1939 = vsel %vm1884, %v1882, 0.0
      %1940 = vadd.xlane.f32.xlu0 %v1939
      %v1941 = vpop.xlane.xlu0 %1940
      %v1942 = vsel %vm1884, %v1883, 0.0
      %1943 = vadd.xlane.f32.xlu0 %v1942
      %v1944 = vpop.xlane.xlu0 %1943
      %v1965 = vlaneseq
      %v1966 = vand.u32 %v1965, 127
      %v1967 = vlaneseq
      %v1968 = vshrl.u32 %v1967, 7
      %v1969 = vsub.s32 %v1966, %v1968
      %v1970 = vrot.slane %v1887, %v1969
      %v1971 = vadd.s32 %v1966, 4294967288
      %v1972 = vlaneseq
      %v1973 = vshrl.u32 %v1972, 7
      %v1974 = vsub.s32 %v1971, %v1973
      %v1975 = vrot.slane %v1890, %v1974
      %vm1976 = vcmask 130112
      %v1977 = vsel %vm1976, %v1975, %v1970
      %v1978 = vlaneseq
      %v1979 = vshrl.u32 %v1978, 7
      %v1980 = vsub.s32 %v1966, %v1979
      %v1981 = vrot.slane %v1893, %v1980
      %v1982 = vlaneseq
      %v1983 = vshrl.u32 %v1982, 7
      %v1984 = vsub.s32 %v1971, %v1983
      %v1985 = vrot.slane %v1896, %v1984
      %v1986 = vsel %vm1976, %v1985, %v1981
      %v1987 = vlaneseq
      %v1988 = vshrl.u32 %v1987, 7
      %v1989 = vsub.s32 %v1966, %v1988
      %v1990 = vrot.slane %v1899, %v1989
      %v1991 = vlaneseq
      %v1992 = vshrl.u32 %v1991, 7
      %v1993 = vsub.s32 %v1971, %v1992
      %v1994 = vrot.slane %v1902, %v1993
      %v1995 = vsel %vm1976, %v1994, %v1990
      %v1996 = vlaneseq
      %v1997 = vshrl.u32 %v1996, 7
      %v1998 = vsub.s32 %v1966, %v1997
      %v1999 = vrot.slane %v1905, %v1998
      %v2000 = vlaneseq
      %v2001 = vshrl.u32 %v2000, 7
      %v2002 = vsub.s32 %v1971, %v2001
      %v2003 = vrot.slane %v1908, %v2002
      %v2004 = vsel %vm1976, %v2003, %v1999
      %v2005 = vlaneseq
      %v2006 = vshrl.u32 %v2005, 7
      %v2007 = vsub.s32 %v1966, %v2006
      %v2008 = vrot.slane %v1911, %v2007
      %v2009 = vlaneseq
      %v2010 = vshrl.u32 %v2009, 7
      %v2011 = vsub.s32 %v1971, %v2010
      %v2012 = vrot.slane %v1914, %v2011
      %v2013 = vsel %vm1976, %v2012, %v2008
      %v2014 = vlaneseq
      %v2015 = vshrl.u32 %v2014, 7
      %v2016 = vsub.s32 %v1966, %v2015
      %v2017 = vrot.slane %v1917, %v2016
      %v2018 = vlaneseq
      %v2019 = vshrl.u32 %v2018, 7
      %v2020 = vsub.s32 %v1971, %v2019
      %v2021 = vrot.slane %v1920, %v2020
      %v2022 = vsel %vm1976, %v2021, %v2017
      %v2023 = vlaneseq
      %v2024 = vshrl.u32 %v2023, 7
      %v2025 = vsub.s32 %v1966, %v2024
      %v2026 = vrot.slane %v1923, %v2025
      %v2027 = vlaneseq
      %v2028 = vshrl.u32 %v2027, 7
      %v2029 = vsub.s32 %v1971, %v2028
      %v2030 = vrot.slane %v1926, %v2029
      %v2031 = vsel %vm1976, %v2030, %v2026
      %v2032 = vlaneseq
      %v2033 = vshrl.u32 %v2032, 7
      %v2034 = vsub.s32 %v1966, %v2033
      %v2035 = vrot.slane %v1929, %v2034
      %v2036 = vlaneseq
      %v2037 = vshrl.u32 %v2036, 7
      %v2038 = vsub.s32 %v1971, %v2037
      %v2039 = vrot.slane %v1932, %v2038
      %v2040 = vsel %vm1976, %v2039, %v2035
      %v2041 = vlaneseq
      %v2042 = vshrl.u32 %v2041, 7
      %v2043 = vsub.s32 %v1966, %v2042
      %v2044 = vrot.slane %v1935, %v2043
      %v2045 = vlaneseq
      %v2046 = vshrl.u32 %v2045, 7
      %v2047 = vsub.s32 %v1971, %v2046
      %v2048 = vrot.slane %v1938, %v2047
      %v2049 = vsel %vm1976, %v2048, %v2044
      %v2050 = vlaneseq
      %v2051 = vshrl.u32 %v2050, 7
      %v2052 = vsub.s32 %v1966, %v2051
      %v2053 = vrot.slane %v1941, %v2052
      %v2054 = vlaneseq
      %v2055 = vshrl.u32 %v2054, 7
      %v2056 = vsub.s32 %v1971, %v2055
      %v2057 = vrot.slane %v1944, %v2056
      %v2058 = vsel %vm1976, %v2057, %v2053
      %vm2059 = vcmask 1041409
      %v2060 = vsel %vm2059, %v1986, %v1977
      %vm2061 = vcmask 1042434
      %v2062 = vsel %vm2061, %v1995, %v2060
      %vm2063 = vcmask 1043459
      %v2064 = vsel %vm2063, %v2004, %v2062
      %vm2065 = vcmask 1044484
      %v2066 = vsel %vm2065, %v2013, %v2064
      %vm2067 = vcmask 1045509
      %v2068 = vsel %vm2067, %v2022, %v2066
      %vm2069 = vcmask 1046534
      %v2070 = vsel %vm2069, %v2031, %v2068
      %vm2071 = vcmask 1047559
      %v2072 = vsel %vm2071, %v2040, %v2070
      %v2073 = vsel %vm2059, %v2058, %v2049
      %v2076 = vsel %vm724, %v2072, 0.0
      %2077 = vadd.xlane.f32.xlu0 %v2076
      %v2078 = vpop.xlane.xlu0 %2077
      %vm2079 = vcmask 123904
      %v2080 = vsel %vm2079, %v2073, 0.0
      %2081 = vadd.xlane.f32.xlu0 %v2080
      %v2082 = vpop.xlane.xlu0 %2081
      %v2083 = vld [vmem:[%s13] sm:$0xff]
      %v2084 = vld [vmem:[%s13 + $0x8] sm:$0x3]
      %v2085 = vadd.f32 %v2078, %v2083
      %v2086 = vadd.f32 %v2082, %v2084
      %vm2087 = vcmask 7168
      %2088 = vst.msk [vmem:[%s467] sm:$0xff] %vm2087, %v2085
      %vm2089 = vcmask 1024
      %2090 = vst.msk [vmem:[%s467 + $0x8] sm:$0x3] %vm2089, %v2086
      %p2091 = scmp.lt.s32.totalorder %s25, 1
      %s2092 = scalar_select %p2091, %s25, 1
      %s2093 = smul.addr %s2092, 2
      %s2094 = smul.addr %s2093, 8
      %s2095 = scalar_lea.vmem %s14, %s2094
      // Predicated region
      $region77: #{model_forward_pallas.5} parent=75 // pred_check
        %p2096 = pneg %p342
      $region78: #{model_forward_pallas.5} parent=75 // pred_check_branch
        %2098 = sbr.rel (%p2096) target = $region80
      $region79: #{model_forward_pallas.5} parent=75 // pred_region
        _
      $region80: #{model_forward_pallas.5} parent=75 // pred_fallthru
        _
    $region76: #{model_forward_pallas.5} parent=5 // pred_fallthru
      _
    %p2099 = scmp.le.s32.totalorder 2, %s20
    // Predicated region
    $region81: #{model_forward_pallas.5} parent=5 // pred_check
      %p2100 = pneg %p2099
    $region82: #{model_forward_pallas.5} parent=5 // pred_check_branch
      %2102 = sbr.rel (%p2100) target = $region84
    $region83: #{model_forward_pallas.5} parent=5 // pred_region
      %s2103 = ssub.s32 %s20, 2
      // Predicated region
      $region85: #{model_forward_pallas.5} parent=83 // pred_check
        %p2104 = pneg %p348
      $region86: #{model_forward_pallas.5} parent=83 // pred_check_branch
        %2106 = sbr.rel (%p2104) target = $region88
      $region87: #{model_forward_pallas.5} parent=83 // pred_region
        %p2107 = scmp.lt.s32.totalorder %s26, 1
        %s2108 = scalar_select %p2107, %s26, 1
        %s2109 = smul.addr %s2108, 2
        %s2110 = smul.addr %s2109, 8
        %s2111 = scalar_lea.vmem %s14, %s2110
      $region88: #{model_forward_pallas.5} parent=83 // pred_fallthru
        _
    $region84: #{model_forward_pallas.5} parent=5 // pred_fallthru
      _
  $region6: #{model_forward_pallas.5} parent=0 // loop_footer
    %s24 = sadd.s32 1, %s20
  $region7: #{model_forward_pallas.5} parent=0 // loop_footer_branch
    %19 = sbr.rel target = $region3
  $region8: #{model_forward_pallas.5} parent=0 // loop_exit
    _

</llo_original>
